<compile_context>
chip_gen: v6e
topology: v6e:2x2x1
jax: 0.10.0
libtpu: 0.0.40
codegen_flags: <defaults>
</compile_context>

<pallas_src>
import jax
import jax.numpy as jnp
from jax.experimental import pallas as pl
from jax.experimental.pallas import tpu as pltpu


def _round_up(x: int, k: int) -> int:
    return (x + k - 1) // k * k


def _vmem_capacity_bytes() -> int:
    try:
        return int(pltpu.get_tpu_info().vmem_capacity_bytes)
    except Exception:
        return 64 * 1024 * 1024  # conservative default (v7x per-TC VMEM)


def _select_tiles(m_pad0: int, n_pad0: int, h: int, budget_bytes: int):
    """Largest (tm, tn) whose double-buffered VMEM footprint fits the budget."""
    tm_cands = sorted(
        {t for t in (m_pad0, 1024, 512, 256, 128, 64, 32, 16)
         if 16 <= t <= max(m_pad0, 16) and t % 16 == 0},
        reverse=True,
    )
    tn_cands = sorted(
        {t for t in (n_pad0, 4096, 2048, 1024, 512, 256, 128)
         if 128 <= t <= max(n_pad0, 128) and t % 128 == 0},
        reverse=True,
    )
    for tm in tm_cands:
        for tn in tn_cands:
            n_pad = _round_up(n_pad0, tn)
            usage = 2 * (tm * n_pad * 2      # X batch tile (bf16), double-buffered
                         + n_pad * h * 2     # full W1^T (bf16)
                         + h * 4             # b1 (f32)
                         + h * tn * 2        # W2^T item tile (bf16)
                         + tn * 4            # b2 item tile (f32)
                         + tm * tn * 4)      # output tile (f32)
            usage += tm * h * 2              # encoder scratch (single buffer)
            if usage <= budget_bytes:
                return tm, tn
    return 16, 128


def autorec_kernel(x_ref, w1_ref, b1_ref, w2_ref, b2_ref, o_ref, enc_ref):
    # x_ref  : (tm, n_pad) bf16  batch tile (block index constant over j -> resident)
    # w1_ref : (n_pad, h)  bf16  full encoder weight, pre-transposed (resident)
    # b1_ref : (1,  h)     f32
    # w2_ref : (h, tn)     bf16  decoder weight slice for item tile j, pre-transposed
    # b2_ref : (1, tn)     f32
    # o_ref  : (tm, tn)    f32
    # enc_ref: (tm, h)     bf16  scratch: encoder activations for this batch tile
    #
    # NOTE: the encoder scratch filled at j == 0 is reused for all j > 0 of the
    # same batch tile i; this requires j to be the innermost, sequentially
    # executed ("arbitrary") grid axis.  Never mark j "parallel".
    @pl.when(pl.program_id(1) == 0)
    def _compute_encoder():
        pre1 = jnp.dot(x_ref[...], w1_ref[...],
                       preferred_element_type=jnp.float32) + b1_ref[...]
        # Sigmoid in f32 on the EUP, narrowed to bf16 for the second MXU pass.
        enc_ref[...] = jax.nn.sigmoid(pre1).astype(enc_ref.dtype)

    dec = jnp.dot(enc_ref[...], w2_ref[...],
                  preferred_element_type=jnp.float32) + b2_ref[...]
    o_ref[...] = dec.astype(o_ref.dtype)


def autorec_forward(X, W1, b1, W2, b2, *, tm=None, tn=None):
    """AutoRec forward: sigmoid(X @ W1.T + b1) @ W2.T + b2.

    X: (m, n) f32.  W1: (h, n), b1: (h,), W2: (n, h), b2: (n,)  (PyTorch Linear layout).
    """
    m, n = X.shape
    h = W1.shape[0]

    # ---- alignment / tile selection (sublane 16 for bf16, lane 128) ----
    m_pad = _round_up(m, 16)
    n_pad = _round_up(n, 128)

    vmem_cap = _vmem_capacity_bytes()
    vmem_limit = min(vmem_cap - 8 * 1024 * 1024, 112 * 1024 * 1024)
    vmem_limit = max(vmem_limit, 32 * 1024 * 1024)
    budget = int(vmem_limit * 0.75)

    auto_tm, auto_tn = _select_tiles(m_pad, n_pad, h, budget)
    tm = auto_tm if tm is None else _round_up(min(tm, m_pad), 16)
    tn = auto_tn if tn is None else _round_up(min(tn, n_pad), 128)
    m_pad = _round_up(m_pad, tm)
    n_pad = _round_up(n_pad, tn)

    # ---- one-time HBM prep: bf16 cast, pre-transposed weights, pad only if needed ----
    Xb = X.astype(jnp.bfloat16)
    if (m_pad, n_pad) != (m, n):
        Xb = jnp.pad(Xb, ((0, m_pad - m), (0, n_pad - n)))
    W1t = W1.T.astype(jnp.bfloat16)            # (n, h): canonical (M,K)@(K,N) operand
    if n_pad != n:
        W1t = jnp.pad(W1t, ((0, n_pad - n), (0, 0)))
    W2t = W2.T.astype(jnp.bfloat16)            # (h, n)
    b2r = b2.reshape(1, n).astype(jnp.float32)
    if n_pad != n:
        W2t = jnp.pad(W2t, ((0, 0), (0, n_pad - n)))
        b2r = jnp.pad(b2r, ((0, 0), (0, n_pad - n)))
    b1r = b1.reshape(1, h).astype(jnp.float32)

    grid = (m_pad // tm, n_pad // tn)

    out = pl.pallas_call(
        autorec_kernel,
        out_shape=jax.ShapeDtypeStruct((m_pad, n_pad), jnp.float32),
        grid_spec=pltpu.PrefetchScalarGridSpec(
            num_scalar_prefetch=0,
            grid=grid,
            in_specs=[
                pl.BlockSpec((tm, n_pad), lambda i, j: (i, 0)),   # X batch tile (resident over j)
                pl.BlockSpec((n_pad, h), lambda i, j: (0, 0)),    # W1^T (fully resident)
                pl.BlockSpec((1, h), lambda i, j: (0, 0)),        # b1
                pl.BlockSpec((h, tn), lambda i, j: (0, j)),       # W2^T item tile
                pl.BlockSpec((1, tn), lambda i, j: (0, j)),       # b2 item tile
            ],
            out_specs=pl.BlockSpec((tm, tn), lambda i, j: (i, j)),
            scratch_shapes=[pltpu.VMEM((tm, h), jnp.bfloat16)],   # encoder cache
        ),
        compiler_params=pltpu.CompilerParams(
            # i (batch) tiles are independent -> megacore-shardable;
            # j must run sequentially so the j==0 encoder scratch is valid.
            dimension_semantics=("parallel", "arbitrary"),
            vmem_limit_bytes=vmem_limit,
        ),
    )(Xb, W1t, b1r, W2t, b2r)

    if (m_pad, n_pad) != (m, n):
        out = out[:m, :n]
    return out


def autorec_forward_ref_bf16(X, W1, b1, W2, b2):
    """Reference with the same bf16-input / f32-accumulate numerics as the kernel."""
    xb = X.astype(jnp.bfloat16)
    w1t = W1.T.astype(jnp.bfloat16)
    w2t = W2.T.astype(jnp.bfloat16)
    pre1 = jnp.dot(xb, w1t, preferred_element_type=jnp.float32) + b1.reshape(1, -1)
    enc = jax.nn.sigmoid(pre1).astype(jnp.bfloat16)
    dec = jnp.dot(enc, w2t, preferred_element_type=jnp.float32) + b2.reshape(1, -1)
    return dec


def autorec_forward_ref_f32(X, W1, b1, W2, b2):
    enc = jax.nn.sigmoid(X @ W1.T + b1)
    return enc @ W2.T + b2


def _run_case(m, n, h_dim, key):
    kx, kw1, kb1, kw2, kb2 = jax.random.split(key, 5)

    # PyTorch nn.Linear-style init U(-1/sqrt(fan_in), 1/sqrt(fan_in)).
    bound1 = 1.0 / jnp.sqrt(jnp.float32(n))
    bound2 = 1.0 / jnp.sqrt(jnp.float32(h_dim))
    W1 = jax.random.uniform(kw1, (h_dim, n), jnp.float32, -bound1, bound1)
    b1 = jax.random.uniform(kb1, (h_dim,), jnp.float32, -bound1, bound1)
    W2 = jax.random.uniform(kw2, (n, h_dim), jnp.float32, -bound2, bound2)
    b2 = jax.random.uniform(kb2, (n,), jnp.float32, -bound2, bound2)

    # Ratings-like input (non-negative, sparse-ish).
    X = jax.random.uniform(kx, (m, n), jnp.float32, 0.0, 5.0)
    X = jnp.where(X > 3.0, X, 0.0)

    out = jax.block_until_ready(autorec_forward(X, W1, b1, W2, b2))
    assert out.shape == (m, n)

    ref_bf16 = autorec_forward_ref_bf16(X, W1, b1, W2, b2)
    assert jnp.allclose(out, ref_bf16, atol=2e-2, rtol=2e-2), "mismatch vs bf16 reference"

    ref_f32 = autorec_forward_ref_f32(X, W1, b1, W2, b2)
    assert jnp.allclose(out, ref_f32, atol=1e-1, rtol=1e-1), "mismatch vs f32 reference"


if __name__ == "__main__":
    key = jax.random.PRNGKey(0)
    k1, k2 = jax.random.split(key)

    # Aligned, MXU-shaped demo: grid collapses to (1, 1), tiles = full problem.
    _run_case(512, 512, 256, k1)
    # Unaligned shapes: exercises padding + output-slice path.
    _run_case(100, 300, 64, k2)

    # NOTE: self.mask = X > 0 and train_batch() in the reference are training-only;
    # they do not affect the forward output implemented here.
    print("KERNEL_OK")
</pallas_src>

<mosaic_0001>
module attributes {stable_mosaic.version = 11 : i64} {
  func.func @autorec_kernel(%arg0: i32, %arg1: i32, %arg2: memref<512x512xbf16, #tpu.memory_space<vmem>>, %arg3: memref<512x256xbf16, #tpu.memory_space<vmem>>, %arg4: memref<1x256xf32, #tpu.memory_space<vmem>>, %arg5: memref<256x512xbf16, #tpu.memory_space<vmem>>, %arg6: memref<1x512xf32, #tpu.memory_space<vmem>>, %arg7: memref<512x512xf32, #tpu.memory_space<vmem>>, %arg8: memref<512x256xbf16, #tpu.memory_space<vmem>>) attributes {dimension_semantics = [#tpu.dimension_semantics<parallel>, #tpu.dimension_semantics<arbitrary>], iteration_bounds = array<i64: 1, 1>, scalar_prefetch = 0 : i64, scratch_operands = 1 : i64, tpu.core_type = #tpu.core_type<tc>, window_params = [{transform_indices = @transform_0, window_bounds = array<i64: 512, 512>}, {pipeline_mode = #tpu.pipeline_mode<synchronous>, transform_indices = @transform_1, window_bounds = array<i64: 512, 256>}, {pipeline_mode = #tpu.pipeline_mode<synchronous>, transform_indices = @transform_2, window_bounds = array<i64: 1, 256>}, {transform_indices = @transform_3, window_bounds = array<i64: 256, 512>}, {transform_indices = @transform_4, window_bounds = array<i64: 1, 512>}, {transform_indices = @transform_5, window_bounds = array<i64: 512, 512>}]} {
    %c0_i32 = arith.constant 0 : i32
    %0 = arith.cmpi eq, %arg1, %c0_i32 : i32
    %1 = arith.extui %0 : i1 to i32
    %c0_i32_0 = arith.constant 0 : i32
    %2 = arith.cmpi ne, %1, %c0_i32_0 : i32
    scf.if %2 {
      %c0_8 = arith.constant 0 : index
      %c0_9 = arith.constant 0 : index
      %10 = vector.load %arg2[%c0_8, %c0_9] : memref<512x512xbf16, #tpu.memory_space<vmem>>, vector<512x512xbf16>
      %c0_10 = arith.constant 0 : index
      %c0_11 = arith.constant 0 : index
      %11 = vector.load %arg3[%c0_10, %c0_11] : memref<512x256xbf16, #tpu.memory_space<vmem>>, vector<512x256xbf16>
      %cst_12 = arith.constant dense<0.000000e+00> : vector<512x256xf32>
      %12 = tpu.matmul %10, %11, %cst_12 {dimension_numbers = #tpu.dot_dimension_numbers<[1], [0], [0], [1], [0, 0, 1, 1], [], []>} : vector<512x512xbf16>, vector<512x256xbf16>, vector<512x256xf32> -> vector<512x256xf32>
      %c0_13 = arith.constant 0 : index
      %c0_14 = arith.constant 0 : index
      %13 = vector.load %arg4[%c0_13, %c0_14] : memref<1x256xf32, #tpu.memory_space<vmem>>, vector<1x256xf32>
      %14 = vector.broadcast %13 : vector<1x256xf32> to vector<512x256xf32>
      %15 = arith.addf %12, %14 : vector<512x256xf32>
      %16 = arith.negf %15 : vector<512x256xf32>
      %17 = math.exp %16 : vector<512x256xf32>
      %cst_15 = arith.constant 1.000000e+00 : f32
      %18 = vector.broadcast %cst_15 : f32 to vector<512x256xf32>
      %19 = arith.addf %18, %17 : vector<512x256xf32>
      %20 = arith.divf %18, %19 : vector<512x256xf32>
      %21 = arith.truncf %20 : vector<512x256xf32> to vector<512x256xbf16>
      %c0_16 = arith.constant 0 : index
      %c0_17 = arith.constant 0 : index
      %22 = vector.load %arg8[%c0_16, %c0_17] : memref<512x256xbf16, #tpu.memory_space<vmem>>, vector<512x256xbf16>
      tpu.vector_store %arg8[%c0_16, %c0_17], %21 {strides = array<i32>} : memref<512x256xbf16, #tpu.memory_space<vmem>>, vector<512x256xbf16>,
    } else {
    }
    %c0 = arith.constant 0 : index
    %c0_1 = arith.constant 0 : index
    %3 = vector.load %arg8[%c0, %c0_1] : memref<512x256xbf16, #tpu.memory_space<vmem>>, vector<512x256xbf16>
    %c0_2 = arith.constant 0 : index
    %c0_3 = arith.constant 0 : index
    %4 = vector.load %arg5[%c0_2, %c0_3] : memref<256x512xbf16, #tpu.memory_space<vmem>>, vector<256x512xbf16>
    %cst = arith.constant dense<0.000000e+00> : vector<512x512xf32>
    %5 = tpu.matmul %3, %4, %cst {dimension_numbers = #tpu.dot_dimension_numbers<[1], [0], [0], [1], [0, 0, 1, 1], [], []>} : vector<512x256xbf16>, vector<256x512xbf16>, vector<512x512xf32> -> vector<512x512xf32>
    %c0_4 = arith.constant 0 : index
    %c0_5 = arith.constant 0 : index
    %6 = vector.load %arg6[%c0_4, %c0_5] : memref<1x512xf32, #tpu.memory_space<vmem>>, vector<1x512xf32>
    %7 = vector.broadcast %6 : vector<1x512xf32> to vector<512x512xf32>
    %8 = arith.addf %5, %7 : vector<512x512xf32>
    %c0_6 = arith.constant 0 : index
    %c0_7 = arith.constant 0 : index
    %9 = vector.load %arg7[%c0_6, %c0_7] : memref<512x512xf32, #tpu.memory_space<vmem>>, vector<512x512xf32>
    tpu.vector_store %arg7[%c0_6, %c0_7], %8 {strides = array<i32>} : memref<512x512xf32, #tpu.memory_space<vmem>>, vector<512x512xf32>,
    return
  }
  func.func @transform_0(%arg0: i32, %arg1: i32) -> (i32, i32) {
    %c0_i32 = arith.constant 0 : i32
    %c0_i32_0 = arith.constant 0 : i32
    return %arg0, %c0_i32 : i32, i32
  }
  func.func @transform_1(%arg0: i32, %arg1: i32) -> (i32, i32) {
    %c0_i32 = arith.constant 0 : i32
    %c0_i32_0 = arith.constant 0 : i32
    %c0_i32_1 = arith.constant 0 : i32
    return %c0_i32, %c0_i32_0 : i32, i32
  }
  func.func @transform_2(%arg0: i32, %arg1: i32) -> (i32, i32) {
    %c0_i32 = arith.constant 0 : i32
    %c0_i32_0 = arith.constant 0 : i32
    %c0_i32_1 = arith.constant 0 : i32
    return %c0_i32, %c0_i32_0 : i32, i32
  }
  func.func @transform_3(%arg0: i32, %arg1: i32) -> (i32, i32) {
    %c0_i32 = arith.constant 0 : i32
    %c0_i32_0 = arith.constant 0 : i32
    return %c0_i32, %arg1 : i32, i32
  }
  func.func @transform_4(%arg0: i32, %arg1: i32) -> (i32, i32) {
    %c0_i32 = arith.constant 0 : i32
    %c0_i32_0 = arith.constant 0 : i32
    return %c0_i32, %arg1 : i32, i32
  }
  func.func @transform_5(%arg0: i32, %arg1: i32) -> (i32, i32) {
    %c0_i32 = arith.constant 0 : i32
    return %arg0, %arg1 : i32, i32
  }
}

</mosaic_0001>

<llo_original>
// kernel: tpu_custom_call.1
$region0: #{tpu_custom_call.1}
  #allocation0 [shape = 'u32[]', space=smem, size = 0x4, offset = 0x4, fixed_abs, tag = 'smem constant byte address 0x4 - core index']
  #allocation1 [shape = 'u32[144,128]{1,0:T(1,128)}', space=vmem, size = 0x12000, scoped, tag = 'internal scratch']
  #allocation2 [shape = 'bf16[512,256]{1,0:T(8,128)(2,1)}', space=vmem, size = 0x40000, scoped, tag = 'scratch operand']
  %s0 = inlined_call_operand.hbm [shape: bf16[512,512], index: 0, kind: input, shape index: {}]
  %s1 = inlined_call_operand.hbm [shape: bf16[512,256], index: 1, kind: input, shape index: {}]
  %s2 = inlined_call_operand.vmem [shape: f32[1,256], index: 2, kind: input, shape index: {}]
  %s3 = inlined_call_operand.hbm [shape: bf16[256,512], index: 3, kind: input, shape index: {}]
  %s4 = inlined_call_operand.vmem [shape: f32[1,512], index: 4, kind: input, shape index: {}]
  %s5 = inlined_call_operand.hbm [shape: f32[512,512], index: 5, kind: output, shape index: {}]
  %s6 = sld [smem:[#allocation0]]
  $region46: #{tpu_custom_call.1} parent=0
    _
  %s8 = ssub.s32 1, %s6
  %s9 = scalar_select 0, %s8, %s6
  $region1: #{tpu_custom_call.1} parent=0
    #allocation3 [shape = 'u8[524288]{0}', space=vmem, size = 0x80000, scoped, tag = 'input window, operand 0, single buffered']
    #allocation4 [shape = 's32[1]{0}', space=sflag, size = 0x4, scoped, tag = 'scoped memory for tpu_custom_call.1']
    #allocation5 [shape = 's32[1]{0}', space=sflag, size = 0x4, scoped, tag = 'scoped memory for tpu_custom_call.1']
    #allocation6 [shape = 'u8[262144]{0}', space=vmem, size = 0x40000, scoped, tag = 'input window, operand 1, single buffered']
    #allocation7 [shape = 's32[1]{0}', space=sflag, size = 0x4, scoped, tag = 'scoped memory for tpu_custom_call.1']
    #allocation8 [shape = 'u8[262144]{0}', space=vmem, size = 0x40000, scoped, tag = 'input window, operand 3, single buffered']
    #allocation9 [shape = 'u8[1048576]{0}', space=vmem, size = 0x100000, scoped, tag = 'output window, operand 0, single buffered']
    %10 = vsyncpa [#allocation4], 0
    %11 = vsyncpa [#allocation7], 0
    %12 = vsyncpa [#allocation5], 0
    // Predicated region
    $region2: #{tpu_custom_call.1} parent=1 // pred_check
      _
    $region3: #{tpu_custom_call.1} parent=1 // pred_check_branch
      %14 = sbr.rel (0) target = $region5
    $region4: #{tpu_custom_call.1} parent=1 // pred_region
      %s16 = ssub.s32 16384, 16384
      %17 = vsyncadd [#allocation4], %s16
      %s18 = sshll.u32 [#allocation3], 4
      %s19 = int_to_ptr.vmem [resolvable:$true] %s18
      %24 = dma.hbm_to_vmem [thread:$0]  %s0, 16384, %s19, [#allocation4], 256, 256, 16
    $region5: #{tpu_custom_call.1} parent=1 // pred_fallthru
      _
    // Predicated region
    $region6: #{tpu_custom_call.1} parent=1 // pred_check
      _
    $region7: #{tpu_custom_call.1} parent=1 // pred_check_branch
      %26 = sbr.rel (0) target = $region9
    $region8: #{tpu_custom_call.1} parent=1 // pred_region
      %s28 = ssub.s32 8192, 8192
      %29 = vsyncadd [#allocation7], %s28
      %s30 = sshll.u32 [#allocation6], 4
      %s31 = int_to_ptr.vmem [resolvable:$true] %s30
      %36 = dma.hbm_to_vmem [thread:$0]  %s1, 8192, %s31, [#allocation7], 128, 128, 8
    $region9: #{tpu_custom_call.1} parent=1 // pred_fallthru
      _
    // Predicated region
    $region10: #{tpu_custom_call.1} parent=1 // pred_check
      _
    $region11: #{tpu_custom_call.1} parent=1 // pred_check_branch
      %38 = sbr.rel (0) target = $region13
    $region12: #{tpu_custom_call.1} parent=1 // pred_region
      _
    $region13: #{tpu_custom_call.1} parent=1 // pred_fallthru
      _
    // Predicated region
    $region14: #{tpu_custom_call.1} parent=1 // pred_check
      _
    $region15: #{tpu_custom_call.1} parent=1 // pred_check_branch
      %40 = sbr.rel (0) target = $region17
    $region16: #{tpu_custom_call.1} parent=1 // pred_region
      %s42 = ssub.s32 8192, 8192
      %43 = vsyncadd [#allocation7], %s42
      %s44 = sshll.u32 [#allocation8], 4
      %s45 = int_to_ptr.vmem [resolvable:$true] %s44
      %50 = dma.hbm_to_vmem [thread:$0]  %s3, 8192, %s45, [#allocation7], 256, 256, 16
    $region17: #{tpu_custom_call.1} parent=1 // pred_fallthru
      _
    // Predicated region
    $region18: #{tpu_custom_call.1} parent=1 // pred_check
      _
    $region19: #{tpu_custom_call.1} parent=1 // pred_check_branch
      %52 = sbr.rel (0) target = $region21
    $region20: #{tpu_custom_call.1} parent=1 // pred_region
      _
    $region21: #{tpu_custom_call.1} parent=1 // pred_fallthru
      _
    // Predicated region
    $region22: #{tpu_custom_call.1} parent=1 // pred_check
      _
    $region23: #{tpu_custom_call.1} parent=1 // pred_check_branch
      %54 = sbr.rel (0) target = $region25
    $region24: #{tpu_custom_call.1} parent=1 // pred_region
      %55 = dma.done [#allocation4], 16384
    $region25: #{tpu_custom_call.1} parent=1 // pred_fallthru
      _
    // Predicated region
    $region26: #{tpu_custom_call.1} parent=1 // pred_check
      _
    $region27: #{tpu_custom_call.1} parent=1 // pred_check_branch
      %57 = sbr.rel (0) target = $region29
    $region28: #{tpu_custom_call.1} parent=1 // pred_region
      %58 = dma.done [#allocation7], 8192
    $region29: #{tpu_custom_call.1} parent=1 // pred_fallthru
      _
    // Predicated region
    $region30: #{tpu_custom_call.1} parent=1 // pred_check
      _
    $region31: #{tpu_custom_call.1} parent=1 // pred_check_branch
      %60 = sbr.rel (0) target = $region33
    $region32: #{tpu_custom_call.1} parent=1 // pred_region
      %61 = dma.done [#allocation7], 8192
    $region33: #{tpu_custom_call.1} parent=1 // pred_fallthru
      _
    %p62 = scmp.eq.s32.totalorder 0, 0
    // Predicated region
    $region34: #{tpu_custom_call.1} parent=1 // pred_check
      %p63 = pneg %p62
    $region35: #{tpu_custom_call.1} parent=1 // pred_check_branch
      %65 = sbr.rel (%p63) target = $region37
    $region36: #{tpu_custom_call.1} parent=1 // pred_region
      %v66 = vld [vmem:[#allocation3] sm:$0xff]
      %v67 = vld [vmem:[#allocation3 + $0x8] sm:$0xff]
      %v68 = vld [vmem:[#allocation3 + $0x10] sm:$0xff]
      %v69 = vld [vmem:[#allocation3 + $0x18] sm:$0xff]
      %v70 = vld [vmem:[#allocation3 + $0x20] sm:$0xff]
      %v71 = vld [vmem:[#allocation3 + $0x28] sm:$0xff]
      %v72 = vld [vmem:[#allocation3 + $0x30] sm:$0xff]
      %v73 = vld [vmem:[#allocation3 + $0x38] sm:$0xff]
      %v74 = vld [vmem:[#allocation3 + $0x40] sm:$0xff]
      %v75 = vld [vmem:[#allocation3 + $0x48] sm:$0xff]
      %v76 = vld [vmem:[#allocation3 + $0x50] sm:$0xff]
      %v77 = vld [vmem:[#allocation3 + $0x58] sm:$0xff]
      %v78 = vld [vmem:[#allocation3 + $0x60] sm:$0xff]
      %v79 = vld [vmem:[#allocation3 + $0x68] sm:$0xff]
      %v80 = vld [vmem:[#allocation3 + $0x70] sm:$0xff]
      %v81 = vld [vmem:[#allocation3 + $0x78] sm:$0xff]
      %v82 = vld [vmem:[#allocation3 + $0x80] sm:$0xff]
      %v83 = vld [vmem:[#allocation3 + $0x88] sm:$0xff]
      %v84 = vld [vmem:[#allocation3 + $0x90] sm:$0xff]
      %v85 = vld [vmem:[#allocation3 + $0x98] sm:$0xff]
      %v86 = vld [vmem:[#allocation3 + $0xa0] sm:$0xff]
      %v87 = vld [vmem:[#allocation3 + $0xa8] sm:$0xff]
      %v88 = vld [vmem:[#allocation3 + $0xb0] sm:$0xff]
      %v89 = vld [vmem:[#allocation3 + $0xb8] sm:$0xff]
      %v90 = vld [vmem:[#allocation3 + $0xc0] sm:$0xff]
      %v91 = vld [vmem:[#allocation3 + $0xc8] sm:$0xff]
      %v92 = vld [vmem:[#allocation3 + $0xd0] sm:$0xff]
      %v93 = vld [vmem:[#allocation3 + $0xd8] sm:$0xff]
      %v94 = vld [vmem:[#allocation3 + $0xe0] sm:$0xff]
      %v95 = vld [vmem:[#allocation3 + $0xe8] sm:$0xff]
      %v96 = vld [vmem:[#allocation3 + $0xf0] sm:$0xff]
      %v97 = vld [vmem:[#allocation3 + $0xf8] sm:$0xff]
      %v98 = vld [vmem:[#allocation3 + $0x100] sm:$0xff]
      %v99 = vld [vmem:[#allocation3 + $0x108] sm:$0xff]
      %v100 = vld [vmem:[#allocation3 + $0x110] sm:$0xff]
      %v101 = vld [vmem:[#allocation3 + $0x118] sm:$0xff]
      %v102 = vld [vmem:[#allocation3 + $0x120] sm:$0xff]
      %v103 = vld [vmem:[#allocation3 + $0x128] sm:$0xff]
      %v104 = vld [vmem:[#allocation3 + $0x130] sm:$0xff]
      %v105 = vld [vmem:[#allocation3 + $0x138] sm:$0xff]
      %v106 = vld [vmem:[#allocation3 + $0x140] sm:$0xff]
      %v107 = vld [vmem:[#allocation3 + $0x148] sm:$0xff]
      %v108 = vld [vmem:[#allocation3 + $0x150] sm:$0xff]
      %v109 = vld [vmem:[#allocation3 + $0x158] sm:$0xff]
      %v110 = vld [vmem:[#allocation3 + $0x160] sm:$0xff]
      %v111 = vld [vmem:[#allocation3 + $0x168] sm:$0xff]
      %v112 = vld [vmem:[#allocation3 + $0x170] sm:$0xff]
      %v113 = vld [vmem:[#allocation3 + $0x178] sm:$0xff]
      %v114 = vld [vmem:[#allocation3 + $0x180] sm:$0xff]
      %v115 = vld [vmem:[#allocation3 + $0x188] sm:$0xff]
      %v116 = vld [vmem:[#allocation3 + $0x190] sm:$0xff]
      %v117 = vld [vmem:[#allocation3 + $0x198] sm:$0xff]
      %v118 = vld [vmem:[#allocation3 + $0x1a0] sm:$0xff]
      %v119 = vld [vmem:[#allocation3 + $0x1a8] sm:$0xff]
      %v120 = vld [vmem:[#allocation3 + $0x1b0] sm:$0xff]
      %v121 = vld [vmem:[#allocation3 + $0x1b8] sm:$0xff]
      %v122 = vld [vmem:[#allocation3 + $0x1c0] sm:$0xff]
      %v123 = vld [vmem:[#allocation3 + $0x1c8] sm:$0xff]
      %v124 = vld [vmem:[#allocation3 + $0x1d0] sm:$0xff]
      %v125 = vld [vmem:[#allocation3 + $0x1d8] sm:$0xff]
      %v126 = vld [vmem:[#allocation3 + $0x1e0] sm:$0xff]
      %v127 = vld [vmem:[#allocation3 + $0x1e8] sm:$0xff]
      %v128 = vld [vmem:[#allocation3 + $0x1f0] sm:$0xff]
      %v129 = vld [vmem:[#allocation3 + $0x1f8] sm:$0xff]
      %v130 = vld [vmem:[#allocation3 + $0x200] sm:$0xff]
      %v131 = vld [vmem:[#allocation3 + $0x208] sm:$0xff]
      %v132 = vld [vmem:[#allocation3 + $0x210] sm:$0xff]
      %v133 = vld [vmem:[#allocation3 + $0x218] sm:$0xff]
      %v134 = vld [vmem:[#allocation3 + $0x220] sm:$0xff]
      %v135 = vld [vmem:[#allocation3 + $0x228] sm:$0xff]
      %v136 = vld [vmem:[#allocation3 + $0x230] sm:$0xff]
      %v137 = vld [vmem:[#allocation3 + $0x238] sm:$0xff]
      %v138 = vld [vmem:[#allocation3 + $0x240] sm:$0xff]
      %v139 = vld [vmem:[#allocation3 + $0x248] sm:$0xff]
      %v140 = vld [vmem:[#allocation3 + $0x250] sm:$0xff]
      %v141 = vld [vmem:[#allocation3 + $0x258] sm:$0xff]
      %v142 = vld [vmem:[#allocation3 + $0x260] sm:$0xff]
      %v143 = vld [vmem:[#allocation3 + $0x268] sm:$0xff]
      %v144 = vld [vmem:[#allocation3 + $0x270] sm:$0xff]
      %v145 = vld [vmem:[#allocation3 + $0x278] sm:$0xff]
      %v146 = vld [vmem:[#allocation3 + $0x280] sm:$0xff]
      %v147 = vld [vmem:[#allocation3 + $0x288] sm:$0xff]
      %v148 = vld [vmem:[#allocation3 + $0x290] sm:$0xff]
      %v149 = vld [vmem:[#allocation3 + $0x298] sm:$0xff]
      %v150 = vld [vmem:[#allocation3 + $0x2a0] sm:$0xff]
      %v151 = vld [vmem:[#allocation3 + $0x2a8] sm:$0xff]
      %v152 = vld [vmem:[#allocation3 + $0x2b0] sm:$0xff]
      %v153 = vld [vmem:[#allocation3 + $0x2b8] sm:$0xff]
      %v154 = vld [vmem:[#allocation3 + $0x2c0] sm:$0xff]
      %v155 = vld [vmem:[#allocation3 + $0x2c8] sm:$0xff]
      %v156 = vld [vmem:[#allocation3 + $0x2d0] sm:$0xff]
      %v157 = vld [vmem:[#allocation3 + $0x2d8] sm:$0xff]
      %v158 = vld [vmem:[#allocation3 + $0x2e0] sm:$0xff]
      %v159 = vld [vmem:[#allocation3 + $0x2e8] sm:$0xff]
      %v160 = vld [vmem:[#allocation3 + $0x2f0] sm:$0xff]
      %v161 = vld [vmem:[#allocation3 + $0x2f8] sm:$0xff]
      %v162 = vld [vmem:[#allocation3 + $0x300] sm:$0xff]
      %v163 = vld [vmem:[#allocation3 + $0x308] sm:$0xff]
      %v164 = vld [vmem:[#allocation3 + $0x310] sm:$0xff]
      %v165 = vld [vmem:[#allocation3 + $0x318] sm:$0xff]
      %v166 = vld [vmem:[#allocation3 + $0x320] sm:$0xff]
      %v167 = vld [vmem:[#allocation3 + $0x328] sm:$0xff]
      %v168 = vld [vmem:[#allocation3 + $0x330] sm:$0xff]
      %v169 = vld [vmem:[#allocation3 + $0x338] sm:$0xff]
      %v170 = vld [vmem:[#allocation3 + $0x340] sm:$0xff]
      %v171 = vld [vmem:[#allocation3 + $0x348] sm:$0xff]
      %v172 = vld [vmem:[#allocation3 + $0x350] sm:$0xff]
      %v173 = vld [vmem:[#allocation3 + $0x358] sm:$0xff]
      %v174 = vld [vmem:[#allocation3 + $0x360] sm:$0xff]
      %v175 = vld [vmem:[#allocation3 + $0x368] sm:$0xff]
      %v176 = vld [vmem:[#allocation3 + $0x370] sm:$0xff]
      %v177 = vld [vmem:[#allocation3 + $0x378] sm:$0xff]
      %v178 = vld [vmem:[#allocation3 + $0x380] sm:$0xff]
      %v179 = vld [vmem:[#allocation3 + $0x388] sm:$0xff]
      %v180 = vld [vmem:[#allocation3 + $0x390] sm:$0xff]
      %v181 = vld [vmem:[#allocation3 + $0x398] sm:$0xff]
      %v182 = vld [vmem:[#allocation3 + $0x3a0] sm:$0xff]
      %v183 = vld [vmem:[#allocation3 + $0x3a8] sm:$0xff]
      %v184 = vld [vmem:[#allocation3 + $0x3b0] sm:$0xff]
      %v185 = vld [vmem:[#allocation3 + $0x3b8] sm:$0xff]
      %v186 = vld [vmem:[#allocation3 + $0x3c0] sm:$0xff]
      %v187 = vld [vmem:[#allocation3 + $0x3c8] sm:$0xff]
      %v188 = vld [vmem:[#allocation3 + $0x3d0] sm:$0xff]
      %v189 = vld [vmem:[#allocation3 + $0x3d8] sm:$0xff]
      %v190 = vld [vmem:[#allocation3 + $0x3e0] sm:$0xff]
      %v191 = vld [vmem:[#allocation3 + $0x3e8] sm:$0xff]
      %v192 = vld [vmem:[#allocation3 + $0x3f0] sm:$0xff]
      %v193 = vld [vmem:[#allocation3 + $0x3f8] sm:$0xff]
      %v194 = vld [vmem:[#allocation6] sm:$0xff]
      %v195 = vld [vmem:[#allocation6 + $0x8] sm:$0xff]
      %v196 = vld [vmem:[#allocation6 + $0x10] sm:$0xff]
      %v197 = vld [vmem:[#allocation6 + $0x18] sm:$0xff]
      %v198 = vld [vmem:[#allocation6 + $0x20] sm:$0xff]
      %v199 = vld [vmem:[#allocation6 + $0x28] sm:$0xff]
      %v200 = vld [vmem:[#allocation6 + $0x30] sm:$0xff]
      %v201 = vld [vmem:[#allocation6 + $0x38] sm:$0xff]
      %v202 = vld [vmem:[#allocation6 + $0x40] sm:$0xff]
      %v203 = vld [vmem:[#allocation6 + $0x48] sm:$0xff]
      %v204 = vld [vmem:[#allocation6 + $0x50] sm:$0xff]
      %v205 = vld [vmem:[#allocation6 + $0x58] sm:$0xff]
      %v206 = vld [vmem:[#allocation6 + $0x60] sm:$0xff]
      %v207 = vld [vmem:[#allocation6 + $0x68] sm:$0xff]
      %v208 = vld [vmem:[#allocation6 + $0x70] sm:$0xff]
      %v209 = vld [vmem:[#allocation6 + $0x78] sm:$0xff]
      %v210 = vld [vmem:[#allocation6 + $0x80] sm:$0xff]
      %v211 = vld [vmem:[#allocation6 + $0x88] sm:$0xff]
      %v212 = vld [vmem:[#allocation6 + $0x90] sm:$0xff]
      %v213 = vld [vmem:[#allocation6 + $0x98] sm:$0xff]
      %v214 = vld [vmem:[#allocation6 + $0xa0] sm:$0xff]
      %v215 = vld [vmem:[#allocation6 + $0xa8] sm:$0xff]
      %v216 = vld [vmem:[#allocation6 + $0xb0] sm:$0xff]
      %v217 = vld [vmem:[#allocation6 + $0xb8] sm:$0xff]
      %v218 = vld [vmem:[#allocation6 + $0xc0] sm:$0xff]
      %v219 = vld [vmem:[#allocation6 + $0xc8] sm:$0xff]
      %v220 = vld [vmem:[#allocation6 + $0xd0] sm:$0xff]
      %v221 = vld [vmem:[#allocation6 + $0xd8] sm:$0xff]
      %v222 = vld [vmem:[#allocation6 + $0xe0] sm:$0xff]
      %v223 = vld [vmem:[#allocation6 + $0xe8] sm:$0xff]
      %v224 = vld [vmem:[#allocation6 + $0xf0] sm:$0xff]
      %v225 = vld [vmem:[#allocation6 + $0xf8] sm:$0xff]
      %v226 = vld [vmem:[#allocation6 + $0x100] sm:$0xff]
      %v227 = vld [vmem:[#allocation6 + $0x108] sm:$0xff]
      %v228 = vld [vmem:[#allocation6 + $0x110] sm:$0xff]
      %v229 = vld [vmem:[#allocation6 + $0x118] sm:$0xff]
      %v230 = vld [vmem:[#allocation6 + $0x120] sm:$0xff]
      %v231 = vld [vmem:[#allocation6 + $0x128] sm:$0xff]
      %v232 = vld [vmem:[#allocation6 + $0x130] sm:$0xff]
      %v233 = vld [vmem:[#allocation6 + $0x138] sm:$0xff]
      %v234 = vld [vmem:[#allocation6 + $0x140] sm:$0xff]
      %v235 = vld [vmem:[#allocation6 + $0x148] sm:$0xff]
      %v236 = vld [vmem:[#allocation6 + $0x150] sm:$0xff]
      %v237 = vld [vmem:[#allocation6 + $0x158] sm:$0xff]
      %v238 = vld [vmem:[#allocation6 + $0x160] sm:$0xff]
      %v239 = vld [vmem:[#allocation6 + $0x168] sm:$0xff]
      %v240 = vld [vmem:[#allocation6 + $0x170] sm:$0xff]
      %v241 = vld [vmem:[#allocation6 + $0x178] sm:$0xff]
      %v242 = vld [vmem:[#allocation6 + $0x180] sm:$0xff]
      %v243 = vld [vmem:[#allocation6 + $0x188] sm:$0xff]
      %v244 = vld [vmem:[#allocation6 + $0x190] sm:$0xff]
      %v245 = vld [vmem:[#allocation6 + $0x198] sm:$0xff]
      %v246 = vld [vmem:[#allocation6 + $0x1a0] sm:$0xff]
      %v247 = vld [vmem:[#allocation6 + $0x1a8] sm:$0xff]
      %v248 = vld [vmem:[#allocation6 + $0x1b0] sm:$0xff]
      %v249 = vld [vmem:[#allocation6 + $0x1b8] sm:$0xff]
      %v250 = vld [vmem:[#allocation6 + $0x1c0] sm:$0xff]
      %v251 = vld [vmem:[#allocation6 + $0x1c8] sm:$0xff]
      %v252 = vld [vmem:[#allocation6 + $0x1d0] sm:$0xff]
      %v253 = vld [vmem:[#allocation6 + $0x1d8] sm:$0xff]
      %v254 = vld [vmem:[#allocation6 + $0x1e0] sm:$0xff]
      %v255 = vld [vmem:[#allocation6 + $0x1e8] sm:$0xff]
      %v256 = vld [vmem:[#allocation6 + $0x1f0] sm:$0xff]
      %v257 = vld [vmem:[#allocation6 + $0x1f8] sm:$0xff]
      %v258 = vld [vmem:[%s2] sm:$0x3]
      %v260 = vlaneseq
      %v261 = vshrl.u32 %v260, 7
      %v262 = vsub.s32 0, %v261
      %v263 = vrot.slane %v258, %v262
      %v264 = vlaneseq
      %v265 = vshrl.u32 %v264, 7
      %v266 = vsub.s32 1, %v265
      %v267 = vrot.slane %v258, %v266
      %v398 = vunpack.c.l.b16 %v66
      %v399 = vunpack.c.h.b16 %v66
      %v400 = vunpack.c.l.b16 %v67
      %v401 = vunpack.c.h.b16 %v67
      %v402 = vunpack.c.l.b16 %v68
      %v403 = vunpack.c.h.b16 %v68
      %v404 = vunpack.c.l.b16 %v69
      %v405 = vunpack.c.h.b16 %v69
      %v406 = vunpack.c.l.b16 %v70
      %v407 = vunpack.c.h.b16 %v70
      %v408 = vunpack.c.l.b16 %v71
      %v409 = vunpack.c.h.b16 %v71
      %v410 = vunpack.c.l.b16 %v72
      %v411 = vunpack.c.h.b16 %v72
      %v412 = vunpack.c.l.b16 %v73
      %v413 = vunpack.c.h.b16 %v73
      %v414 = vunpack.c.l.b16 %v74
      %v415 = vunpack.c.h.b16 %v74
      %v416 = vunpack.c.l.b16 %v75
      %v417 = vunpack.c.h.b16 %v75
      %v418 = vunpack.c.l.b16 %v76
      %v419 = vunpack.c.h.b16 %v76
      %v420 = vunpack.c.l.b16 %v77
      %v421 = vunpack.c.h.b16 %v77
      %v422 = vunpack.c.l.b16 %v78
      %v423 = vunpack.c.h.b16 %v78
      %v424 = vunpack.c.l.b16 %v79
      %v425 = vunpack.c.h.b16 %v79
      %v426 = vunpack.c.l.b16 %v80
      %v427 = vunpack.c.h.b16 %v80
      %v428 = vunpack.c.l.b16 %v81
      %v429 = vunpack.c.h.b16 %v81
      %v430 = vunpack.c.l.b16 %v82
      %v431 = vunpack.c.h.b16 %v82
      %v432 = vunpack.c.l.b16 %v83
      %v433 = vunpack.c.h.b16 %v83
      %v434 = vunpack.c.l.b16 %v84
      %v435 = vunpack.c.h.b16 %v84
      %v436 = vunpack.c.l.b16 %v85
      %v437 = vunpack.c.h.b16 %v85
      %v438 = vunpack.c.l.b16 %v86
      %v439 = vunpack.c.h.b16 %v86
      %v440 = vunpack.c.l.b16 %v87
      %v441 = vunpack.c.h.b16 %v87
      %v442 = vunpack.c.l.b16 %v88
      %v443 = vunpack.c.h.b16 %v88
      %v444 = vunpack.c.l.b16 %v89
      %v445 = vunpack.c.h.b16 %v89
      %v446 = vunpack.c.l.b16 %v90
      %v447 = vunpack.c.h.b16 %v90
      %v448 = vunpack.c.l.b16 %v91
      %v449 = vunpack.c.h.b16 %v91
      %v450 = vunpack.c.l.b16 %v92
      %v451 = vunpack.c.h.b16 %v92
      %v452 = vunpack.c.l.b16 %v93
      %v453 = vunpack.c.h.b16 %v93
      %v454 = vunpack.c.l.b16 %v94
      %v455 = vunpack.c.h.b16 %v94
      %v456 = vunpack.c.l.b16 %v95
      %v457 = vunpack.c.h.b16 %v95
      %v458 = vunpack.c.l.b16 %v96
      %v459 = vunpack.c.h.b16 %v96
      %v460 = vunpack.c.l.b16 %v97
      %v461 = vunpack.c.h.b16 %v97
      %v462 = vunpack.c.l.b16 %v98
      %v463 = vunpack.c.h.b16 %v98
      %v464 = vunpack.c.l.b16 %v99
      %v465 = vunpack.c.h.b16 %v99
      %v466 = vunpack.c.l.b16 %v100
      %v467 = vunpack.c.h.b16 %v100
      %v468 = vunpack.c.l.b16 %v101
      %v469 = vunpack.c.h.b16 %v101
      %v470 = vunpack.c.l.b16 %v102
      %v471 = vunpack.c.h.b16 %v102
      %v472 = vunpack.c.l.b16 %v103
      %v473 = vunpack.c.h.b16 %v103
      %v474 = vunpack.c.l.b16 %v104
      %v475 = vunpack.c.h.b16 %v104
      %v476 = vunpack.c.l.b16 %v105
      %v477 = vunpack.c.h.b16 %v105
      %v478 = vunpack.c.l.b16 %v106
      %v479 = vunpack.c.h.b16 %v106
      %v480 = vunpack.c.l.b16 %v107
      %v481 = vunpack.c.h.b16 %v107
      %v482 = vunpack.c.l.b16 %v108
      %v483 = vunpack.c.h.b16 %v108
      %v484 = vunpack.c.l.b16 %v109
      %v485 = vunpack.c.h.b16 %v109
      %v486 = vunpack.c.l.b16 %v110
      %v487 = vunpack.c.h.b16 %v110
      %v488 = vunpack.c.l.b16 %v111
      %v489 = vunpack.c.h.b16 %v111
      %v490 = vunpack.c.l.b16 %v112
      %v491 = vunpack.c.h.b16 %v112
      %v492 = vunpack.c.l.b16 %v113
      %v493 = vunpack.c.h.b16 %v113
      %v494 = vunpack.c.l.b16 %v114
      %v495 = vunpack.c.h.b16 %v114
      %v496 = vunpack.c.l.b16 %v115
      %v497 = vunpack.c.h.b16 %v115
      %v498 = vunpack.c.l.b16 %v116
      %v499 = vunpack.c.h.b16 %v116
      %v500 = vunpack.c.l.b16 %v117
      %v501 = vunpack.c.h.b16 %v117
      %v502 = vunpack.c.l.b16 %v118
      %v503 = vunpack.c.h.b16 %v118
      %v504 = vunpack.c.l.b16 %v119
      %v505 = vunpack.c.h.b16 %v119
      %v506 = vunpack.c.l.b16 %v120
      %v507 = vunpack.c.h.b16 %v120
      %v508 = vunpack.c.l.b16 %v121
      %v509 = vunpack.c.h.b16 %v121
      %v510 = vunpack.c.l.b16 %v122
      %v511 = vunpack.c.h.b16 %v122
      %v512 = vunpack.c.l.b16 %v123
      %v513 = vunpack.c.h.b16 %v123
      %v514 = vunpack.c.l.b16 %v124
      %v515 = vunpack.c.h.b16 %v124
      %v516 = vunpack.c.l.b16 %v125
      %v517 = vunpack.c.h.b16 %v125
      %v518 = vunpack.c.l.b16 %v126
      %v519 = vunpack.c.h.b16 %v126
      %v520 = vunpack.c.l.b16 %v127
      %v521 = vunpack.c.h.b16 %v127
      %v522 = vunpack.c.l.b16 %v128
      %v523 = vunpack.c.h.b16 %v128
      %v524 = vunpack.c.l.b16 %v129
      %v525 = vunpack.c.h.b16 %v129
      %v526 = vunpack.c.l.b16 %v130
      %v527 = vunpack.c.h.b16 %v130
      %v528 = vunpack.c.l.b16 %v131
      %v529 = vunpack.c.h.b16 %v131
      %v530 = vunpack.c.l.b16 %v132
      %v531 = vunpack.c.h.b16 %v132
      %v532 = vunpack.c.l.b16 %v133
      %v533 = vunpack.c.h.b16 %v133
      %v534 = vunpack.c.l.b16 %v134
      %v535 = vunpack.c.h.b16 %v134
      %v536 = vunpack.c.l.b16 %v135
      %v537 = vunpack.c.h.b16 %v135
      %v538 = vunpack.c.l.b16 %v136
      %v539 = vunpack.c.h.b16 %v136
      %v540 = vunpack.c.l.b16 %v137
      %v541 = vunpack.c.h.b16 %v137
      %v542 = vunpack.c.l.b16 %v138
      %v543 = vunpack.c.h.b16 %v138
      %v544 = vunpack.c.l.b16 %v139
      %v545 = vunpack.c.h.b16 %v139
      %v546 = vunpack.c.l.b16 %v140
      %v547 = vunpack.c.h.b16 %v140
      %v548 = vunpack.c.l.b16 %v141
      %v549 = vunpack.c.h.b16 %v141
      %v550 = vunpack.c.l.b16 %v142
      %v551 = vunpack.c.h.b16 %v142
      %v552 = vunpack.c.l.b16 %v143
      %v553 = vunpack.c.h.b16 %v143
      %v554 = vunpack.c.l.b16 %v144
      %v555 = vunpack.c.h.b16 %v144
      %v556 = vunpack.c.l.b16 %v145
      %v557 = vunpack.c.h.b16 %v145
      %v558 = vunpack.c.l.b16 %v146
      %v559 = vunpack.c.h.b16 %v146
      %v560 = vunpack.c.l.b16 %v147
      %v561 = vunpack.c.h.b16 %v147
      %v562 = vunpack.c.l.b16 %v148
      %v563 = vunpack.c.h.b16 %v148
      %v564 = vunpack.c.l.b16 %v149
      %v565 = vunpack.c.h.b16 %v149
      %v566 = vunpack.c.l.b16 %v150
      %v567 = vunpack.c.h.b16 %v150
      %v568 = vunpack.c.l.b16 %v151
      %v569 = vunpack.c.h.b16 %v151
      %v570 = vunpack.c.l.b16 %v152
      %v571 = vunpack.c.h.b16 %v152
      %v572 = vunpack.c.l.b16 %v153
      %v573 = vunpack.c.h.b16 %v153
      %v574 = vunpack.c.l.b16 %v154
      %v575 = vunpack.c.h.b16 %v154
      %v576 = vunpack.c.l.b16 %v155
      %v577 = vunpack.c.h.b16 %v155
      %v578 = vunpack.c.l.b16 %v156
      %v579 = vunpack.c.h.b16 %v156
      %v580 = vunpack.c.l.b16 %v157
      %v581 = vunpack.c.h.b16 %v157
      %v582 = vunpack.c.l.b16 %v158
      %v583 = vunpack.c.h.b16 %v158
      %v584 = vunpack.c.l.b16 %v159
      %v585 = vunpack.c.h.b16 %v159
      %v586 = vunpack.c.l.b16 %v160
      %v587 = vunpack.c.h.b16 %v160
      %v588 = vunpack.c.l.b16 %v161
      %v589 = vunpack.c.h.b16 %v161
      %v590 = vunpack.c.l.b16 %v162
      %v591 = vunpack.c.h.b16 %v162
      %v592 = vunpack.c.l.b16 %v163
      %v593 = vunpack.c.h.b16 %v163
      %v594 = vunpack.c.l.b16 %v164
      %v595 = vunpack.c.h.b16 %v164
      %v596 = vunpack.c.l.b16 %v165
      %v597 = vunpack.c.h.b16 %v165
      %v598 = vunpack.c.l.b16 %v166
      %v599 = vunpack.c.h.b16 %v166
      %v600 = vunpack.c.l.b16 %v167
      %v601 = vunpack.c.h.b16 %v167
      %v602 = vunpack.c.l.b16 %v168
      %v603 = vunpack.c.h.b16 %v168
      %v604 = vunpack.c.l.b16 %v169
      %v605 = vunpack.c.h.b16 %v169
      %v606 = vunpack.c.l.b16 %v170
      %v607 = vunpack.c.h.b16 %v170
      %v608 = vunpack.c.l.b16 %v171
      %v609 = vunpack.c.h.b16 %v171
      %v610 = vunpack.c.l.b16 %v172
      %v611 = vunpack.c.h.b16 %v172
      %v612 = vunpack.c.l.b16 %v173
      %v613 = vunpack.c.h.b16 %v173
      %v614 = vunpack.c.l.b16 %v174
      %v615 = vunpack.c.h.b16 %v174
      %v616 = vunpack.c.l.b16 %v175
      %v617 = vunpack.c.h.b16 %v175
      %v618 = vunpack.c.l.b16 %v176
      %v619 = vunpack.c.h.b16 %v176
      %v620 = vunpack.c.l.b16 %v177
      %v621 = vunpack.c.h.b16 %v177
      %v622 = vunpack.c.l.b16 %v178
      %v623 = vunpack.c.h.b16 %v178
      %v624 = vunpack.c.l.b16 %v179
      %v625 = vunpack.c.h.b16 %v179
      %v626 = vunpack.c.l.b16 %v180
      %v627 = vunpack.c.h.b16 %v180
      %v628 = vunpack.c.l.b16 %v181
      %v629 = vunpack.c.h.b16 %v181
      %v630 = vunpack.c.l.b16 %v182
      %v631 = vunpack.c.h.b16 %v182
      %v632 = vunpack.c.l.b16 %v183
      %v633 = vunpack.c.h.b16 %v183
      %v634 = vunpack.c.l.b16 %v184
      %v635 = vunpack.c.h.b16 %v184
      %v636 = vunpack.c.l.b16 %v185
      %v637 = vunpack.c.h.b16 %v185
      %v638 = vunpack.c.l.b16 %v186
      %v639 = vunpack.c.h.b16 %v186
      %v640 = vunpack.c.l.b16 %v187
      %v641 = vunpack.c.h.b16 %v187
      %v642 = vunpack.c.l.b16 %v188
      %v643 = vunpack.c.h.b16 %v188
      %v644 = vunpack.c.l.b16 %v189
      %v645 = vunpack.c.h.b16 %v189
      %v646 = vunpack.c.l.b16 %v190
      %v647 = vunpack.c.h.b16 %v190
      %v648 = vunpack.c.l.b16 %v191
      %v649 = vunpack.c.h.b16 %v191
      %v650 = vunpack.c.l.b16 %v192
      %v651 = vunpack.c.h.b16 %v192
      %v652 = vunpack.c.l.b16 %v193
      %v653 = vunpack.c.h.b16 %v193
      %v654 = vpack.c.b16 %v402, %v398
      %v655 = vpack.c.b16 %v403, %v399
      %v656 = vpack.c.b16 %v404, %v400
      %v657 = vpack.c.b16 %v405, %v401
      %v658 = vpack.c.b16 %v410, %v406
      %v659 = vpack.c.b16 %v411, %v407
      %v660 = vpack.c.b16 %v412, %v408
      %v661 = vpack.c.b16 %v413, %v409
      %v662 = vpack.c.b16 %v418, %v414
      %v663 = vpack.c.b16 %v419, %v415
      %v664 = vpack.c.b16 %v420, %v416
      %v665 = vpack.c.b16 %v421, %v417
      %v666 = vpack.c.b16 %v426, %v422
      %v667 = vpack.c.b16 %v427, %v423
      %v668 = vpack.c.b16 %v428, %v424
      %v669 = vpack.c.b16 %v429, %v425
      %v670 = vpack.c.b16 %v434, %v430
      %v671 = vpack.c.b16 %v435, %v431
      %v672 = vpack.c.b16 %v436, %v432
      %v673 = vpack.c.b16 %v437, %v433
      %v674 = vpack.c.b16 %v442, %v438
      %v675 = vpack.c.b16 %v443, %v439
      %v676 = vpack.c.b16 %v444, %v440
      %v677 = vpack.c.b16 %v445, %v441
      %v678 = vpack.c.b16 %v450, %v446
      %v679 = vpack.c.b16 %v451, %v447
      %v680 = vpack.c.b16 %v452, %v448
      %v681 = vpack.c.b16 %v453, %v449
      %v682 = vpack.c.b16 %v458, %v454
      %v683 = vpack.c.b16 %v459, %v455
      %v684 = vpack.c.b16 %v460, %v456
      %v685 = vpack.c.b16 %v461, %v457
      %v686 = vpack.c.b16 %v466, %v462
      %v687 = vpack.c.b16 %v467, %v463
      %v688 = vpack.c.b16 %v468, %v464
      %v689 = vpack.c.b16 %v469, %v465
      %v690 = vpack.c.b16 %v474, %v470
      %v691 = vpack.c.b16 %v475, %v471
      %v692 = vpack.c.b16 %v476, %v472
      %v693 = vpack.c.b16 %v477, %v473
      %v694 = vpack.c.b16 %v482, %v478
      %v695 = vpack.c.b16 %v483, %v479
      %v696 = vpack.c.b16 %v484, %v480
      %v697 = vpack.c.b16 %v485, %v481
      %v698 = vpack.c.b16 %v490, %v486
      %v699 = vpack.c.b16 %v491, %v487
      %v700 = vpack.c.b16 %v492, %v488
      %v701 = vpack.c.b16 %v493, %v489
      %v702 = vpack.c.b16 %v498, %v494
      %v703 = vpack.c.b16 %v499, %v495
      %v704 = vpack.c.b16 %v500, %v496
      %v705 = vpack.c.b16 %v501, %v497
      %v706 = vpack.c.b16 %v506, %v502
      %v707 = vpack.c.b16 %v507, %v503
      %v708 = vpack.c.b16 %v508, %v504
      %v709 = vpack.c.b16 %v509, %v505
      %v710 = vpack.c.b16 %v514, %v510
      %v711 = vpack.c.b16 %v515, %v511
      %v712 = vpack.c.b16 %v516, %v512
      %v713 = vpack.c.b16 %v517, %v513
      %v714 = vpack.c.b16 %v522, %v518
      %v715 = vpack.c.b16 %v523, %v519
      %v716 = vpack.c.b16 %v524, %v520
      %v717 = vpack.c.b16 %v525, %v521
      %v718 = vpack.c.b16 %v530, %v526
      %v719 = vpack.c.b16 %v531, %v527
      %v720 = vpack.c.b16 %v532, %v528
      %v721 = vpack.c.b16 %v533, %v529
      %v722 = vpack.c.b16 %v538, %v534
      %v723 = vpack.c.b16 %v539, %v535
      %v724 = vpack.c.b16 %v540, %v536
      %v725 = vpack.c.b16 %v541, %v537
      %v726 = vpack.c.b16 %v546, %v542
      %v727 = vpack.c.b16 %v547, %v543
      %v728 = vpack.c.b16 %v548, %v544
      %v729 = vpack.c.b16 %v549, %v545
      %v730 = vpack.c.b16 %v554, %v550
      %v731 = vpack.c.b16 %v555, %v551
      %v732 = vpack.c.b16 %v556, %v552
      %v733 = vpack.c.b16 %v557, %v553
      %v734 = vpack.c.b16 %v562, %v558
      %v735 = vpack.c.b16 %v563, %v559
      %v736 = vpack.c.b16 %v564, %v560
      %v737 = vpack.c.b16 %v565, %v561
      %v738 = vpack.c.b16 %v570, %v566
      %v739 = vpack.c.b16 %v571, %v567
      %v740 = vpack.c.b16 %v572, %v568
      %v741 = vpack.c.b16 %v573, %v569
      %v742 = vpack.c.b16 %v578, %v574
      %v743 = vpack.c.b16 %v579, %v575
      %v744 = vpack.c.b16 %v580, %v576
      %v745 = vpack.c.b16 %v581, %v577
      %v746 = vpack.c.b16 %v586, %v582
      %v747 = vpack.c.b16 %v587, %v583
      %v748 = vpack.c.b16 %v588, %v584
      %v749 = vpack.c.b16 %v589, %v585
      %v750 = vpack.c.b16 %v594, %v590
      %v751 = vpack.c.b16 %v595, %v591
      %v752 = vpack.c.b16 %v596, %v592
      %v753 = vpack.c.b16 %v597, %v593
      %v754 = vpack.c.b16 %v602, %v598
      %v755 = vpack.c.b16 %v603, %v599
      %v756 = vpack.c.b16 %v604, %v600
      %v757 = vpack.c.b16 %v605, %v601
      %v758 = vpack.c.b16 %v610, %v606
      %v759 = vpack.c.b16 %v611, %v607
      %v760 = vpack.c.b16 %v612, %v608
      %v761 = vpack.c.b16 %v613, %v609
      %v762 = vpack.c.b16 %v618, %v614
      %v763 = vpack.c.b16 %v619, %v615
      %v764 = vpack.c.b16 %v620, %v616
      %v765 = vpack.c.b16 %v621, %v617
      %v766 = vpack.c.b16 %v626, %v622
      %v767 = vpack.c.b16 %v627, %v623
      %v768 = vpack.c.b16 %v628, %v624
      %v769 = vpack.c.b16 %v629, %v625
      %v770 = vpack.c.b16 %v634, %v630
      %v771 = vpack.c.b16 %v635, %v631
      %v772 = vpack.c.b16 %v636, %v632
      %v773 = vpack.c.b16 %v637, %v633
      %v774 = vpack.c.b16 %v642, %v638
      %v775 = vpack.c.b16 %v643, %v639
      %v776 = vpack.c.b16 %v644, %v640
      %v777 = vpack.c.b16 %v645, %v641
      %v778 = vpack.c.b16 %v650, %v646
      %v779 = vpack.c.b16 %v651, %v647
      %v780 = vpack.c.b16 %v652, %v648
      %v781 = vpack.c.b16 %v653, %v649
      %v974 = vunpack.c.l.b16 %v194
      %v975 = vunpack.c.h.b16 %v194
      %v976 = vunpack.c.l.b16 %v195
      %v977 = vunpack.c.h.b16 %v195
      %v978 = vunpack.c.l.b16 %v196
      %v979 = vunpack.c.h.b16 %v196
      %v980 = vunpack.c.l.b16 %v197
      %v981 = vunpack.c.h.b16 %v197
      %v982 = vunpack.c.l.b16 %v198
      %v983 = vunpack.c.h.b16 %v198
      %v984 = vunpack.c.l.b16 %v199
      %v985 = vunpack.c.h.b16 %v199
      %v986 = vunpack.c.l.b16 %v200
      %v987 = vunpack.c.h.b16 %v200
      %v988 = vunpack.c.l.b16 %v201
      %v989 = vunpack.c.h.b16 %v201
      %v990 = vunpack.c.l.b16 %v202
      %v991 = vunpack.c.h.b16 %v202
      %v992 = vunpack.c.l.b16 %v203
      %v993 = vunpack.c.h.b16 %v203
      %v994 = vunpack.c.l.b16 %v204
      %v995 = vunpack.c.h.b16 %v204
      %v996 = vunpack.c.l.b16 %v205
      %v997 = vunpack.c.h.b16 %v205
      %v998 = vunpack.c.l.b16 %v206
      %v999 = vunpack.c.h.b16 %v206
      %v1000 = vunpack.c.l.b16 %v207
      %v1001 = vunpack.c.h.b16 %v207
      %v1002 = vunpack.c.l.b16 %v208
      %v1003 = vunpack.c.h.b16 %v208
      %v1004 = vunpack.c.l.b16 %v209
      %v1005 = vunpack.c.h.b16 %v209
      %v1006 = vunpack.c.l.b16 %v210
      %v1007 = vunpack.c.h.b16 %v210
      %v1008 = vunpack.c.l.b16 %v211
      %v1009 = vunpack.c.h.b16 %v211
      %v1010 = vunpack.c.l.b16 %v212
      %v1011 = vunpack.c.h.b16 %v212
      %v1012 = vunpack.c.l.b16 %v213
      %v1013 = vunpack.c.h.b16 %v213
      %v1014 = vunpack.c.l.b16 %v214
      %v1015 = vunpack.c.h.b16 %v214
      %v1016 = vunpack.c.l.b16 %v215
      %v1017 = vunpack.c.h.b16 %v215
      %v1018 = vunpack.c.l.b16 %v216
      %v1019 = vunpack.c.h.b16 %v216
      %v1020 = vunpack.c.l.b16 %v217
      %v1021 = vunpack.c.h.b16 %v217
      %v1022 = vunpack.c.l.b16 %v218
      %v1023 = vunpack.c.h.b16 %v218
      %v1024 = vunpack.c.l.b16 %v219
      %v1025 = vunpack.c.h.b16 %v219
      %v1026 = vunpack.c.l.b16 %v220
      %v1027 = vunpack.c.h.b16 %v220
      %v1028 = vunpack.c.l.b16 %v221
      %v1029 = vunpack.c.h.b16 %v221
      %v1030 = vunpack.c.l.b16 %v222
      %v1031 = vunpack.c.h.b16 %v222
      %v1032 = vunpack.c.l.b16 %v223
      %v1033 = vunpack.c.h.b16 %v223
      %v1034 = vunpack.c.l.b16 %v224
      %v1035 = vunpack.c.h.b16 %v224
      %v1036 = vunpack.c.l.b16 %v225
      %v1037 = vunpack.c.h.b16 %v225
      %v1038 = vunpack.c.l.b16 %v226
      %v1039 = vunpack.c.h.b16 %v226
      %v1040 = vunpack.c.l.b16 %v227
      %v1041 = vunpack.c.h.b16 %v227
      %v1042 = vunpack.c.l.b16 %v228
      %v1043 = vunpack.c.h.b16 %v228
      %v1044 = vunpack.c.l.b16 %v229
      %v1045 = vunpack.c.h.b16 %v229
      %v1046 = vunpack.c.l.b16 %v230
      %v1047 = vunpack.c.h.b16 %v230
      %v1048 = vunpack.c.l.b16 %v231
      %v1049 = vunpack.c.h.b16 %v231
      %v1050 = vunpack.c.l.b16 %v232
      %v1051 = vunpack.c.h.b16 %v232
      %v1052 = vunpack.c.l.b16 %v233
      %v1053 = vunpack.c.h.b16 %v233
      %v1054 = vunpack.c.l.b16 %v234
      %v1055 = vunpack.c.h.b16 %v234
      %v1056 = vunpack.c.l.b16 %v235
      %v1057 = vunpack.c.h.b16 %v235
      %v1058 = vunpack.c.l.b16 %v236
      %v1059 = vunpack.c.h.b16 %v236
      %v1060 = vunpack.c.l.b16 %v237
      %v1061 = vunpack.c.h.b16 %v237
      %v1062 = vunpack.c.l.b16 %v238
      %v1063 = vunpack.c.h.b16 %v238
      %v1064 = vunpack.c.l.b16 %v239
      %v1065 = vunpack.c.h.b16 %v239
      %v1066 = vunpack.c.l.b16 %v240
      %v1067 = vunpack.c.h.b16 %v240
      %v1068 = vunpack.c.l.b16 %v241
      %v1069 = vunpack.c.h.b16 %v241
      %v1070 = vunpack.c.l.b16 %v242
      %v1071 = vunpack.c.h.b16 %v242
      %v1072 = vunpack.c.l.b16 %v243
      %v1073 = vunpack.c.h.b16 %v243
      %v1074 = vunpack.c.l.b16 %v244
      %v1075 = vunpack.c.h.b16 %v244
      %v1076 = vunpack.c.l.b16 %v245
      %v1077 = vunpack.c.h.b16 %v245
      %v1078 = vunpack.c.l.b16 %v246
      %v1079 = vunpack.c.h.b16 %v246
      %v1080 = vunpack.c.l.b16 %v247
      %v1081 = vunpack.c.h.b16 %v247
      %v1082 = vunpack.c.l.b16 %v248
      %v1083 = vunpack.c.h.b16 %v248
      %v1084 = vunpack.c.l.b16 %v249
      %v1085 = vunpack.c.h.b16 %v249
      %v1086 = vunpack.c.l.b16 %v250
      %v1087 = vunpack.c.h.b16 %v250
      %v1088 = vunpack.c.l.b16 %v251
      %v1089 = vunpack.c.h.b16 %v251
      %v1090 = vunpack.c.l.b16 %v252
      %v1091 = vunpack.c.h.b16 %v252
      %v1092 = vunpack.c.l.b16 %v253
      %v1093 = vunpack.c.h.b16 %v253
      %v1094 = vunpack.c.l.b16 %v254
      %v1095 = vunpack.c.h.b16 %v254
      %v1096 = vunpack.c.l.b16 %v255
      %v1097 = vunpack.c.h.b16 %v255
      %v1098 = vunpack.c.l.b16 %v256
      %v1099 = vunpack.c.h.b16 %v256
      %v1100 = vunpack.c.l.b16 %v257
      %v1101 = vunpack.c.h.b16 %v257
      %v1102 = vpack.c.b16 %v976, %v974
      %v1103 = vpack.c.b16 %v977, %v975
      %v1104 = vpack.c.b16 %v980, %v978
      %v1105 = vpack.c.b16 %v981, %v979
      %v1106 = vpack.c.b16 %v984, %v982
      %v1107 = vpack.c.b16 %v985, %v983
      %v1108 = vpack.c.b16 %v988, %v986
      %v1109 = vpack.c.b16 %v989, %v987
      %v1110 = vpack.c.b16 %v992, %v990
      %v1111 = vpack.c.b16 %v993, %v991
      %v1112 = vpack.c.b16 %v996, %v994
      %v1113 = vpack.c.b16 %v997, %v995
      %v1114 = vpack.c.b16 %v1000, %v998
      %v1115 = vpack.c.b16 %v1001, %v999
      %v1116 = vpack.c.b16 %v1004, %v1002
      %v1117 = vpack.c.b16 %v1005, %v1003
      %v1118 = vpack.c.b16 %v1008, %v1006
      %v1119 = vpack.c.b16 %v1009, %v1007
      %v1120 = vpack.c.b16 %v1012, %v1010
      %v1121 = vpack.c.b16 %v1013, %v1011
      %v1122 = vpack.c.b16 %v1016, %v1014
      %v1123 = vpack.c.b16 %v1017, %v1015
      %v1124 = vpack.c.b16 %v1020, %v1018
      %v1125 = vpack.c.b16 %v1021, %v1019
      %v1126 = vpack.c.b16 %v1024, %v1022
      %v1127 = vpack.c.b16 %v1025, %v1023
      %v1128 = vpack.c.b16 %v1028, %v1026
      %v1129 = vpack.c.b16 %v1029, %v1027
      %v1130 = vpack.c.b16 %v1032, %v1030
      %v1131 = vpack.c.b16 %v1033, %v1031
      %v1132 = vpack.c.b16 %v1036, %v1034
      %v1133 = vpack.c.b16 %v1037, %v1035
      %v1134 = vpack.c.b16 %v1040, %v1038
      %v1135 = vpack.c.b16 %v1041, %v1039
      %v1136 = vpack.c.b16 %v1044, %v1042
      %v1137 = vpack.c.b16 %v1045, %v1043
      %v1138 = vpack.c.b16 %v1048, %v1046
      %v1139 = vpack.c.b16 %v1049, %v1047
      %v1140 = vpack.c.b16 %v1052, %v1050
      %v1141 = vpack.c.b16 %v1053, %v1051
      %v1142 = vpack.c.b16 %v1056, %v1054
      %v1143 = vpack.c.b16 %v1057, %v1055
      %v1144 = vpack.c.b16 %v1060, %v1058
      %v1145 = vpack.c.b16 %v1061, %v1059
      %v1146 = vpack.c.b16 %v1064, %v1062
      %v1147 = vpack.c.b16 %v1065, %v1063
      %v1148 = vpack.c.b16 %v1068, %v1066
      %v1149 = vpack.c.b16 %v1069, %v1067
      %v1150 = vpack.c.b16 %v1072, %v1070
      %v1151 = vpack.c.b16 %v1073, %v1071
      %v1152 = vpack.c.b16 %v1076, %v1074
      %v1153 = vpack.c.b16 %v1077, %v1075
      %v1154 = vpack.c.b16 %v1080, %v1078
      %v1155 = vpack.c.b16 %v1081, %v1079
      %v1156 = vpack.c.b16 %v1084, %v1082
      %v1157 = vpack.c.b16 %v1085, %v1083
      %v1158 = vpack.c.b16 %v1088, %v1086
      %v1159 = vpack.c.b16 %v1089, %v1087
      %v1160 = vpack.c.b16 %v1092, %v1090
      %v1161 = vpack.c.b16 %v1093, %v1091
      %v1162 = vpack.c.b16 %v1096, %v1094
      %v1163 = vpack.c.b16 %v1097, %v1095
      %v1164 = vpack.c.b16 %v1100, %v1098
      %v1165 = vpack.c.b16 %v1101, %v1099
      %1230 = vmatprep.subr.bf16.mxu0 %v1117
      %1231 = vmatpush1.bf16.msra.mxu0 %v1116
      %1232 = vmatprep.subr.bf16.mxu0 %v1115
      %1233 = vmatpush1.bf16.msra.mxu0 %v1114
      %1234 = vmatprep.subr.bf16.mxu0 %v1113
      %1235 = vmatpush1.bf16.msra.mxu0 %v1112
      %1236 = vmatprep.subr.bf16.mxu0 %v1111
      %1237 = vmatpush1.bf16.msra.mxu0 %v1110
      %1238 = vmatprep.subr.bf16.mxu0 %v1109
      %1239 = vmatpush1.bf16.msra.mxu0 %v1108
      %1240 = vmatprep.subr.bf16.mxu0 %v1107
      %1241 = vmatpush1.bf16.msra.mxu0 %v1106
      %1242 = vmatprep.subr.bf16.mxu0 %v1105
      %1243 = vmatpush1.bf16.msra.mxu0 %v1104
      %1244 = vmatprep.subr.bf16.mxu0 %v1103
      %1245 = vmatpush1.bf16.msra.mxu0 %v1102
      %1246 = vmatprep.subr.bf16.mxu0 %v1133
      %1247 = vmatpush2.bf16.msra.mxu0 %v1132
      %1248 = vmatprep.subr.bf16.mxu0 %v1131
      %1249 = vmatpush2.bf16.msra.mxu0 %v1130
      %1250 = vmatprep.subr.bf16.mxu0 %v1129
      %1251 = vmatpush2.bf16.msra.mxu0 %v1128
      %1252 = vmatprep.subr.bf16.mxu0 %v1127
      %1253 = vmatpush2.bf16.msra.mxu0 %v1126
      %1254 = vmatprep.subr.bf16.mxu0 %v1125
      %1255 = vmatpush2.bf16.msra.mxu0 %v1124
      %1256 = vmatprep.subr.bf16.mxu0 %v1123
      %1257 = vmatpush2.bf16.msra.mxu0 %v1122
      %1258 = vmatprep.subr.bf16.mxu0 %v1121
      %1259 = vmatpush2.bf16.msra.mxu0 %v1120
      %1260 = vmatprep.subr.bf16.mxu0 %v1119
      %1261 = vmatpush2.bf16.msra.mxu0 %v1118
      %1262 = vmatprep.mubr.bf16.mxu0 %v655
      %1263 = vmatmul.mubr.bf16.gmra.mxu0 %v654
      %v1264 = vpop.f32.mrf.mxu0
      %v1265 = vadd.f32 %v263, %v1264
      %v1266 = vpop.f32.mrf.mxu0
      %v1267 = vadd.f32 %v267, %v1266
      %v1268 = vpop.f32.mrf.mxu0
      %v1269 = vadd.f32 %v263, %v1268
      %v1270 = vpop.f32.mrf.mxu0
      %v1271 = vadd.f32 %v267, %v1270
      %1272 = vmatprep.mubr.bf16.mxu0 %v659
      %1273 = vmatmul.mubr.bf16.gmra.mxu0 %v658
      %v1274 = vpop.f32.mrf.mxu0
      %v1275 = vadd.f32 %v263, %v1274
      %v1276 = vpop.f32.mrf.mxu0
      %v1277 = vadd.f32 %v267, %v1276
      %v1278 = vpop.f32.mrf.mxu0
      %v1279 = vadd.f32 %v263, %v1278
      %v1280 = vpop.f32.mrf.mxu0
      %v1281 = vadd.f32 %v267, %v1280
      %1282 = vmatprep.mubr.bf16.mxu0 %v663
      %1283 = vmatmul.mubr.bf16.gmra.mxu0 %v662
      %v1284 = vpop.f32.mrf.mxu0
      %v1285 = vadd.f32 %v263, %v1284
      %v1286 = vpop.f32.mrf.mxu0
      %v1287 = vadd.f32 %v267, %v1286
      %v1288 = vpop.f32.mrf.mxu0
      %v1289 = vadd.f32 %v263, %v1288
      %v1290 = vpop.f32.mrf.mxu0
      %v1291 = vadd.f32 %v267, %v1290
      %1292 = vmatprep.mubr.bf16.mxu0 %v667
      %1293 = vmatmul.mubr.bf16.gmra.mxu0 %v666
      %v1294 = vpop.f32.mrf.mxu0
      %v1295 = vadd.f32 %v263, %v1294
      %v1296 = vpop.f32.mrf.mxu0
      %v1297 = vadd.f32 %v267, %v1296
      %v1298 = vpop.f32.mrf.mxu0
      %v1299 = vadd.f32 %v263, %v1298
      %v1300 = vpop.f32.mrf.mxu0
      %v1301 = vadd.f32 %v267, %v1300
      %1302 = vmatprep.mubr.bf16.mxu0 %v671
      %1303 = vmatmul.mubr.bf16.gmra.mxu0 %v670
      %v1304 = vpop.f32.mrf.mxu0
      %v1305 = vadd.f32 %v263, %v1304
      %v1306 = vpop.f32.mrf.mxu0
      %v1307 = vadd.f32 %v267, %v1306
      %v1308 = vpop.f32.mrf.mxu0
      %v1309 = vadd.f32 %v263, %v1308
      %v1310 = vpop.f32.mrf.mxu0
      %v1311 = vadd.f32 %v267, %v1310
      %1312 = vmatprep.mubr.bf16.mxu0 %v675
      %1313 = vmatmul.mubr.bf16.gmra.mxu0 %v674
      %v1314 = vpop.f32.mrf.mxu0
      %v1315 = vadd.f32 %v263, %v1314
      %v1316 = vpop.f32.mrf.mxu0
      %v1317 = vadd.f32 %v267, %v1316
      %v1318 = vpop.f32.mrf.mxu0
      %v1319 = vadd.f32 %v263, %v1318
      %v1320 = vpop.f32.mrf.mxu0
      %v1321 = vadd.f32 %v267, %v1320
      %1322 = vmatprep.mubr.bf16.mxu0 %v679
      %1323 = vmatmul.mubr.bf16.gmra.mxu0 %v678
      %v1324 = vpop.f32.mrf.mxu0
      %v1325 = vadd.f32 %v263, %v1324
      %v1326 = vpop.f32.mrf.mxu0
      %v1327 = vadd.f32 %v267, %v1326
      %v1328 = vpop.f32.mrf.mxu0
      %v1329 = vadd.f32 %v263, %v1328
      %v1330 = vpop.f32.mrf.mxu0
      %v1331 = vadd.f32 %v267, %v1330
      %1332 = vmatprep.mubr.bf16.mxu0 %v683
      %1333 = vmatmul.mubr.bf16.gmra.mxu0 %v682
      %v1334 = vpop.f32.mrf.mxu0
      %v1335 = vadd.f32 %v263, %v1334
      %v1336 = vpop.f32.mrf.mxu0
      %v1337 = vadd.f32 %v267, %v1336
      %v1338 = vpop.f32.mrf.mxu0
      %v1339 = vadd.f32 %v263, %v1338
      %v1340 = vpop.f32.mrf.mxu0
      %v1341 = vadd.f32 %v267, %v1340
      %1342 = vmatprep.mubr.bf16.mxu0 %v687
      %1343 = vmatmul.mubr.bf16.gmra.mxu0 %v686
      %v1344 = vpop.f32.mrf.mxu0
      %v1345 = vadd.f32 %v263, %v1344
      %v1346 = vpop.f32.mrf.mxu0
      %v1347 = vadd.f32 %v267, %v1346
      %v1348 = vpop.f32.mrf.mxu0
      %v1349 = vadd.f32 %v263, %v1348
      %v1350 = vpop.f32.mrf.mxu0
      %v1351 = vadd.f32 %v267, %v1350
      %1352 = vmatprep.mubr.bf16.mxu0 %v691
      %1353 = vmatmul.mubr.bf16.gmra.mxu0 %v690
      %v1354 = vpop.f32.mrf.mxu0
      %v1355 = vadd.f32 %v263, %v1354
      %v1356 = vpop.f32.mrf.mxu0
      %v1357 = vadd.f32 %v267, %v1356
      %v1358 = vpop.f32.mrf.mxu0
      %v1359 = vadd.f32 %v263, %v1358
      %v1360 = vpop.f32.mrf.mxu0
      %v1361 = vadd.f32 %v267, %v1360
      %1362 = vmatprep.mubr.bf16.mxu0 %v695
      %1363 = vmatmul.mubr.bf16.gmra.mxu0 %v694
      %v1364 = vpop.f32.mrf.mxu0
      %v1365 = vadd.f32 %v263, %v1364
      %v1366 = vpop.f32.mrf.mxu0
      %v1367 = vadd.f32 %v267, %v1366
      %v1368 = vpop.f32.mrf.mxu0
      %v1369 = vadd.f32 %v263, %v1368
      %v1370 = vpop.f32.mrf.mxu0
      %v1371 = vadd.f32 %v267, %v1370
      %1372 = vmatprep.mubr.bf16.mxu0 %v699
      %1373 = vmatmul.mubr.bf16.gmra.mxu0 %v698
      %v1374 = vpop.f32.mrf.mxu0
      %v1375 = vadd.f32 %v263, %v1374
      %v1376 = vpop.f32.mrf.mxu0
      %v1377 = vadd.f32 %v267, %v1376
      %v1378 = vpop.f32.mrf.mxu0
      %v1379 = vadd.f32 %v263, %v1378
      %v1380 = vpop.f32.mrf.mxu0
      %v1381 = vadd.f32 %v267, %v1380
      %1382 = vmatprep.mubr.bf16.mxu0 %v703
      %1383 = vmatmul.mubr.bf16.gmra.mxu0 %v702
      %v1384 = vpop.f32.mrf.mxu0
      %v1385 = vadd.f32 %v263, %v1384
      %v1386 = vpop.f32.mrf.mxu0
      %v1387 = vadd.f32 %v267, %v1386
      %v1388 = vpop.f32.mrf.mxu0
      %v1389 = vadd.f32 %v263, %v1388
      %v1390 = vpop.f32.mrf.mxu0
      %v1391 = vadd.f32 %v267, %v1390
      %1392 = vmatprep.mubr.bf16.mxu0 %v707
      %1393 = vmatmul.mubr.bf16.gmra.mxu0 %v706
      %v1394 = vpop.f32.mrf.mxu0
      %v1395 = vadd.f32 %v263, %v1394
      %v1396 = vpop.f32.mrf.mxu0
      %v1397 = vadd.f32 %v267, %v1396
      %v1398 = vpop.f32.mrf.mxu0
      %v1399 = vadd.f32 %v263, %v1398
      %v1400 = vpop.f32.mrf.mxu0
      %v1401 = vadd.f32 %v267, %v1400
      %1402 = vmatprep.mubr.bf16.mxu0 %v711
      %1403 = vmatmul.mubr.bf16.gmra.mxu0 %v710
      %v1404 = vpop.f32.mrf.mxu0
      %v1405 = vadd.f32 %v263, %v1404
      %v1406 = vpop.f32.mrf.mxu0
      %v1407 = vadd.f32 %v267, %v1406
      %v1408 = vpop.f32.mrf.mxu0
      %v1409 = vadd.f32 %v263, %v1408
      %v1410 = vpop.f32.mrf.mxu0
      %v1411 = vadd.f32 %v267, %v1410
      %1412 = vmatprep.mubr.bf16.mxu0 %v715
      %1413 = vmatmul.mubr.bf16.gmra.mxu0 %v714
      %v1414 = vpop.f32.mrf.mxu0
      %v1415 = vadd.f32 %v263, %v1414
      %v1416 = vpop.f32.mrf.mxu0
      %v1417 = vadd.f32 %v267, %v1416
      %v1418 = vpop.f32.mrf.mxu0
      %v1419 = vadd.f32 %v263, %v1418
      %v1420 = vpop.f32.mrf.mxu0
      %v1421 = vadd.f32 %v267, %v1420
      %1422 = vmatprep.mubr.bf16.mxu0 %v719
      %1423 = vmatmul.mubr.bf16.gmra.mxu0 %v718
      %v1424 = vpop.f32.mrf.mxu0
      %v1425 = vadd.f32 %v263, %v1424
      %v1426 = vpop.f32.mrf.mxu0
      %v1427 = vadd.f32 %v267, %v1426
      %v1428 = vpop.f32.mrf.mxu0
      %v1429 = vadd.f32 %v263, %v1428
      %v1430 = vpop.f32.mrf.mxu0
      %v1431 = vadd.f32 %v267, %v1430
      %1432 = vmatprep.mubr.bf16.mxu0 %v723
      %1433 = vmatmul.mubr.bf16.gmra.mxu0 %v722
      %v1434 = vpop.f32.mrf.mxu0
      %v1435 = vadd.f32 %v263, %v1434
      %v1436 = vpop.f32.mrf.mxu0
      %v1437 = vadd.f32 %v267, %v1436
      %v1438 = vpop.f32.mrf.mxu0
      %v1439 = vadd.f32 %v263, %v1438
      %v1440 = vpop.f32.mrf.mxu0
      %v1441 = vadd.f32 %v267, %v1440
      %1442 = vmatprep.mubr.bf16.mxu0 %v727
      %1443 = vmatmul.mubr.bf16.gmra.mxu0 %v726
      %v1444 = vpop.f32.mrf.mxu0
      %v1445 = vadd.f32 %v263, %v1444
      %v1446 = vpop.f32.mrf.mxu0
      %v1447 = vadd.f32 %v267, %v1446
      %v1448 = vpop.f32.mrf.mxu0
      %v1449 = vadd.f32 %v263, %v1448
      %v1450 = vpop.f32.mrf.mxu0
      %v1451 = vadd.f32 %v267, %v1450
      %1452 = vmatprep.mubr.bf16.mxu0 %v731
      %1453 = vmatmul.mubr.bf16.gmra.mxu0 %v730
      %v1454 = vpop.f32.mrf.mxu0
      %v1455 = vadd.f32 %v263, %v1454
      %v1456 = vpop.f32.mrf.mxu0
      %v1457 = vadd.f32 %v267, %v1456
      %v1458 = vpop.f32.mrf.mxu0
      %v1459 = vadd.f32 %v263, %v1458
      %v1460 = vpop.f32.mrf.mxu0
      %v1461 = vadd.f32 %v267, %v1460
      %1462 = vmatprep.mubr.bf16.mxu0 %v735
      %1463 = vmatmul.mubr.bf16.gmra.mxu0 %v734
      %v1464 = vpop.f32.mrf.mxu0
      %v1465 = vadd.f32 %v263, %v1464
      %v1466 = vpop.f32.mrf.mxu0
      %v1467 = vadd.f32 %v267, %v1466
      %v1468 = vpop.f32.mrf.mxu0
      %v1469 = vadd.f32 %v263, %v1468
      %v1470 = vpop.f32.mrf.mxu0
      %v1471 = vadd.f32 %v267, %v1470
      %1472 = vmatprep.mubr.bf16.mxu0 %v739
      %1473 = vmatmul.mubr.bf16.gmra.mxu0 %v738
      %v1474 = vpop.f32.mrf.mxu0
      %v1475 = vadd.f32 %v263, %v1474
      %v1476 = vpop.f32.mrf.mxu0
      %v1477 = vadd.f32 %v267, %v1476
      %v1478 = vpop.f32.mrf.mxu0
      %v1479 = vadd.f32 %v263, %v1478
      %v1480 = vpop.f32.mrf.mxu0
      %v1481 = vadd.f32 %v267, %v1480
      %1482 = vmatprep.mubr.bf16.mxu0 %v743
      %1483 = vmatmul.mubr.bf16.gmra.mxu0 %v742
      %v1484 = vpop.f32.mrf.mxu0
      %v1485 = vadd.f32 %v263, %v1484
      %v1486 = vpop.f32.mrf.mxu0
      %v1487 = vadd.f32 %v267, %v1486
      %v1488 = vpop.f32.mrf.mxu0
      %v1489 = vadd.f32 %v263, %v1488
      %v1490 = vpop.f32.mrf.mxu0
      %v1491 = vadd.f32 %v267, %v1490
      %1492 = vmatprep.mubr.bf16.mxu0 %v747
      %1493 = vmatmul.mubr.bf16.gmra.mxu0 %v746
      %v1494 = vpop.f32.mrf.mxu0
      %v1495 = vadd.f32 %v263, %v1494
      %v1496 = vpop.f32.mrf.mxu0
      %v1497 = vadd.f32 %v267, %v1496
      %v1498 = vpop.f32.mrf.mxu0
      %v1499 = vadd.f32 %v263, %v1498
      %v1500 = vpop.f32.mrf.mxu0
      %v1501 = vadd.f32 %v267, %v1500
      %1502 = vmatprep.mubr.bf16.mxu0 %v751
      %1503 = vmatmul.mubr.bf16.gmra.mxu0 %v750
      %v1504 = vpop.f32.mrf.mxu0
      %v1505 = vadd.f32 %v263, %v1504
      %v1506 = vpop.f32.mrf.mxu0
      %v1507 = vadd.f32 %v267, %v1506
      %v1508 = vpop.f32.mrf.mxu0
      %v1509 = vadd.f32 %v263, %v1508
      %v1510 = vpop.f32.mrf.mxu0
      %v1511 = vadd.f32 %v267, %v1510
      %1512 = vmatprep.mubr.bf16.mxu0 %v755
      %1513 = vmatmul.mubr.bf16.gmra.mxu0 %v754
      %v1514 = vpop.f32.mrf.mxu0
      %v1515 = vadd.f32 %v263, %v1514
      %v1516 = vpop.f32.mrf.mxu0
      %v1517 = vadd.f32 %v267, %v1516
      %v1518 = vpop.f32.mrf.mxu0
      %v1519 = vadd.f32 %v263, %v1518
      %v1520 = vpop.f32.mrf.mxu0
      %v1521 = vadd.f32 %v267, %v1520
      %1522 = vmatprep.mubr.bf16.mxu0 %v759
      %1523 = vmatmul.mubr.bf16.gmra.mxu0 %v758
      %v1524 = vpop.f32.mrf.mxu0
      %v1525 = vadd.f32 %v263, %v1524
      %v1526 = vpop.f32.mrf.mxu0
      %v1527 = vadd.f32 %v267, %v1526
      %v1528 = vpop.f32.mrf.mxu0
      %v1529 = vadd.f32 %v263, %v1528
      %v1530 = vpop.f32.mrf.mxu0
      %v1531 = vadd.f32 %v267, %v1530
      %1532 = vmatprep.mubr.bf16.mxu0 %v763
      %1533 = vmatmul.mubr.bf16.gmra.mxu0 %v762
      %v1534 = vpop.f32.mrf.mxu0
      %v1535 = vadd.f32 %v263, %v1534
      %v1536 = vpop.f32.mrf.mxu0
      %v1537 = vadd.f32 %v267, %v1536
      %v1538 = vpop.f32.mrf.mxu0
      %v1539 = vadd.f32 %v263, %v1538
      %v1540 = vpop.f32.mrf.mxu0
      %v1541 = vadd.f32 %v267, %v1540
      %1542 = vmatprep.mubr.bf16.mxu0 %v767
      %1543 = vmatmul.mubr.bf16.gmra.mxu0 %v766
      %v1544 = vpop.f32.mrf.mxu0
      %v1545 = vadd.f32 %v263, %v1544
      %v1546 = vpop.f32.mrf.mxu0
      %v1547 = vadd.f32 %v267, %v1546
      %v1548 = vpop.f32.mrf.mxu0
      %v1549 = vadd.f32 %v263, %v1548
      %v1550 = vpop.f32.mrf.mxu0
      %v1551 = vadd.f32 %v267, %v1550
      %1552 = vmatprep.mubr.bf16.mxu0 %v771
      %1553 = vmatmul.mubr.bf16.gmra.mxu0 %v770
      %v1554 = vpop.f32.mrf.mxu0
      %v1555 = vadd.f32 %v263, %v1554
      %v1556 = vpop.f32.mrf.mxu0
      %v1557 = vadd.f32 %v267, %v1556
      %v1558 = vpop.f32.mrf.mxu0
      %v1559 = vadd.f32 %v263, %v1558
      %v1560 = vpop.f32.mrf.mxu0
      %v1561 = vadd.f32 %v267, %v1560
      %1562 = vmatprep.mubr.bf16.mxu0 %v775
      %1563 = vmatmul.mubr.bf16.gmra.mxu0 %v774
      %v1564 = vpop.f32.mrf.mxu0
      %v1565 = vadd.f32 %v263, %v1564
      %v1566 = vpop.f32.mrf.mxu0
      %v1567 = vadd.f32 %v267, %v1566
      %v1568 = vpop.f32.mrf.mxu0
      %v1569 = vadd.f32 %v263, %v1568
      %v1570 = vpop.f32.mrf.mxu0
      %v1571 = vadd.f32 %v267, %v1570
      %1572 = vmatprep.mubr.bf16.mxu0 %v779
      %1573 = vmatmul.mubr.bf16.gmra.mxu0 %v778
      %v1574 = vpop.f32.mrf.mxu0
      %v1575 = vadd.f32 %v263, %v1574
      %v1576 = vpop.f32.mrf.mxu0
      %v1577 = vadd.f32 %v267, %v1576
      %v1578 = vpop.f32.mrf.mxu0
      %v1579 = vadd.f32 %v263, %v1578
      %v1580 = vpop.f32.mrf.mxu0
      %v1581 = vadd.f32 %v267, %v1580
      %1582 = vdwg.mxu0
      %1583 = vmatprep.subr.bf16.mxu0 %v1149
      %1584 = vmatpush1.bf16.msra.mxu0 %v1148
      %1585 = vmatprep.subr.bf16.mxu0 %v1147
      %1586 = vmatpush1.bf16.msra.mxu0 %v1146
      %1587 = vmatprep.subr.bf16.mxu0 %v1145
      %1588 = vmatpush1.bf16.msra.mxu0 %v1144
      %1589 = vmatprep.subr.bf16.mxu0 %v1143
      %1590 = vmatpush1.bf16.msra.mxu0 %v1142
      %1591 = vmatprep.subr.bf16.mxu0 %v1141
      %1592 = vmatpush1.bf16.msra.mxu0 %v1140
      %1593 = vmatprep.subr.bf16.mxu0 %v1139
      %1594 = vmatpush1.bf16.msra.mxu0 %v1138
      %1595 = vmatprep.subr.bf16.mxu0 %v1137
      %1596 = vmatpush1.bf16.msra.mxu0 %v1136
      %1597 = vmatprep.subr.bf16.mxu0 %v1135
      %1598 = vmatpush1.bf16.msra.mxu0 %v1134
      %1599 = vmatprep.subr.bf16.mxu0 %v1165
      %1600 = vmatpush2.bf16.msra.mxu0 %v1164
      %1601 = vmatprep.subr.bf16.mxu0 %v1163
      %1602 = vmatpush2.bf16.msra.mxu0 %v1162
      %1603 = vmatprep.subr.bf16.mxu0 %v1161
      %1604 = vmatpush2.bf16.msra.mxu0 %v1160
      %1605 = vmatprep.subr.bf16.mxu0 %v1159
      %1606 = vmatpush2.bf16.msra.mxu0 %v1158
      %1607 = vmatprep.subr.bf16.mxu0 %v1157
      %1608 = vmatpush2.bf16.msra.mxu0 %v1156
      %1609 = vmatprep.subr.bf16.mxu0 %v1155
      %1610 = vmatpush2.bf16.msra.mxu0 %v1154
      %1611 = vmatprep.subr.bf16.mxu0 %v1153
      %1612 = vmatpush2.bf16.msra.mxu0 %v1152
      %1613 = vmatprep.subr.bf16.mxu0 %v1151
      %1614 = vmatpush2.bf16.msra.mxu0 %v1150
      %1615 = vmatprep.mubr.bf16.mxu0 %v657
      %1616 = vmatmul.mubr.bf16.gmra.mxu0 %v656
      %v1617 = vpop.f32.mrf.mxu0
      %v1618 = vadd.f32 %v1265, %v1617
      %v1619 = vpop.f32.mrf.mxu0
      %v1620 = vadd.f32 %v1267, %v1619
      %v1621 = vpop.f32.mrf.mxu0
      %v1622 = vadd.f32 %v1269, %v1621
      %v1623 = vpop.f32.mrf.mxu0
      %v1624 = vadd.f32 %v1271, %v1623
      %1625 = vmatprep.mubr.bf16.mxu0 %v661
      %1626 = vmatmul.mubr.bf16.gmra.mxu0 %v660
      %v1627 = vpop.f32.mrf.mxu0
      %v1628 = vadd.f32 %v1275, %v1627
      %v1629 = vpop.f32.mrf.mxu0
      %v1630 = vadd.f32 %v1277, %v1629
      %v1631 = vpop.f32.mrf.mxu0
      %v1632 = vadd.f32 %v1279, %v1631
      %v1633 = vpop.f32.mrf.mxu0
      %v1634 = vadd.f32 %v1281, %v1633
      %1635 = vmatprep.mubr.bf16.mxu0 %v665
      %1636 = vmatmul.mubr.bf16.gmra.mxu0 %v664
      %v1637 = vpop.f32.mrf.mxu0
      %v1638 = vadd.f32 %v1285, %v1637
      %v1639 = vpop.f32.mrf.mxu0
      %v1640 = vadd.f32 %v1287, %v1639
      %v1641 = vpop.f32.mrf.mxu0
      %v1642 = vadd.f32 %v1289, %v1641
      %v1643 = vpop.f32.mrf.mxu0
      %v1644 = vadd.f32 %v1291, %v1643
      %1645 = vmatprep.mubr.bf16.mxu0 %v669
      %1646 = vmatmul.mubr.bf16.gmra.mxu0 %v668
      %v1647 = vpop.f32.mrf.mxu0
      %v1648 = vadd.f32 %v1295, %v1647
      %v1649 = vpop.f32.mrf.mxu0
      %v1650 = vadd.f32 %v1297, %v1649
      %v1651 = vpop.f32.mrf.mxu0
      %v1652 = vadd.f32 %v1299, %v1651
      %v1653 = vpop.f32.mrf.mxu0
      %v1654 = vadd.f32 %v1301, %v1653
      %1655 = vmatprep.mubr.bf16.mxu0 %v673
      %1656 = vmatmul.mubr.bf16.gmra.mxu0 %v672
      %v1657 = vpop.f32.mrf.mxu0
      %v1658 = vadd.f32 %v1305, %v1657
      %v1659 = vpop.f32.mrf.mxu0
      %v1660 = vadd.f32 %v1307, %v1659
      %v1661 = vpop.f32.mrf.mxu0
      %v1662 = vadd.f32 %v1309, %v1661
      %v1663 = vpop.f32.mrf.mxu0
      %v1664 = vadd.f32 %v1311, %v1663
      %1665 = vmatprep.mubr.bf16.mxu0 %v677
      %1666 = vmatmul.mubr.bf16.gmra.mxu0 %v676
      %v1667 = vpop.f32.mrf.mxu0
      %v1668 = vadd.f32 %v1315, %v1667
      %v1669 = vpop.f32.mrf.mxu0
      %v1670 = vadd.f32 %v1317, %v1669
      %v1671 = vpop.f32.mrf.mxu0
      %v1672 = vadd.f32 %v1319, %v1671
      %v1673 = vpop.f32.mrf.mxu0
      %v1674 = vadd.f32 %v1321, %v1673
      %1675 = vmatprep.mubr.bf16.mxu0 %v681
      %1676 = vmatmul.mubr.bf16.gmra.mxu0 %v680
      %v1677 = vpop.f32.mrf.mxu0
      %v1678 = vadd.f32 %v1325, %v1677
      %v1679 = vpop.f32.mrf.mxu0
      %v1680 = vadd.f32 %v1327, %v1679
      %v1681 = vpop.f32.mrf.mxu0
      %v1682 = vadd.f32 %v1329, %v1681
      %v1683 = vpop.f32.mrf.mxu0
      %v1684 = vadd.f32 %v1331, %v1683
      %1685 = vmatprep.mubr.bf16.mxu0 %v685
      %1686 = vmatmul.mubr.bf16.gmra.mxu0 %v684
      %v1687 = vpop.f32.mrf.mxu0
      %v1688 = vadd.f32 %v1335, %v1687
      %v1689 = vpop.f32.mrf.mxu0
      %v1690 = vadd.f32 %v1337, %v1689
      %v1691 = vpop.f32.mrf.mxu0
      %v1692 = vadd.f32 %v1339, %v1691
      %v1693 = vpop.f32.mrf.mxu0
      %v1694 = vadd.f32 %v1341, %v1693
      %1695 = vmatprep.mubr.bf16.mxu0 %v689
      %1696 = vmatmul.mubr.bf16.gmra.mxu0 %v688
      %v1697 = vpop.f32.mrf.mxu0
      %v1698 = vadd.f32 %v1345, %v1697
      %v1699 = vpop.f32.mrf.mxu0
      %v1700 = vadd.f32 %v1347, %v1699
      %v1701 = vpop.f32.mrf.mxu0
      %v1702 = vadd.f32 %v1349, %v1701
      %v1703 = vpop.f32.mrf.mxu0
      %v1704 = vadd.f32 %v1351, %v1703
      %1705 = vmatprep.mubr.bf16.mxu0 %v693
      %1706 = vmatmul.mubr.bf16.gmra.mxu0 %v692
      %v1707 = vpop.f32.mrf.mxu0
      %v1708 = vadd.f32 %v1355, %v1707
      %v1709 = vpop.f32.mrf.mxu0
      %v1710 = vadd.f32 %v1357, %v1709
      %v1711 = vpop.f32.mrf.mxu0
      %v1712 = vadd.f32 %v1359, %v1711
      %v1713 = vpop.f32.mrf.mxu0
      %v1714 = vadd.f32 %v1361, %v1713
      %1715 = vmatprep.mubr.bf16.mxu0 %v697
      %1716 = vmatmul.mubr.bf16.gmra.mxu0 %v696
      %v1717 = vpop.f32.mrf.mxu0
      %v1718 = vadd.f32 %v1365, %v1717
      %v1719 = vpop.f32.mrf.mxu0
      %v1720 = vadd.f32 %v1367, %v1719
      %v1721 = vpop.f32.mrf.mxu0
      %v1722 = vadd.f32 %v1369, %v1721
      %v1723 = vpop.f32.mrf.mxu0
      %v1724 = vadd.f32 %v1371, %v1723
      %1725 = vmatprep.mubr.bf16.mxu0 %v701
      %1726 = vmatmul.mubr.bf16.gmra.mxu0 %v700
      %v1727 = vpop.f32.mrf.mxu0
      %v1728 = vadd.f32 %v1375, %v1727
      %v1729 = vpop.f32.mrf.mxu0
      %v1730 = vadd.f32 %v1377, %v1729
      %v1731 = vpop.f32.mrf.mxu0
      %v1732 = vadd.f32 %v1379, %v1731
      %v1733 = vpop.f32.mrf.mxu0
      %v1734 = vadd.f32 %v1381, %v1733
      %1735 = vmatprep.mubr.bf16.mxu0 %v705
      %1736 = vmatmul.mubr.bf16.gmra.mxu0 %v704
      %v1737 = vpop.f32.mrf.mxu0
      %v1738 = vadd.f32 %v1385, %v1737
      %v1739 = vpop.f32.mrf.mxu0
      %v1740 = vadd.f32 %v1387, %v1739
      %v1741 = vpop.f32.mrf.mxu0
      %v1742 = vadd.f32 %v1389, %v1741
      %v1743 = vpop.f32.mrf.mxu0
      %v1744 = vadd.f32 %v1391, %v1743
      %1745 = vmatprep.mubr.bf16.mxu0 %v709
      %1746 = vmatmul.mubr.bf16.gmra.mxu0 %v708
      %v1747 = vpop.f32.mrf.mxu0
      %v1748 = vadd.f32 %v1395, %v1747
      %v1749 = vpop.f32.mrf.mxu0
      %v1750 = vadd.f32 %v1397, %v1749
      %v1751 = vpop.f32.mrf.mxu0
      %v1752 = vadd.f32 %v1399, %v1751
      %v1753 = vpop.f32.mrf.mxu0
      %v1754 = vadd.f32 %v1401, %v1753
      %1755 = vmatprep.mubr.bf16.mxu0 %v713
      %1756 = vmatmul.mubr.bf16.gmra.mxu0 %v712
      %v1757 = vpop.f32.mrf.mxu0
      %v1758 = vadd.f32 %v1405, %v1757
      %v1759 = vpop.f32.mrf.mxu0
      %v1760 = vadd.f32 %v1407, %v1759
      %v1761 = vpop.f32.mrf.mxu0
      %v1762 = vadd.f32 %v1409, %v1761
      %v1763 = vpop.f32.mrf.mxu0
      %v1764 = vadd.f32 %v1411, %v1763
      %1765 = vmatprep.mubr.bf16.mxu0 %v717
      %1766 = vmatmul.mubr.bf16.gmra.mxu0 %v716
      %v1767 = vpop.f32.mrf.mxu0
      %v1768 = vadd.f32 %v1415, %v1767
      %v1769 = vpop.f32.mrf.mxu0
      %v1770 = vadd.f32 %v1417, %v1769
      %v1771 = vpop.f32.mrf.mxu0
      %v1772 = vadd.f32 %v1419, %v1771
      %v1773 = vpop.f32.mrf.mxu0
      %v1774 = vadd.f32 %v1421, %v1773
      %1775 = vmatprep.mubr.bf16.mxu0 %v721
      %1776 = vmatmul.mubr.bf16.gmra.mxu0 %v720
      %v1777 = vpop.f32.mrf.mxu0
      %v1778 = vadd.f32 %v1425, %v1777
      %v1779 = vpop.f32.mrf.mxu0
      %v1780 = vadd.f32 %v1427, %v1779
      %v1781 = vpop.f32.mrf.mxu0
      %v1782 = vadd.f32 %v1429, %v1781
      %v1783 = vpop.f32.mrf.mxu0
      %v1784 = vadd.f32 %v1431, %v1783
      %1785 = vmatprep.mubr.bf16.mxu0 %v725
      %1786 = vmatmul.mubr.bf16.gmra.mxu0 %v724
      %v1787 = vpop.f32.mrf.mxu0
      %v1788 = vadd.f32 %v1435, %v1787
      %v1789 = vpop.f32.mrf.mxu0
      %v1790 = vadd.f32 %v1437, %v1789
      %v1791 = vpop.f32.mrf.mxu0
      %v1792 = vadd.f32 %v1439, %v1791
      %v1793 = vpop.f32.mrf.mxu0
      %v1794 = vadd.f32 %v1441, %v1793
      %1795 = vmatprep.mubr.bf16.mxu0 %v729
      %1796 = vmatmul.mubr.bf16.gmra.mxu0 %v728
      %v1797 = vpop.f32.mrf.mxu0
      %v1798 = vadd.f32 %v1445, %v1797
      %v1799 = vpop.f32.mrf.mxu0
      %v1800 = vadd.f32 %v1447, %v1799
      %v1801 = vpop.f32.mrf.mxu0
      %v1802 = vadd.f32 %v1449, %v1801
      %v1803 = vpop.f32.mrf.mxu0
      %v1804 = vadd.f32 %v1451, %v1803
      %1805 = vmatprep.mubr.bf16.mxu0 %v733
      %1806 = vmatmul.mubr.bf16.gmra.mxu0 %v732
      %v1807 = vpop.f32.mrf.mxu0
      %v1808 = vadd.f32 %v1455, %v1807
      %v1809 = vpop.f32.mrf.mxu0
      %v1810 = vadd.f32 %v1457, %v1809
      %v1811 = vpop.f32.mrf.mxu0
      %v1812 = vadd.f32 %v1459, %v1811
      %v1813 = vpop.f32.mrf.mxu0
      %v1814 = vadd.f32 %v1461, %v1813
      %1815 = vmatprep.mubr.bf16.mxu0 %v737
      %1816 = vmatmul.mubr.bf16.gmra.mxu0 %v736
      %v1817 = vpop.f32.mrf.mxu0
      %v1818 = vadd.f32 %v1465, %v1817
      %v1819 = vpop.f32.mrf.mxu0
      %v1820 = vadd.f32 %v1467, %v1819
      %v1821 = vpop.f32.mrf.mxu0
      %v1822 = vadd.f32 %v1469, %v1821
      %v1823 = vpop.f32.mrf.mxu0
      %v1824 = vadd.f32 %v1471, %v1823
      %1825 = vmatprep.mubr.bf16.mxu0 %v741
      %1826 = vmatmul.mubr.bf16.gmra.mxu0 %v740
      %v1827 = vpop.f32.mrf.mxu0
      %v1828 = vadd.f32 %v1475, %v1827
      %v1829 = vpop.f32.mrf.mxu0
      %v1830 = vadd.f32 %v1477, %v1829
      %v1831 = vpop.f32.mrf.mxu0
      %v1832 = vadd.f32 %v1479, %v1831
      %v1833 = vpop.f32.mrf.mxu0
      %v1834 = vadd.f32 %v1481, %v1833
      %1835 = vmatprep.mubr.bf16.mxu0 %v745
      %1836 = vmatmul.mubr.bf16.gmra.mxu0 %v744
      %v1837 = vpop.f32.mrf.mxu0
      %v1838 = vadd.f32 %v1485, %v1837
      %v1839 = vpop.f32.mrf.mxu0
      %v1840 = vadd.f32 %v1487, %v1839
      %v1841 = vpop.f32.mrf.mxu0
      %v1842 = vadd.f32 %v1489, %v1841
      %v1843 = vpop.f32.mrf.mxu0
      %v1844 = vadd.f32 %v1491, %v1843
      %1845 = vmatprep.mubr.bf16.mxu0 %v749
      %1846 = vmatmul.mubr.bf16.gmra.mxu0 %v748
      %v1847 = vpop.f32.mrf.mxu0
      %v1848 = vadd.f32 %v1495, %v1847
      %v1849 = vpop.f32.mrf.mxu0
      %v1850 = vadd.f32 %v1497, %v1849
      %v1851 = vpop.f32.mrf.mxu0
      %v1852 = vadd.f32 %v1499, %v1851
      %v1853 = vpop.f32.mrf.mxu0
      %v1854 = vadd.f32 %v1501, %v1853
      %1855 = vmatprep.mubr.bf16.mxu0 %v753
      %1856 = vmatmul.mubr.bf16.gmra.mxu0 %v752
      %v1857 = vpop.f32.mrf.mxu0
      %v1858 = vadd.f32 %v1505, %v1857
      %v1859 = vpop.f32.mrf.mxu0
      %v1860 = vadd.f32 %v1507, %v1859
      %v1861 = vpop.f32.mrf.mxu0
      %v1862 = vadd.f32 %v1509, %v1861
      %v1863 = vpop.f32.mrf.mxu0
      %v1864 = vadd.f32 %v1511, %v1863
      %1865 = vmatprep.mubr.bf16.mxu0 %v757
      %1866 = vmatmul.mubr.bf16.gmra.mxu0 %v756
      %v1867 = vpop.f32.mrf.mxu0
      %v1868 = vadd.f32 %v1515, %v1867
      %v1869 = vpop.f32.mrf.mxu0
      %v1870 = vadd.f32 %v1517, %v1869
      %v1871 = vpop.f32.mrf.mxu0
      %v1872 = vadd.f32 %v1519, %v1871
      %v1873 = vpop.f32.mrf.mxu0
      %v1874 = vadd.f32 %v1521, %v1873
      %1875 = vmatprep.mubr.bf16.mxu0 %v761
      %1876 = vmatmul.mubr.bf16.gmra.mxu0 %v760
      %v1877 = vpop.f32.mrf.mxu0
      %v1878 = vadd.f32 %v1525, %v1877
      %v1879 = vpop.f32.mrf.mxu0
      %v1880 = vadd.f32 %v1527, %v1879
      %v1881 = vpop.f32.mrf.mxu0
      %v1882 = vadd.f32 %v1529, %v1881
      %v1883 = vpop.f32.mrf.mxu0
      %v1884 = vadd.f32 %v1531, %v1883
      %1885 = vmatprep.mubr.bf16.mxu0 %v765
      %1886 = vmatmul.mubr.bf16.gmra.mxu0 %v764
      %v1887 = vpop.f32.mrf.mxu0
      %v1888 = vadd.f32 %v1535, %v1887
      %v1889 = vpop.f32.mrf.mxu0
      %v1890 = vadd.f32 %v1537, %v1889
      %v1891 = vpop.f32.mrf.mxu0
      %v1892 = vadd.f32 %v1539, %v1891
      %v1893 = vpop.f32.mrf.mxu0
      %v1894 = vadd.f32 %v1541, %v1893
      %1895 = vmatprep.mubr.bf16.mxu0 %v769
      %1896 = vmatmul.mubr.bf16.gmra.mxu0 %v768
      %v1897 = vpop.f32.mrf.mxu0
      %v1898 = vadd.f32 %v1545, %v1897
      %v1899 = vpop.f32.mrf.mxu0
      %v1900 = vadd.f32 %v1547, %v1899
      %v1901 = vpop.f32.mrf.mxu0
      %v1902 = vadd.f32 %v1549, %v1901
      %v1903 = vpop.f32.mrf.mxu0
      %v1904 = vadd.f32 %v1551, %v1903
      %1905 = vmatprep.mubr.bf16.mxu0 %v773
      %1906 = vmatmul.mubr.bf16.gmra.mxu0 %v772
      %v1907 = vpop.f32.mrf.mxu0
      %v1908 = vadd.f32 %v1555, %v1907
      %v1909 = vpop.f32.mrf.mxu0
      %v1910 = vadd.f32 %v1557, %v1909
      %v1911 = vpop.f32.mrf.mxu0
      %v1912 = vadd.f32 %v1559, %v1911
      %v1913 = vpop.f32.mrf.mxu0
      %v1914 = vadd.f32 %v1561, %v1913
      %1915 = vmatprep.mubr.bf16.mxu0 %v777
      %1916 = vmatmul.mubr.bf16.gmra.mxu0 %v776
      %v1917 = vpop.f32.mrf.mxu0
      %v1918 = vadd.f32 %v1565, %v1917
      %v1919 = vpop.f32.mrf.mxu0
      %v1920 = vadd.f32 %v1567, %v1919
      %v1921 = vpop.f32.mrf.mxu0
      %v1922 = vadd.f32 %v1569, %v1921
      %v1923 = vpop.f32.mrf.mxu0
      %v1924 = vadd.f32 %v1571, %v1923
      %1925 = vmatprep.mubr.bf16.mxu0 %v781
      %1926 = vmatmul.mubr.bf16.gmra.mxu0 %v780
      %v1927 = vpop.f32.mrf.mxu0
      %v1928 = vadd.f32 %v1575, %v1927
      %v1929 = vpop.f32.mrf.mxu0
      %v1930 = vadd.f32 %v1577, %v1929
      %v1931 = vpop.f32.mrf.mxu0
      %v1932 = vadd.f32 %v1579, %v1931
      %v1933 = vpop.f32.mrf.mxu0
      %v1934 = vadd.f32 %v1581, %v1933
      %1935 = vdwg.mxu0
      %v1936 = vxor.u32 %v1618, 2147483648
      %v1937 = vxor.u32 %v1620, 2147483648
      %v1938 = vxor.u32 %v1622, 2147483648
      %v1939 = vxor.u32 %v1624, 2147483648
      %v1940 = vxor.u32 %v1628, 2147483648
      %v1941 = vxor.u32 %v1630, 2147483648
      %v1942 = vxor.u32 %v1632, 2147483648
      %v1943 = vxor.u32 %v1634, 2147483648
      %v1944 = vxor.u32 %v1638, 2147483648
      %v1945 = vxor.u32 %v1640, 2147483648
      %v1946 = vxor.u32 %v1642, 2147483648
      %v1947 = vxor.u32 %v1644, 2147483648
      %v1948 = vxor.u32 %v1648, 2147483648
      %v1949 = vxor.u32 %v1650, 2147483648
      %v1950 = vxor.u32 %v1652, 2147483648
      %v1951 = vxor.u32 %v1654, 2147483648
      %v1952 = vxor.u32 %v1658, 2147483648
      %v1953 = vxor.u32 %v1660, 2147483648
      %v1954 = vxor.u32 %v1662, 2147483648
      %v1955 = vxor.u32 %v1664, 2147483648
      %v1956 = vxor.u32 %v1668, 2147483648
      %v1957 = vxor.u32 %v1670, 2147483648
      %v1958 = vxor.u32 %v1672, 2147483648
      %v1959 = vxor.u32 %v1674, 2147483648
      %v1960 = vxor.u32 %v1678, 2147483648
      %v1961 = vxor.u32 %v1680, 2147483648
      %v1962 = vxor.u32 %v1682, 2147483648
      %v1963 = vxor.u32 %v1684, 2147483648
      %v1964 = vxor.u32 %v1688, 2147483648
      %v1965 = vxor.u32 %v1690, 2147483648
      %v1966 = vxor.u32 %v1692, 2147483648
      %v1967 = vxor.u32 %v1694, 2147483648
      %v1968 = vxor.u32 %v1698, 2147483648
      %v1969 = vxor.u32 %v1700, 2147483648
      %v1970 = vxor.u32 %v1702, 2147483648
      %v1971 = vxor.u32 %v1704, 2147483648
      %v1972 = vxor.u32 %v1708, 2147483648
      %v1973 = vxor.u32 %v1710, 2147483648
      %v1974 = vxor.u32 %v1712, 2147483648
      %v1975 = vxor.u32 %v1714, 2147483648
      %v1976 = vxor.u32 %v1718, 2147483648
      %v1977 = vxor.u32 %v1720, 2147483648
      %v1978 = vxor.u32 %v1722, 2147483648
      %v1979 = vxor.u32 %v1724, 2147483648
      %v1980 = vxor.u32 %v1728, 2147483648
      %v1981 = vxor.u32 %v1730, 2147483648
      %v1982 = vxor.u32 %v1732, 2147483648
      %v1983 = vxor.u32 %v1734, 2147483648
      %v1984 = vxor.u32 %v1738, 2147483648
      %v1985 = vxor.u32 %v1740, 2147483648
      %v1986 = vxor.u32 %v1742, 2147483648
      %v1987 = vxor.u32 %v1744, 2147483648
      %v1988 = vxor.u32 %v1748, 2147483648
      %v1989 = vxor.u32 %v1750, 2147483648
      %v1990 = vxor.u32 %v1752, 2147483648
      %v1991 = vxor.u32 %v1754, 2147483648
      %v1992 = vxor.u32 %v1758, 2147483648
      %v1993 = vxor.u32 %v1760, 2147483648
      %v1994 = vxor.u32 %v1762, 2147483648
      %v1995 = vxor.u32 %v1764, 2147483648
      %v1996 = vxor.u32 %v1768, 2147483648
      %v1997 = vxor.u32 %v1770, 2147483648
      %v1998 = vxor.u32 %v1772, 2147483648
      %v1999 = vxor.u32 %v1774, 2147483648
      %v2000 = vxor.u32 %v1778, 2147483648
      %v2001 = vxor.u32 %v1780, 2147483648
      %v2002 = vxor.u32 %v1782, 2147483648
      %v2003 = vxor.u32 %v1784, 2147483648
      %v2004 = vxor.u32 %v1788, 2147483648
      %v2005 = vxor.u32 %v1790, 2147483648
      %v2006 = vxor.u32 %v1792, 2147483648
      %v2007 = vxor.u32 %v1794, 2147483648
      %v2008 = vxor.u32 %v1798, 2147483648
      %v2009 = vxor.u32 %v1800, 2147483648
      %v2010 = vxor.u32 %v1802, 2147483648
      %v2011 = vxor.u32 %v1804, 2147483648
      %v2012 = vxor.u32 %v1808, 2147483648
      %v2013 = vxor.u32 %v1810, 2147483648
      %v2014 = vxor.u32 %v1812, 2147483648
      %v2015 = vxor.u32 %v1814, 2147483648
      %v2016 = vxor.u32 %v1818, 2147483648
      %v2017 = vxor.u32 %v1820, 2147483648
      %v2018 = vxor.u32 %v1822, 2147483648
      %v2019 = vxor.u32 %v1824, 2147483648
      %v2020 = vxor.u32 %v1828, 2147483648
      %v2021 = vxor.u32 %v1830, 2147483648
      %v2022 = vxor.u32 %v1832, 2147483648
      %v2023 = vxor.u32 %v1834, 2147483648
      %v2024 = vxor.u32 %v1838, 2147483648
      %v2025 = vxor.u32 %v1840, 2147483648
      %v2026 = vxor.u32 %v1842, 2147483648
      %v2027 = vxor.u32 %v1844, 2147483648
      %v2028 = vxor.u32 %v1848, 2147483648
      %v2029 = vxor.u32 %v1850, 2147483648
      %v2030 = vxor.u32 %v1852, 2147483648
      %v2031 = vxor.u32 %v1854, 2147483648
      %v2032 = vxor.u32 %v1858, 2147483648
      %v2033 = vxor.u32 %v1860, 2147483648
      %v2034 = vxor.u32 %v1862, 2147483648
      %v2035 = vxor.u32 %v1864, 2147483648
      %v2036 = vxor.u32 %v1868, 2147483648
      %v2037 = vxor.u32 %v1870, 2147483648
      %v2038 = vxor.u32 %v1872, 2147483648
      %v2039 = vxor.u32 %v1874, 2147483648
      %v2040 = vxor.u32 %v1878, 2147483648
      %v2041 = vxor.u32 %v1880, 2147483648
      %v2042 = vxor.u32 %v1882, 2147483648
      %v2043 = vxor.u32 %v1884, 2147483648
      %v2044 = vxor.u32 %v1888, 2147483648
      %v2045 = vxor.u32 %v1890, 2147483648
      %v2046 = vxor.u32 %v1892, 2147483648
      %v2047 = vxor.u32 %v1894, 2147483648
      %v2048 = vxor.u32 %v1898, 2147483648
      %v2049 = vxor.u32 %v1900, 2147483648
      %v2050 = vxor.u32 %v1902, 2147483648
      %v2051 = vxor.u32 %v1904, 2147483648
      %v2052 = vxor.u32 %v1908, 2147483648
      %v2053 = vxor.u32 %v1910, 2147483648
      %v2054 = vxor.u32 %v1912, 2147483648
      %v2055 = vxor.u32 %v1914, 2147483648
      %v2056 = vxor.u32 %v1918, 2147483648
      %v2057 = vxor.u32 %v1920, 2147483648
      %v2058 = vxor.u32 %v1922, 2147483648
      %v2059 = vxor.u32 %v1924, 2147483648
      %v2060 = vxor.u32 %v1928, 2147483648
      %v2061 = vxor.u32 %v1930, 2147483648
      %v2062 = vxor.u32 %v1932, 2147483648
      %v2063 = vxor.u32 %v1934, 2147483648
      %v2064 = vmul.f32 %v1936, 1.442695
      %v2065 = vpow.pop %v2064
      %v2066 = vmul.f32 %v1937, 1.442695
      %v2067 = vpow.pop %v2066
      %v2068 = vmul.f32 %v1938, 1.442695
      %v2069 = vpow.pop %v2068
      %v2070 = vmul.f32 %v1939, 1.442695
      %v2071 = vpow.pop %v2070
      %v2072 = vmul.f32 %v1940, 1.442695
      %v2073 = vpow.pop %v2072
      %v2074 = vmul.f32 %v1941, 1.442695
      %v2075 = vpow.pop %v2074
      %v2076 = vmul.f32 %v1942, 1.442695
      %v2077 = vpow.pop %v2076
      %v2078 = vmul.f32 %v1943, 1.442695
      %v2079 = vpow.pop %v2078
      %v2080 = vmul.f32 %v1944, 1.442695
      %v2081 = vpow.pop %v2080
      %v2082 = vmul.f32 %v1945, 1.442695
      %v2083 = vpow.pop %v2082
      %v2084 = vmul.f32 %v1946, 1.442695
      %v2085 = vpow.pop %v2084
      %v2086 = vmul.f32 %v1947, 1.442695
      %v2087 = vpow.pop %v2086
      %v2088 = vmul.f32 %v1948, 1.442695
      %v2089 = vpow.pop %v2088
      %v2090 = vmul.f32 %v1949, 1.442695
      %v2091 = vpow.pop %v2090
      %v2092 = vmul.f32 %v1950, 1.442695
      %v2093 = vpow.pop %v2092
      %v2094 = vmul.f32 %v1951, 1.442695
      %v2095 = vpow.pop %v2094
      %v2096 = vmul.f32 %v1952, 1.442695
      %v2097 = vpow.pop %v2096
      %v2098 = vmul.f32 %v1953, 1.442695
      %v2099 = vpow.pop %v2098
      %v2100 = vmul.f32 %v1954, 1.442695
      %v2101 = vpow.pop %v2100
      %v2102 = vmul.f32 %v1955, 1.442695
      %v2103 = vpow.pop %v2102
      %v2104 = vmul.f32 %v1956, 1.442695
      %v2105 = vpow.pop %v2104
      %v2106 = vmul.f32 %v1957, 1.442695
      %v2107 = vpow.pop %v2106
      %v2108 = vmul.f32 %v1958, 1.442695
      %v2109 = vpow.pop %v2108
      %v2110 = vmul.f32 %v1959, 1.442695
      %v2111 = vpow.pop %v2110
      %v2112 = vmul.f32 %v1960, 1.442695
      %v2113 = vpow.pop %v2112
      %v2114 = vmul.f32 %v1961, 1.442695
      %v2115 = vpow.pop %v2114
      %v2116 = vmul.f32 %v1962, 1.442695
      %v2117 = vpow.pop %v2116
      %v2118 = vmul.f32 %v1963, 1.442695
      %v2119 = vpow.pop %v2118
      %v2120 = vmul.f32 %v1964, 1.442695
      %v2121 = vpow.pop %v2120
      %v2122 = vmul.f32 %v1965, 1.442695
      %v2123 = vpow.pop %v2122
      %v2124 = vmul.f32 %v1966, 1.442695
      %v2125 = vpow.pop %v2124
      %v2126 = vmul.f32 %v1967, 1.442695
      %v2127 = vpow.pop %v2126
      %v2128 = vmul.f32 %v1968, 1.442695
      %v2129 = vpow.pop %v2128
      %v2130 = vmul.f32 %v1969, 1.442695
      %v2131 = vpow.pop %v2130
      %v2132 = vmul.f32 %v1970, 1.442695
      %v2133 = vpow.pop %v2132
      %v2134 = vmul.f32 %v1971, 1.442695
      %v2135 = vpow.pop %v2134
      %v2136 = vmul.f32 %v1972, 1.442695
      %v2137 = vpow.pop %v2136
      %v2138 = vmul.f32 %v1973, 1.442695
      %v2139 = vpow.pop %v2138
      %v2140 = vmul.f32 %v1974, 1.442695
      %v2141 = vpow.pop %v2140
      %v2142 = vmul.f32 %v1975, 1.442695
      %v2143 = vpow.pop %v2142
      %v2144 = vmul.f32 %v1976, 1.442695
      %v2145 = vpow.pop %v2144
      %v2146 = vmul.f32 %v1977, 1.442695
      %v2147 = vpow.pop %v2146
      %v2148 = vmul.f32 %v1978, 1.442695
      %v2149 = vpow.pop %v2148
      %v2150 = vmul.f32 %v1979, 1.442695
      %v2151 = vpow.pop %v2150
      %v2152 = vmul.f32 %v1980, 1.442695
      %v2153 = vpow.pop %v2152
      %v2154 = vmul.f32 %v1981, 1.442695
      %v2155 = vpow.pop %v2154
      %v2156 = vmul.f32 %v1982, 1.442695
      %v2157 = vpow.pop %v2156
      %v2158 = vmul.f32 %v1983, 1.442695
      %v2159 = vpow.pop %v2158
      %v2160 = vmul.f32 %v1984, 1.442695
      %v2161 = vpow.pop %v2160
      %v2162 = vmul.f32 %v1985, 1.442695
      %v2163 = vpow.pop %v2162
      %v2164 = vmul.f32 %v1986, 1.442695
      %v2165 = vpow.pop %v2164
      %v2166 = vmul.f32 %v1987, 1.442695
      %v2167 = vpow.pop %v2166
      %v2168 = vmul.f32 %v1988, 1.442695
      %v2169 = vpow.pop %v2168
      %v2170 = vmul.f32 %v1989, 1.442695
      %v2171 = vpow.pop %v2170
      %v2172 = vmul.f32 %v1990, 1.442695
      %v2173 = vpow.pop %v2172
      %v2174 = vmul.f32 %v1991, 1.442695
      %v2175 = vpow.pop %v2174
      %v2176 = vmul.f32 %v1992, 1.442695
      %v2177 = vpow.pop %v2176
      %v2178 = vmul.f32 %v1993, 1.442695
      %v2179 = vpow.pop %v2178
      %v2180 = vmul.f32 %v1994, 1.442695
      %v2181 = vpow.pop %v2180
      %v2182 = vmul.f32 %v1995, 1.442695
      %v2183 = vpow.pop %v2182
      %v2184 = vmul.f32 %v1996, 1.442695
      %v2185 = vpow.pop %v2184
      %v2186 = vmul.f32 %v1997, 1.442695
      %v2187 = vpow.pop %v2186
      %v2188 = vmul.f32 %v1998, 1.442695
      %v2189 = vpow.pop %v2188
      %v2190 = vmul.f32 %v1999, 1.442695
      %v2191 = vpow.pop %v2190
      %v2192 = vmul.f32 %v2000, 1.442695
      %v2193 = vpow.pop %v2192
      %v2194 = vmul.f32 %v2001, 1.442695
      %v2195 = vpow.pop %v2194
      %v2196 = vmul.f32 %v2002, 1.442695
      %v2197 = vpow.pop %v2196
      %v2198 = vmul.f32 %v2003, 1.442695
      %v2199 = vpow.pop %v2198
      %v2200 = vmul.f32 %v2004, 1.442695
      %v2201 = vpow.pop %v2200
      %v2202 = vmul.f32 %v2005, 1.442695
      %v2203 = vpow.pop %v2202
      %v2204 = vmul.f32 %v2006, 1.442695
      %v2205 = vpow.pop %v2204
      %v2206 = vmul.f32 %v2007, 1.442695
      %v2207 = vpow.pop %v2206
      %v2208 = vmul.f32 %v2008, 1.442695
      %v2209 = vpow.pop %v2208
      %v2210 = vmul.f32 %v2009, 1.442695
      %v2211 = vpow.pop %v2210
      %v2212 = vmul.f32 %v2010, 1.442695
      %v2213 = vpow.pop %v2212
      %v2214 = vmul.f32 %v2011, 1.442695
      %v2215 = vpow.pop %v2214
      %v2216 = vmul.f32 %v2012, 1.442695
      %v2217 = vpow.pop %v2216
      %v2218 = vmul.f32 %v2013, 1.442695
      %v2219 = vpow.pop %v2218
      %v2220 = vmul.f32 %v2014, 1.442695
      %v2221 = vpow.pop %v2220
      %v2222 = vmul.f32 %v2015, 1.442695
      %v2223 = vpow.pop %v2222
      %v2224 = vmul.f32 %v2016, 1.442695
      %v2225 = vpow.pop %v2224
      %v2226 = vmul.f32 %v2017, 1.442695
      %v2227 = vpow.pop %v2226
      %v2228 = vmul.f32 %v2018, 1.442695
      %v2229 = vpow.pop %v2228
      %v2230 = vmul.f32 %v2019, 1.442695
      %v2231 = vpow.pop %v2230
      %v2232 = vmul.f32 %v2020, 1.442695
      %v2233 = vpow.pop %v2232
      %v2234 = vmul.f32 %v2021, 1.442695
      %v2235 = vpow.pop %v2234
      %v2236 = vmul.f32 %v2022, 1.442695
      %v2237 = vpow.pop %v2236
      %v2238 = vmul.f32 %v2023, 1.442695
      %v2239 = vpow.pop %v2238
      %v2240 = vmul.f32 %v2024, 1.442695
      %v2241 = vpow.pop %v2240
      %v2242 = vmul.f32 %v2025, 1.442695
      %v2243 = vpow.pop %v2242
      %v2244 = vmul.f32 %v2026, 1.442695
      %v2245 = vpow.pop %v2244
      %v2246 = vmul.f32 %v2027, 1.442695
      %v2247 = vpow.pop %v2246
      %v2248 = vmul.f32 %v2028, 1.442695
      %v2249 = vpow.pop %v2248
      %v2250 = vmul.f32 %v2029, 1.442695
      %v2251 = vpow.pop %v2250
      %v2252 = vmul.f32 %v2030, 1.442695
      %v2253 = vpow.pop %v2252
      %v2254 = vmul.f32 %v2031, 1.442695
      %v2255 = vpow.pop %v2254
      %v2256 = vmul.f32 %v2032, 1.442695
      %v2257 = vpow.pop %v2256
      %v2258 = vmul.f32 %v2033, 1.442695
      %v2259 = vpow.pop %v2258
      %v2260 = vmul.f32 %v2034, 1.442695
      %v2261 = vpow.pop %v2260
      %v2262 = vmul.f32 %v2035, 1.442695
      %v2263 = vpow.pop %v2262
      %v2264 = vmul.f32 %v2036, 1.442695
      %v2265 = vpow.pop %v2264
      %v2266 = vmul.f32 %v2037, 1.442695
      %v2267 = vpow.pop %v2266
      %v2268 = vmul.f32 %v2038, 1.442695
      %v2269 = vpow.pop %v2268
      %v2270 = vmul.f32 %v2039, 1.442695
      %v2271 = vpow.pop %v2270
      %v2272 = vmul.f32 %v2040, 1.442695
      %v2273 = vpow.pop %v2272
      %v2274 = vmul.f32 %v2041, 1.442695
      %v2275 = vpow.pop %v2274
      %v2276 = vmul.f32 %v2042, 1.442695
      %v2277 = vpow.pop %v2276
      %v2278 = vmul.f32 %v2043, 1.442695
      %v2279 = vpow.pop %v2278
      %v2280 = vmul.f32 %v2044, 1.442695
      %v2281 = vpow.pop %v2280
      %v2282 = vmul.f32 %v2045, 1.442695
      %v2283 = vpow.pop %v2282
      %v2284 = vmul.f32 %v2046, 1.442695
      %v2285 = vpow.pop %v2284
      %v2286 = vmul.f32 %v2047, 1.442695
      %v2287 = vpow.pop %v2286
      %v2288 = vmul.f32 %v2048, 1.442695
      %v2289 = vpow.pop %v2288
      %v2290 = vmul.f32 %v2049, 1.442695
      %v2291 = vpow.pop %v2290
      %v2292 = vmul.f32 %v2050, 1.442695
      %v2293 = vpow.pop %v2292
      %v2294 = vmul.f32 %v2051, 1.442695
      %v2295 = vpow.pop %v2294
      %v2296 = vmul.f32 %v2052, 1.442695
      %v2297 = vpow.pop %v2296
      %v2298 = vmul.f32 %v2053, 1.442695
      %v2299 = vpow.pop %v2298
      %v2300 = vmul.f32 %v2054, 1.442695
      %v2301 = vpow.pop %v2300
      %v2302 = vmul.f32 %v2055, 1.442695
      %v2303 = vpow.pop %v2302
      %v2304 = vmul.f32 %v2056, 1.442695
      %v2305 = vpow.pop %v2304
      %v2306 = vmul.f32 %v2057, 1.442695
      %v2307 = vpow.pop %v2306
      %v2308 = vmul.f32 %v2058, 1.442695
      %v2309 = vpow.pop %v2308
      %v2310 = vmul.f32 %v2059, 1.442695
      %v2311 = vpow.pop %v2310
      %v2312 = vmul.f32 %v2060, 1.442695
      %v2313 = vpow.pop %v2312
      %v2314 = vmul.f32 %v2061, 1.442695
      %v2315 = vpow.pop %v2314
      %v2316 = vmul.f32 %v2062, 1.442695
      %v2317 = vpow.pop %v2316
      %v2318 = vmul.f32 %v2063, 1.442695
      %v2319 = vpow.pop %v2318
      %v2320 = vadd.f32 %v2065, 1.0
      %v2321 = vadd.f32 %v2067, 1.0
      %v2322 = vadd.f32 %v2069, 1.0
      %v2323 = vadd.f32 %v2071, 1.0
      %v2324 = vadd.f32 %v2073, 1.0
      %v2325 = vadd.f32 %v2075, 1.0
      %v2326 = vadd.f32 %v2077, 1.0
      %v2327 = vadd.f32 %v2079, 1.0
      %v2328 = vadd.f32 %v2081, 1.0
      %v2329 = vadd.f32 %v2083, 1.0
      %v2330 = vadd.f32 %v2085, 1.0
      %v2331 = vadd.f32 %v2087, 1.0
      %v2332 = vadd.f32 %v2089, 1.0
      %v2333 = vadd.f32 %v2091, 1.0
      %v2334 = vadd.f32 %v2093, 1.0
      %v2335 = vadd.f32 %v2095, 1.0
      %v2336 = vadd.f32 %v2097, 1.0
      %v2337 = vadd.f32 %v2099, 1.0
      %v2338 = vadd.f32 %v2101, 1.0
      %v2339 = vadd.f32 %v2103, 1.0
      %v2340 = vadd.f32 %v2105, 1.0
      %v2341 = vadd.f32 %v2107, 1.0
      %v2342 = vadd.f32 %v2109, 1.0
      %v2343 = vadd.f32 %v2111, 1.0
      %v2344 = vadd.f32 %v2113, 1.0
      %v2345 = vadd.f32 %v2115, 1.0
      %v2346 = vadd.f32 %v2117, 1.0
      %v2347 = vadd.f32 %v2119, 1.0
      %v2348 = vadd.f32 %v2121, 1.0
      %v2349 = vadd.f32 %v2123, 1.0
      %v2350 = vadd.f32 %v2125, 1.0
      %v2351 = vadd.f32 %v2127, 1.0
      %v2352 = vadd.f32 %v2129, 1.0
      %v2353 = vadd.f32 %v2131, 1.0
      %v2354 = vadd.f32 %v2133, 1.0
      %v2355 = vadd.f32 %v2135, 1.0
      %v2356 = vadd.f32 %v2137, 1.0
      %v2357 = vadd.f32 %v2139, 1.0
      %v2358 = vadd.f32 %v2141, 1.0
      %v2359 = vadd.f32 %v2143, 1.0
      %v2360 = vadd.f32 %v2145, 1.0
      %v2361 = vadd.f32 %v2147, 1.0
      %v2362 = vadd.f32 %v2149, 1.0
      %v2363 = vadd.f32 %v2151, 1.0
      %v2364 = vadd.f32 %v2153, 1.0
      %v2365 = vadd.f32 %v2155, 1.0
      %v2366 = vadd.f32 %v2157, 1.0
      %v2367 = vadd.f32 %v2159, 1.0
      %v2368 = vadd.f32 %v2161, 1.0
      %v2369 = vadd.f32 %v2163, 1.0
      %v2370 = vadd.f32 %v2165, 1.0
      %v2371 = vadd.f32 %v2167, 1.0
      %v2372 = vadd.f32 %v2169, 1.0
      %v2373 = vadd.f32 %v2171, 1.0
      %v2374 = vadd.f32 %v2173, 1.0
      %v2375 = vadd.f32 %v2175, 1.0
      %v2376 = vadd.f32 %v2177, 1.0
      %v2377 = vadd.f32 %v2179, 1.0
      %v2378 = vadd.f32 %v2181, 1.0
      %v2379 = vadd.f32 %v2183, 1.0
      %v2380 = vadd.f32 %v2185, 1.0
      %v2381 = vadd.f32 %v2187, 1.0
      %v2382 = vadd.f32 %v2189, 1.0
      %v2383 = vadd.f32 %v2191, 1.0
      %v2384 = vadd.f32 %v2193, 1.0
      %v2385 = vadd.f32 %v2195, 1.0
      %v2386 = vadd.f32 %v2197, 1.0
      %v2387 = vadd.f32 %v2199, 1.0
      %v2388 = vadd.f32 %v2201, 1.0
      %v2389 = vadd.f32 %v2203, 1.0
      %v2390 = vadd.f32 %v2205, 1.0
      %v2391 = vadd.f32 %v2207, 1.0
      %v2392 = vadd.f32 %v2209, 1.0
      %v2393 = vadd.f32 %v2211, 1.0
      %v2394 = vadd.f32 %v2213, 1.0
      %v2395 = vadd.f32 %v2215, 1.0
      %v2396 = vadd.f32 %v2217, 1.0
      %v2397 = vadd.f32 %v2219, 1.0
      %v2398 = vadd.f32 %v2221, 1.0
      %v2399 = vadd.f32 %v2223, 1.0
      %v2400 = vadd.f32 %v2225, 1.0
      %v2401 = vadd.f32 %v2227, 1.0
      %v2402 = vadd.f32 %v2229, 1.0
      %v2403 = vadd.f32 %v2231, 1.0
      %v2404 = vadd.f32 %v2233, 1.0
      %v2405 = vadd.f32 %v2235, 1.0
      %v2406 = vadd.f32 %v2237, 1.0
      %v2407 = vadd.f32 %v2239, 1.0
      %v2408 = vadd.f32 %v2241, 1.0
      %v2409 = vadd.f32 %v2243, 1.0
      %v2410 = vadd.f32 %v2245, 1.0
      %v2411 = vadd.f32 %v2247, 1.0
      %v2412 = vadd.f32 %v2249, 1.0
      %v2413 = vadd.f32 %v2251, 1.0
      %v2414 = vadd.f32 %v2253, 1.0
      %v2415 = vadd.f32 %v2255, 1.0
      %v2416 = vadd.f32 %v2257, 1.0
      %v2417 = vadd.f32 %v2259, 1.0
      %v2418 = vadd.f32 %v2261, 1.0
      %v2419 = vadd.f32 %v2263, 1.0
      %v2420 = vadd.f32 %v2265, 1.0
      %v2421 = vadd.f32 %v2267, 1.0
      %v2422 = vadd.f32 %v2269, 1.0
      %v2423 = vadd.f32 %v2271, 1.0
      %v2424 = vadd.f32 %v2273, 1.0
      %v2425 = vadd.f32 %v2275, 1.0
      %v2426 = vadd.f32 %v2277, 1.0
      %v2427 = vadd.f32 %v2279, 1.0
      %v2428 = vadd.f32 %v2281, 1.0
      %v2429 = vadd.f32 %v2283, 1.0
      %v2430 = vadd.f32 %v2285, 1.0
      %v2431 = vadd.f32 %v2287, 1.0
      %v2432 = vadd.f32 %v2289, 1.0
      %v2433 = vadd.f32 %v2291, 1.0
      %v2434 = vadd.f32 %v2293, 1.0
      %v2435 = vadd.f32 %v2295, 1.0
      %v2436 = vadd.f32 %v2297, 1.0
      %v2437 = vadd.f32 %v2299, 1.0
      %v2438 = vadd.f32 %v2301, 1.0
      %v2439 = vadd.f32 %v2303, 1.0
      %v2440 = vadd.f32 %v2305, 1.0
      %v2441 = vadd.f32 %v2307, 1.0
      %v2442 = vadd.f32 %v2309, 1.0
      %v2443 = vadd.f32 %v2311, 1.0
      %v2444 = vadd.f32 %v2313, 1.0
      %v2445 = vadd.f32 %v2315, 1.0
      %v2446 = vadd.f32 %v2317, 1.0
      %v2447 = vadd.f32 %v2319, 1.0
      %v2448 = vrcp.pop %v2320
      %v2449 = vmul.f32 1.0, %v2448
      %v2450 = vrcp.pop %v2321
      %v2451 = vmul.f32 1.0, %v2450
      %v2452 = vrcp.pop %v2322
      %v2453 = vmul.f32 1.0, %v2452
      %v2454 = vrcp.pop %v2323
      %v2455 = vmul.f32 1.0, %v2454
      %v2456 = vrcp.pop %v2324
      %v2457 = vmul.f32 1.0, %v2456
      %v2458 = vrcp.pop %v2325
      %v2459 = vmul.f32 1.0, %v2458
      %v2460 = vrcp.pop %v2326
      %v2461 = vmul.f32 1.0, %v2460
      %v2462 = vrcp.pop %v2327
      %v2463 = vmul.f32 1.0, %v2462
      %v2464 = vrcp.pop %v2328
      %v2465 = vmul.f32 1.0, %v2464
      %v2466 = vrcp.pop %v2329
      %v2467 = vmul.f32 1.0, %v2466
      %v2468 = vrcp.pop %v2330
      %v2469 = vmul.f32 1.0, %v2468
      %v2470 = vrcp.pop %v2331
      %v2471 = vmul.f32 1.0, %v2470
      %v2472 = vrcp.pop %v2332
      %v2473 = vmul.f32 1.0, %v2472
      %v2474 = vrcp.pop %v2333
      %v2475 = vmul.f32 1.0, %v2474
      %v2476 = vrcp.pop %v2334
      %v2477 = vmul.f32 1.0, %v2476
      %v2478 = vrcp.pop %v2335
      %v2479 = vmul.f32 1.0, %v2478
      %v2480 = vrcp.pop %v2336
      %v2481 = vmul.f32 1.0, %v2480
      %v2482 = vrcp.pop %v2337
      %v2483 = vmul.f32 1.0, %v2482
      %v2484 = vrcp.pop %v2338
      %v2485 = vmul.f32 1.0, %v2484
      %v2486 = vrcp.pop %v2339
      %v2487 = vmul.f32 1.0, %v2486
      %v2488 = vrcp.pop %v2340
      %v2489 = vmul.f32 1.0, %v2488
      %v2490 = vrcp.pop %v2341
      %v2491 = vmul.f32 1.0, %v2490
      %v2492 = vrcp.pop %v2342
      %v2493 = vmul.f32 1.0, %v2492
      %v2494 = vrcp.pop %v2343
      %v2495 = vmul.f32 1.0, %v2494
      %v2496 = vrcp.pop %v2344
      %v2497 = vmul.f32 1.0, %v2496
      %v2498 = vrcp.pop %v2345
      %v2499 = vmul.f32 1.0, %v2498
      %v2500 = vrcp.pop %v2346
      %v2501 = vmul.f32 1.0, %v2500
      %v2502 = vrcp.pop %v2347
      %v2503 = vmul.f32 1.0, %v2502
      %v2504 = vrcp.pop %v2348
      %v2505 = vmul.f32 1.0, %v2504
      %v2506 = vrcp.pop %v2349
      %v2507 = vmul.f32 1.0, %v2506
      %v2508 = vrcp.pop %v2350
      %v2509 = vmul.f32 1.0, %v2508
      %v2510 = vrcp.pop %v2351
      %v2511 = vmul.f32 1.0, %v2510
      %v2512 = vrcp.pop %v2352
      %v2513 = vmul.f32 1.0, %v2512
      %v2514 = vrcp.pop %v2353
      %v2515 = vmul.f32 1.0, %v2514
      %v2516 = vrcp.pop %v2354
      %v2517 = vmul.f32 1.0, %v2516
      %v2518 = vrcp.pop %v2355
      %v2519 = vmul.f32 1.0, %v2518
      %v2520 = vrcp.pop %v2356
      %v2521 = vmul.f32 1.0, %v2520
      %v2522 = vrcp.pop %v2357
      %v2523 = vmul.f32 1.0, %v2522
      %v2524 = vrcp.pop %v2358
      %v2525 = vmul.f32 1.0, %v2524
      %v2526 = vrcp.pop %v2359
      %v2527 = vmul.f32 1.0, %v2526
      %v2528 = vrcp.pop %v2360
      %v2529 = vmul.f32 1.0, %v2528
      %v2530 = vrcp.pop %v2361
      %v2531 = vmul.f32 1.0, %v2530
      %v2532 = vrcp.pop %v2362
      %v2533 = vmul.f32 1.0, %v2532
      %v2534 = vrcp.pop %v2363
      %v2535 = vmul.f32 1.0, %v2534
      %v2536 = vrcp.pop %v2364
      %v2537 = vmul.f32 1.0, %v2536
      %v2538 = vrcp.pop %v2365
      %v2539 = vmul.f32 1.0, %v2538
      %v2540 = vrcp.pop %v2366
      %v2541 = vmul.f32 1.0, %v2540
      %v2542 = vrcp.pop %v2367
      %v2543 = vmul.f32 1.0, %v2542
      %v2544 = vrcp.pop %v2368
      %v2545 = vmul.f32 1.0, %v2544
      %v2546 = vrcp.pop %v2369
      %v2547 = vmul.f32 1.0, %v2546
      %v2548 = vrcp.pop %v2370
      %v2549 = vmul.f32 1.0, %v2548
      %v2550 = vrcp.pop %v2371
      %v2551 = vmul.f32 1.0, %v2550
      %v2552 = vrcp.pop %v2372
      %v2553 = vmul.f32 1.0, %v2552
      %v2554 = vrcp.pop %v2373
      %v2555 = vmul.f32 1.0, %v2554
      %v2556 = vrcp.pop %v2374
      %v2557 = vmul.f32 1.0, %v2556
      %v2558 = vrcp.pop %v2375
      %v2559 = vmul.f32 1.0, %v2558
      %v2560 = vrcp.pop %v2376
      %v2561 = vmul.f32 1.0, %v2560
      %v2562 = vrcp.pop %v2377
      %v2563 = vmul.f32 1.0, %v2562
      %v2564 = vrcp.pop %v2378
      %v2565 = vmul.f32 1.0, %v2564
      %v2566 = vrcp.pop %v2379
      %v2567 = vmul.f32 1.0, %v2566
      %v2568 = vrcp.pop %v2380
      %v2569 = vmul.f32 1.0, %v2568
      %v2570 = vrcp.pop %v2381
      %v2571 = vmul.f32 1.0, %v2570
      %v2572 = vrcp.pop %v2382
      %v2573 = vmul.f32 1.0, %v2572
      %v2574 = vrcp.pop %v2383
      %v2575 = vmul.f32 1.0, %v2574
      %v2576 = vrcp.pop %v2384
      %v2577 = vmul.f32 1.0, %v2576
      %v2578 = vrcp.pop %v2385
      %v2579 = vmul.f32 1.0, %v2578
      %v2580 = vrcp.pop %v2386
      %v2581 = vmul.f32 1.0, %v2580
      %v2582 = vrcp.pop %v2387
      %v2583 = vmul.f32 1.0, %v2582
      %v2584 = vrcp.pop %v2388
      %v2585 = vmul.f32 1.0, %v2584
      %v2586 = vrcp.pop %v2389
      %v2587 = vmul.f32 1.0, %v2586
      %v2588 = vrcp.pop %v2390
      %v2589 = vmul.f32 1.0, %v2588
      %v2590 = vrcp.pop %v2391
      %v2591 = vmul.f32 1.0, %v2590
      %v2592 = vrcp.pop %v2392
      %v2593 = vmul.f32 1.0, %v2592
      %v2594 = vrcp.pop %v2393
      %v2595 = vmul.f32 1.0, %v2594
      %v2596 = vrcp.pop %v2394
      %v2597 = vmul.f32 1.0, %v2596
      %v2598 = vrcp.pop %v2395
      %v2599 = vmul.f32 1.0, %v2598
      %v2600 = vrcp.pop %v2396
      %v2601 = vmul.f32 1.0, %v2600
      %v2602 = vrcp.pop %v2397
      %v2603 = vmul.f32 1.0, %v2602
      %v2604 = vrcp.pop %v2398
      %v2605 = vmul.f32 1.0, %v2604
      %v2606 = vrcp.pop %v2399
      %v2607 = vmul.f32 1.0, %v2606
      %v2608 = vrcp.pop %v2400
      %v2609 = vmul.f32 1.0, %v2608
      %v2610 = vrcp.pop %v2401
      %v2611 = vmul.f32 1.0, %v2610
      %v2612 = vrcp.pop %v2402
      %v2613 = vmul.f32 1.0, %v2612
      %v2614 = vrcp.pop %v2403
      %v2615 = vmul.f32 1.0, %v2614
      %v2616 = vrcp.pop %v2404
      %v2617 = vmul.f32 1.0, %v2616
      %v2618 = vrcp.pop %v2405
      %v2619 = vmul.f32 1.0, %v2618
      %v2620 = vrcp.pop %v2406
      %v2621 = vmul.f32 1.0, %v2620
      %v2622 = vrcp.pop %v2407
      %v2623 = vmul.f32 1.0, %v2622
      %v2624 = vrcp.pop %v2408
      %v2625 = vmul.f32 1.0, %v2624
      %v2626 = vrcp.pop %v2409
      %v2627 = vmul.f32 1.0, %v2626
      %v2628 = vrcp.pop %v2410
      %v2629 = vmul.f32 1.0, %v2628
      %v2630 = vrcp.pop %v2411
      %v2631 = vmul.f32 1.0, %v2630
      %v2632 = vrcp.pop %v2412
      %v2633 = vmul.f32 1.0, %v2632
      %v2634 = vrcp.pop %v2413
      %v2635 = vmul.f32 1.0, %v2634
      %v2636 = vrcp.pop %v2414
      %v2637 = vmul.f32 1.0, %v2636
      %v2638 = vrcp.pop %v2415
      %v2639 = vmul.f32 1.0, %v2638
      %v2640 = vrcp.pop %v2416
      %v2641 = vmul.f32 1.0, %v2640
      %v2642 = vrcp.pop %v2417
      %v2643 = vmul.f32 1.0, %v2642
      %v2644 = vrcp.pop %v2418
      %v2645 = vmul.f32 1.0, %v2644
      %v2646 = vrcp.pop %v2419
      %v2647 = vmul.f32 1.0, %v2646
      %v2648 = vrcp.pop %v2420
      %v2649 = vmul.f32 1.0, %v2648
      %v2650 = vrcp.pop %v2421
      %v2651 = vmul.f32 1.0, %v2650
      %v2652 = vrcp.pop %v2422
      %v2653 = vmul.f32 1.0, %v2652
      %v2654 = vrcp.pop %v2423
      %v2655 = vmul.f32 1.0, %v2654
      %v2656 = vrcp.pop %v2424
      %v2657 = vmul.f32 1.0, %v2656
      %v2658 = vrcp.pop %v2425
      %v2659 = vmul.f32 1.0, %v2658
      %v2660 = vrcp.pop %v2426
      %v2661 = vmul.f32 1.0, %v2660
      %v2662 = vrcp.pop %v2427
      %v2663 = vmul.f32 1.0, %v2662
      %v2664 = vrcp.pop %v2428
      %v2665 = vmul.f32 1.0, %v2664
      %v2666 = vrcp.pop %v2429
      %v2667 = vmul.f32 1.0, %v2666
      %v2668 = vrcp.pop %v2430
      %v2669 = vmul.f32 1.0, %v2668
      %v2670 = vrcp.pop %v2431
      %v2671 = vmul.f32 1.0, %v2670
      %v2672 = vrcp.pop %v2432
      %v2673 = vmul.f32 1.0, %v2672
      %v2674 = vrcp.pop %v2433
      %v2675 = vmul.f32 1.0, %v2674
      %v2676 = vrcp.pop %v2434
      %v2677 = vmul.f32 1.0, %v2676
      %v2678 = vrcp.pop %v2435
      %v2679 = vmul.f32 1.0, %v2678
      %v2680 = vrcp.pop %v2436
      %v2681 = vmul.f32 1.0, %v2680
      %v2682 = vrcp.pop %v2437
      %v2683 = vmul.f32 1.0, %v2682
      %v2684 = vrcp.pop %v2438
      %v2685 = vmul.f32 1.0, %v2684
      %v2686 = vrcp.pop %v2439
      %v2687 = vmul.f32 1.0, %v2686
      %v2688 = vrcp.pop %v2440
      %v2689 = vmul.f32 1.0, %v2688
      %v2690 = vrcp.pop %v2441
      %v2691 = vmul.f32 1.0, %v2690
      %v2692 = vrcp.pop %v2442
      %v2693 = vmul.f32 1.0, %v2692
      %v2694 = vrcp.pop %v2443
      %v2695 = vmul.f32 1.0, %v2694
      %v2696 = vrcp.pop %v2444
      %v2697 = vmul.f32 1.0, %v2696
      %v2698 = vrcp.pop %v2445
      %v2699 = vmul.f32 1.0, %v2698
      %v2700 = vrcp.pop %v2446
      %v2701 = vmul.f32 1.0, %v2700
      %v2702 = vrcp.pop %v2447
      %v2703 = vmul.f32 1.0, %v2702
      %v2704 = vpack.c.bf16 %v2453, %v2449
      %v2705 = vpack.c.bf16 %v2455, %v2451
      %v2706 = vpack.c.bf16 %v2461, %v2457
      %v2707 = vpack.c.bf16 %v2463, %v2459
      %v2708 = vpack.c.bf16 %v2469, %v2465
      %v2709 = vpack.c.bf16 %v2471, %v2467
      %v2710 = vpack.c.bf16 %v2477, %v2473
      %v2711 = vpack.c.bf16 %v2479, %v2475
      %v2712 = vpack.c.bf16 %v2485, %v2481
      %v2713 = vpack.c.bf16 %v2487, %v2483
      %v2714 = vpack.c.bf16 %v2493, %v2489
      %v2715 = vpack.c.bf16 %v2495, %v2491
      %v2716 = vpack.c.bf16 %v2501, %v2497
      %v2717 = vpack.c.bf16 %v2503, %v2499
      %v2718 = vpack.c.bf16 %v2509, %v2505
      %v2719 = vpack.c.bf16 %v2511, %v2507
      %v2720 = vpack.c.bf16 %v2517, %v2513
      %v2721 = vpack.c.bf16 %v2519, %v2515
      %v2722 = vpack.c.bf16 %v2525, %v2521
      %v2723 = vpack.c.bf16 %v2527, %v2523
      %v2724 = vpack.c.bf16 %v2533, %v2529
      %v2725 = vpack.c.bf16 %v2535, %v2531
      %v2726 = vpack.c.bf16 %v2541, %v2537
      %v2727 = vpack.c.bf16 %v2543, %v2539
      %v2728 = vpack.c.bf16 %v2549, %v2545
      %v2729 = vpack.c.bf16 %v2551, %v2547
      %v2730 = vpack.c.bf16 %v2557, %v2553
      %v2731 = vpack.c.bf16 %v2559, %v2555
      %v2732 = vpack.c.bf16 %v2565, %v2561
      %v2733 = vpack.c.bf16 %v2567, %v2563
      %v2734 = vpack.c.bf16 %v2573, %v2569
      %v2735 = vpack.c.bf16 %v2575, %v2571
      %v2736 = vpack.c.bf16 %v2581, %v2577
      %v2737 = vpack.c.bf16 %v2583, %v2579
      %v2738 = vpack.c.bf16 %v2589, %v2585
      %v2739 = vpack.c.bf16 %v2591, %v2587
      %v2740 = vpack.c.bf16 %v2597, %v2593
      %v2741 = vpack.c.bf16 %v2599, %v2595
      %v2742 = vpack.c.bf16 %v2605, %v2601
      %v2743 = vpack.c.bf16 %v2607, %v2603
      %v2744 = vpack.c.bf16 %v2613, %v2609
      %v2745 = vpack.c.bf16 %v2615, %v2611
      %v2746 = vpack.c.bf16 %v2621, %v2617
      %v2747 = vpack.c.bf16 %v2623, %v2619
      %v2748 = vpack.c.bf16 %v2629, %v2625
      %v2749 = vpack.c.bf16 %v2631, %v2627
      %v2750 = vpack.c.bf16 %v2637, %v2633
      %v2751 = vpack.c.bf16 %v2639, %v2635
      %v2752 = vpack.c.bf16 %v2645, %v2641
      %v2753 = vpack.c.bf16 %v2647, %v2643
      %v2754 = vpack.c.bf16 %v2653, %v2649
      %v2755 = vpack.c.bf16 %v2655, %v2651
      %v2756 = vpack.c.bf16 %v2661, %v2657
      %v2757 = vpack.c.bf16 %v2663, %v2659
      %v2758 = vpack.c.bf16 %v2669, %v2665
      %v2759 = vpack.c.bf16 %v2671, %v2667
      %v2760 = vpack.c.bf16 %v2677, %v2673
      %v2761 = vpack.c.bf16 %v2679, %v2675
      %v2762 = vpack.c.bf16 %v2685, %v2681
      %v2763 = vpack.c.bf16 %v2687, %v2683
      %v2764 = vpack.c.bf16 %v2693, %v2689
      %v2765 = vpack.c.bf16 %v2695, %v2691
      %v2766 = vpack.c.bf16 %v2701, %v2697
      %v2767 = vpack.c.bf16 %v2703, %v2699
      %v2832 = vunpack.c.l.b16 %v2704
      %v2833 = vunpack.c.l.b16 %v2705
      %v2834 = vunpack.c.h.b16 %v2704
      %v2835 = vunpack.c.h.b16 %v2705
      %v2836 = vunpack.c.l.b16 %v2706
      %v2837 = vunpack.c.l.b16 %v2707
      %v2838 = vunpack.c.h.b16 %v2706
      %v2839 = vunpack.c.h.b16 %v2707
      %v2840 = vunpack.c.l.b16 %v2708
      %v2841 = vunpack.c.l.b16 %v2709
      %v2842 = vunpack.c.h.b16 %v2708
      %v2843 = vunpack.c.h.b16 %v2709
      %v2844 = vunpack.c.l.b16 %v2710
      %v2845 = vunpack.c.l.b16 %v2711
      %v2846 = vunpack.c.h.b16 %v2710
      %v2847 = vunpack.c.h.b16 %v2711
      %v2848 = vunpack.c.l.b16 %v2712
      %v2849 = vunpack.c.l.b16 %v2713
      %v2850 = vunpack.c.h.b16 %v2712
      %v2851 = vunpack.c.h.b16 %v2713
      %v2852 = vunpack.c.l.b16 %v2714
      %v2853 = vunpack.c.l.b16 %v2715
      %v2854 = vunpack.c.h.b16 %v2714
      %v2855 = vunpack.c.h.b16 %v2715
      %v2856 = vunpack.c.l.b16 %v2716
      %v2857 = vunpack.c.l.b16 %v2717
      %v2858 = vunpack.c.h.b16 %v2716
      %v2859 = vunpack.c.h.b16 %v2717
      %v2860 = vunpack.c.l.b16 %v2718
      %v2861 = vunpack.c.l.b16 %v2719
      %v2862 = vunpack.c.h.b16 %v2718
      %v2863 = vunpack.c.h.b16 %v2719
      %v2864 = vunpack.c.l.b16 %v2720
      %v2865 = vunpack.c.l.b16 %v2721
      %v2866 = vunpack.c.h.b16 %v2720
      %v2867 = vunpack.c.h.b16 %v2721
      %v2868 = vunpack.c.l.b16 %v2722
      %v2869 = vunpack.c.l.b16 %v2723
      %v2870 = vunpack.c.h.b16 %v2722
      %v2871 = vunpack.c.h.b16 %v2723
      %v2872 = vunpack.c.l.b16 %v2724
      %v2873 = vunpack.c.l.b16 %v2725
      %v2874 = vunpack.c.h.b16 %v2724
      %v2875 = vunpack.c.h.b16 %v2725
      %v2876 = vunpack.c.l.b16 %v2726
      %v2877 = vunpack.c.l.b16 %v2727
      %v2878 = vunpack.c.h.b16 %v2726
      %v2879 = vunpack.c.h.b16 %v2727
      %v2880 = vunpack.c.l.b16 %v2728
      %v2881 = vunpack.c.l.b16 %v2729
      %v2882 = vunpack.c.h.b16 %v2728
      %v2883 = vunpack.c.h.b16 %v2729
      %v2884 = vunpack.c.l.b16 %v2730
      %v2885 = vunpack.c.l.b16 %v2731
      %v2886 = vunpack.c.h.b16 %v2730
      %v2887 = vunpack.c.h.b16 %v2731
      %v2888 = vunpack.c.l.b16 %v2732
      %v2889 = vunpack.c.l.b16 %v2733
      %v2890 = vunpack.c.h.b16 %v2732
      %v2891 = vunpack.c.h.b16 %v2733
      %v2892 = vunpack.c.l.b16 %v2734
      %v2893 = vunpack.c.l.b16 %v2735
      %v2894 = vunpack.c.h.b16 %v2734
      %v2895 = vunpack.c.h.b16 %v2735
      %v2896 = vunpack.c.l.b16 %v2736
      %v2897 = vunpack.c.l.b16 %v2737
      %v2898 = vunpack.c.h.b16 %v2736
      %v2899 = vunpack.c.h.b16 %v2737
      %v2900 = vunpack.c.l.b16 %v2738
      %v2901 = vunpack.c.l.b16 %v2739
      %v2902 = vunpack.c.h.b16 %v2738
      %v2903 = vunpack.c.h.b16 %v2739
      %v2904 = vunpack.c.l.b16 %v2740
      %v2905 = vunpack.c.l.b16 %v2741
      %v2906 = vunpack.c.h.b16 %v2740
      %v2907 = vunpack.c.h.b16 %v2741
      %v2908 = vunpack.c.l.b16 %v2742
      %v2909 = vunpack.c.l.b16 %v2743
      %v2910 = vunpack.c.h.b16 %v2742
      %v2911 = vunpack.c.h.b16 %v2743
      %v2912 = vunpack.c.l.b16 %v2744
      %v2913 = vunpack.c.l.b16 %v2745
      %v2914 = vunpack.c.h.b16 %v2744
      %v2915 = vunpack.c.h.b16 %v2745
      %v2916 = vunpack.c.l.b16 %v2746
      %v2917 = vunpack.c.l.b16 %v2747
      %v2918 = vunpack.c.h.b16 %v2746
      %v2919 = vunpack.c.h.b16 %v2747
      %v2920 = vunpack.c.l.b16 %v2748
      %v2921 = vunpack.c.l.b16 %v2749
      %v2922 = vunpack.c.h.b16 %v2748
      %v2923 = vunpack.c.h.b16 %v2749
      %v2924 = vunpack.c.l.b16 %v2750
      %v2925 = vunpack.c.l.b16 %v2751
      %v2926 = vunpack.c.h.b16 %v2750
      %v2927 = vunpack.c.h.b16 %v2751
      %v2928 = vunpack.c.l.b16 %v2752
      %v2929 = vunpack.c.l.b16 %v2753
      %v2930 = vunpack.c.h.b16 %v2752
      %v2931 = vunpack.c.h.b16 %v2753
      %v2932 = vunpack.c.l.b16 %v2754
      %v2933 = vunpack.c.l.b16 %v2755
      %v2934 = vunpack.c.h.b16 %v2754
      %v2935 = vunpack.c.h.b16 %v2755
      %v2936 = vunpack.c.l.b16 %v2756
      %v2937 = vunpack.c.l.b16 %v2757
      %v2938 = vunpack.c.h.b16 %v2756
      %v2939 = vunpack.c.h.b16 %v2757
      %v2940 = vunpack.c.l.b16 %v2758
      %v2941 = vunpack.c.l.b16 %v2759
      %v2942 = vunpack.c.h.b16 %v2758
      %v2943 = vunpack.c.h.b16 %v2759
      %v2944 = vunpack.c.l.b16 %v2760
      %v2945 = vunpack.c.l.b16 %v2761
      %v2946 = vunpack.c.h.b16 %v2760
      %v2947 = vunpack.c.h.b16 %v2761
      %v2948 = vunpack.c.l.b16 %v2762
      %v2949 = vunpack.c.l.b16 %v2763
      %v2950 = vunpack.c.h.b16 %v2762
      %v2951 = vunpack.c.h.b16 %v2763
      %v2952 = vunpack.c.l.b16 %v2764
      %v2953 = vunpack.c.l.b16 %v2765
      %v2954 = vunpack.c.h.b16 %v2764
      %v2955 = vunpack.c.h.b16 %v2765
      %v2956 = vunpack.c.l.b16 %v2766
      %v2957 = vunpack.c.l.b16 %v2767
      %v2958 = vunpack.c.h.b16 %v2766
      %v2959 = vunpack.c.h.b16 %v2767
      %v2960 = vpack.c.b16 %v2833, %v2832
      %v2961 = vpack.c.b16 %v2835, %v2834
      %v2962 = vpack.c.b16 %v2837, %v2836
      %v2963 = vpack.c.b16 %v2839, %v2838
      %v2964 = vpack.c.b16 %v2841, %v2840
      %v2965 = vpack.c.b16 %v2843, %v2842
      %v2966 = vpack.c.b16 %v2845, %v2844
      %v2967 = vpack.c.b16 %v2847, %v2846
      %v2968 = vpack.c.b16 %v2849, %v2848
      %v2969 = vpack.c.b16 %v2851, %v2850
      %v2970 = vpack.c.b16 %v2853, %v2852
      %v2971 = vpack.c.b16 %v2855, %v2854
      %v2972 = vpack.c.b16 %v2857, %v2856
      %v2973 = vpack.c.b16 %v2859, %v2858
      %v2974 = vpack.c.b16 %v2861, %v2860
      %v2975 = vpack.c.b16 %v2863, %v2862
      %v2976 = vpack.c.b16 %v2865, %v2864
      %v2977 = vpack.c.b16 %v2867, %v2866
      %v2978 = vpack.c.b16 %v2869, %v2868
      %v2979 = vpack.c.b16 %v2871, %v2870
      %v2980 = vpack.c.b16 %v2873, %v2872
      %v2981 = vpack.c.b16 %v2875, %v2874
      %v2982 = vpack.c.b16 %v2877, %v2876
      %v2983 = vpack.c.b16 %v2879, %v2878
      %v2984 = vpack.c.b16 %v2881, %v2880
      %v2985 = vpack.c.b16 %v2883, %v2882
      %v2986 = vpack.c.b16 %v2885, %v2884
      %v2987 = vpack.c.b16 %v2887, %v2886
      %v2988 = vpack.c.b16 %v2889, %v2888
      %v2989 = vpack.c.b16 %v2891, %v2890
      %v2990 = vpack.c.b16 %v2893, %v2892
      %v2991 = vpack.c.b16 %v2895, %v2894
      %v2992 = vpack.c.b16 %v2897, %v2896
      %v2993 = vpack.c.b16 %v2899, %v2898
      %v2994 = vpack.c.b16 %v2901, %v2900
      %v2995 = vpack.c.b16 %v2903, %v2902
      %v2996 = vpack.c.b16 %v2905, %v2904
      %v2997 = vpack.c.b16 %v2907, %v2906
      %v2998 = vpack.c.b16 %v2909, %v2908
      %v2999 = vpack.c.b16 %v2911, %v2910
      %v3000 = vpack.c.b16 %v2913, %v2912
      %v3001 = vpack.c.b16 %v2915, %v2914
      %v3002 = vpack.c.b16 %v2917, %v2916
      %v3003 = vpack.c.b16 %v2919, %v2918
      %v3004 = vpack.c.b16 %v2921, %v2920
      %v3005 = vpack.c.b16 %v2923, %v2922
      %v3006 = vpack.c.b16 %v2925, %v2924
      %v3007 = vpack.c.b16 %v2927, %v2926
      %v3008 = vpack.c.b16 %v2929, %v2928
      %v3009 = vpack.c.b16 %v2931, %v2930
      %v3010 = vpack.c.b16 %v2933, %v2932
      %v3011 = vpack.c.b16 %v2935, %v2934
      %v3012 = vpack.c.b16 %v2937, %v2936
      %v3013 = vpack.c.b16 %v2939, %v2938
      %v3014 = vpack.c.b16 %v2941, %v2940
      %v3015 = vpack.c.b16 %v2943, %v2942
      %v3016 = vpack.c.b16 %v2945, %v2944
      %v3017 = vpack.c.b16 %v2947, %v2946
      %v3018 = vpack.c.b16 %v2949, %v2948
      %v3019 = vpack.c.b16 %v2951, %v2950
      %v3020 = vpack.c.b16 %v2953, %v2952
      %v3021 = vpack.c.b16 %v2955, %v2954
      %v3022 = vpack.c.b16 %v2957, %v2956
      %v3023 = vpack.c.b16 %v2959, %v2958
      %3088 = vst [vmem:[#allocation2] sm:$0xff] %v2960
      %3089 = vst [vmem:[#allocation2 + $0x8] sm:$0xff] %v2961
      %3090 = vst [vmem:[#allocation2 + $0x10] sm:$0xff] %v2962
      %3091 = vst [vmem:[#allocation2 + $0x18] sm:$0xff] %v2963
      %3092 = vst [vmem:[#allocation2 + $0x20] sm:$0xff] %v2964
      %3093 = vst [vmem:[#allocation2 + $0x28] sm:$0xff] %v2965
      %3094 = vst [vmem:[#allocation2 + $0x30] sm:$0xff] %v2966
      %3095 = vst [vmem:[#allocation2 + $0x38] sm:$0xff] %v2967
      %3096 = vst [vmem:[#allocation2 + $0x40] sm:$0xff] %v2968
      %3097 = vst [vmem:[#allocation2 + $0x48] sm:$0xff] %v2969
      %3098 = vst [vmem:[#allocation2 + $0x50] sm:$0xff] %v2970
      %3099 = vst [vmem:[#allocation2 + $0x58] sm:$0xff] %v2971
      %3100 = vst [vmem:[#allocation2 + $0x60] sm:$0xff] %v2972
      %3101 = vst [vmem:[#allocation2 + $0x68] sm:$0xff] %v2973
      %3102 = vst [vmem:[#allocation2 + $0x70] sm:$0xff] %v2974
      %3103 = vst [vmem:[#allocation2 + $0x78] sm:$0xff] %v2975
      %3104 = vst [vmem:[#allocation2 + $0x80] sm:$0xff] %v2976
      %3105 = vst [vmem:[#allocation2 + $0x88] sm:$0xff] %v2977
      %3106 = vst [vmem:[#allocation2 + $0x90] sm:$0xff] %v2978
      %3107 = vst [vmem:[#allocation2 + $0x98] sm:$0xff] %v2979
      %3108 = vst [vmem:[#allocation2 + $0xa0] sm:$0xff] %v2980
      %3109 = vst [vmem:[#allocation2 + $0xa8] sm:$0xff] %v2981
      %3110 = vst [vmem:[#allocation2 + $0xb0] sm:$0xff] %v2982
      %3111 = vst [vmem:[#allocation2 + $0xb8] sm:$0xff] %v2983
      %3112 = vst [vmem:[#allocation2 + $0xc0] sm:$0xff] %v2984
      %3113 = vst [vmem:[#allocation2 + $0xc8] sm:$0xff] %v2985
      %3114 = vst [vmem:[#allocation2 + $0xd0] sm:$0xff] %v2986
      %3115 = vst [vmem:[#allocation2 + $0xd8] sm:$0xff] %v2987
      %3116 = vst [vmem:[#allocation2 + $0xe0] sm:$0xff] %v2988
      %3117 = vst [vmem:[#allocation2 + $0xe8] sm:$0xff] %v2989
      %3118 = vst [vmem:[#allocation2 + $0xf0] sm:$0xff] %v2990
      %3119 = vst [vmem:[#allocation2 + $0xf8] sm:$0xff] %v2991
      %3120 = vst [vmem:[#allocation2 + $0x100] sm:$0xff] %v2992
      %3121 = vst [vmem:[#allocation2 + $0x108] sm:$0xff] %v2993
      %3122 = vst [vmem:[#allocation2 + $0x110] sm:$0xff] %v2994
      %3123 = vst [vmem:[#allocation2 + $0x118] sm:$0xff] %v2995
      %3124 = vst [vmem:[#allocation2 + $0x120] sm:$0xff] %v2996
      %3125 = vst [vmem:[#allocation2 + $0x128] sm:$0xff] %v2997
      %3126 = vst [vmem:[#allocation2 + $0x130] sm:$0xff] %v2998
      %3127 = vst [vmem:[#allocation2 + $0x138] sm:$0xff] %v2999
      %3128 = vst [vmem:[#allocation2 + $0x140] sm:$0xff] %v3000
      %3129 = vst [vmem:[#allocation2 + $0x148] sm:$0xff] %v3001
      %3130 = vst [vmem:[#allocation2 + $0x150] sm:$0xff] %v3002
      %3131 = vst [vmem:[#allocation2 + $0x158] sm:$0xff] %v3003
      %3132 = vst [vmem:[#allocation2 + $0x160] sm:$0xff] %v3004
      %3133 = vst [vmem:[#allocation2 + $0x168] sm:$0xff] %v3005
      %3134 = vst [vmem:[#allocation2 + $0x170] sm:$0xff] %v3006
      %3135 = vst [vmem:[#allocation2 + $0x178] sm:$0xff] %v3007
      %3136 = vst [vmem:[#allocation2 + $0x180] sm:$0xff] %v3008
      %3137 = vst [vmem:[#allocation2 + $0x188] sm:$0xff] %v3009
      %3138 = vst [vmem:[#allocation2 + $0x190] sm:$0xff] %v3010
      %3139 = vst [vmem:[#allocation2 + $0x198] sm:$0xff] %v3011
      %3140 = vst [vmem:[#allocation2 + $0x1a0] sm:$0xff] %v3012
      %3141 = vst [vmem:[#allocation2 + $0x1a8] sm:$0xff] %v3013
      %3142 = vst [vmem:[#allocation2 + $0x1b0] sm:$0xff] %v3014
      %3143 = vst [vmem:[#allocation2 + $0x1b8] sm:$0xff] %v3015
      %3144 = vst [vmem:[#allocation2 + $0x1c0] sm:$0xff] %v3016
      %3145 = vst [vmem:[#allocation2 + $0x1c8] sm:$0xff] %v3017
      %3146 = vst [vmem:[#allocation2 + $0x1d0] sm:$0xff] %v3018
      %3147 = vst [vmem:[#allocation2 + $0x1d8] sm:$0xff] %v3019
      %3148 = vst [vmem:[#allocation2 + $0x1e0] sm:$0xff] %v3020
      %3149 = vst [vmem:[#allocation2 + $0x1e8] sm:$0xff] %v3021
      %3150 = vst [vmem:[#allocation2 + $0x1f0] sm:$0xff] %v3022
      %3151 = vst [vmem:[#allocation2 + $0x1f8] sm:$0xff] %v3023
    $region37: #{tpu_custom_call.1} parent=1 // pred_fallthru
      _
    %v3152 = vld [vmem:[#allocation2] sm:$0xff]
    %v3153 = vld [vmem:[#allocation2 + $0x8] sm:$0xff]
    %v3154 = vld [vmem:[#allocation2 + $0x10] sm:$0xff]
    %v3155 = vld [vmem:[#allocation2 + $0x18] sm:$0xff]
    %v3156 = vld [vmem:[#allocation2 + $0x20] sm:$0xff]
    %v3157 = vld [vmem:[#allocation2 + $0x28] sm:$0xff]
    %v3158 = vld [vmem:[#allocation2 + $0x30] sm:$0xff]
    %v3159 = vld [vmem:[#allocation2 + $0x38] sm:$0xff]
    %v3160 = vld [vmem:[#allocation2 + $0x40] sm:$0xff]
    %v3161 = vld [vmem:[#allocation2 + $0x48] sm:$0xff]
    %v3162 = vld [vmem:[#allocation2 + $0x50] sm:$0xff]
    %v3163 = vld [vmem:[#allocation2 + $0x58] sm:$0xff]
    %v3164 = vld [vmem:[#allocation2 + $0x60] sm:$0xff]
    %v3165 = vld [vmem:[#allocation2 + $0x68] sm:$0xff]
    %v3166 = vld [vmem:[#allocation2 + $0x70] sm:$0xff]
    %v3167 = vld [vmem:[#allocation2 + $0x78] sm:$0xff]
    %v3168 = vld [vmem:[#allocation2 + $0x80] sm:$0xff]
    %v3169 = vld [vmem:[#allocation2 + $0x88] sm:$0xff]
    %v3170 = vld [vmem:[#allocation2 + $0x90] sm:$0xff]
    %v3171 = vld [vmem:[#allocation2 + $0x98] sm:$0xff]
    %v3172 = vld [vmem:[#allocation2 + $0xa0] sm:$0xff]
    %v3173 = vld [vmem:[#allocation2 + $0xa8] sm:$0xff]
    %v3174 = vld [vmem:[#allocation2 + $0xb0] sm:$0xff]
    %v3175 = vld [vmem:[#allocation2 + $0xb8] sm:$0xff]
    %v3176 = vld [vmem:[#allocation2 + $0xc0] sm:$0xff]
    %v3177 = vld [vmem:[#allocation2 + $0xc8] sm:$0xff]
    %v3178 = vld [vmem:[#allocation2 + $0xd0] sm:$0xff]
    %v3179 = vld [vmem:[#allocation2 + $0xd8] sm:$0xff]
    %v3180 = vld [vmem:[#allocation2 + $0xe0] sm:$0xff]
    %v3181 = vld [vmem:[#allocation2 + $0xe8] sm:$0xff]
    %v3182 = vld [vmem:[#allocation2 + $0xf0] sm:$0xff]
    %v3183 = vld [vmem:[#allocation2 + $0xf8] sm:$0xff]
    %v3184 = vld [vmem:[#allocation2 + $0x100] sm:$0xff]
    %v3185 = vld [vmem:[#allocation2 + $0x108] sm:$0xff]
    %v3186 = vld [vmem:[#allocation2 + $0x110] sm:$0xff]
    %v3187 = vld [vmem:[#allocation2 + $0x118] sm:$0xff]
    %v3188 = vld [vmem:[#allocation2 + $0x120] sm:$0xff]
    %v3189 = vld [vmem:[#allocation2 + $0x128] sm:$0xff]
    %v3190 = vld [vmem:[#allocation2 + $0x130] sm:$0xff]
    %v3191 = vld [vmem:[#allocation2 + $0x138] sm:$0xff]
    %v3192 = vld [vmem:[#allocation2 + $0x140] sm:$0xff]
    %v3193 = vld [vmem:[#allocation2 + $0x148] sm:$0xff]
    %v3194 = vld [vmem:[#allocation2 + $0x150] sm:$0xff]
    %v3195 = vld [vmem:[#allocation2 + $0x158] sm:$0xff]
    %v3196 = vld [vmem:[#allocation2 + $0x160] sm:$0xff]
    %v3197 = vld [vmem:[#allocation2 + $0x168] sm:$0xff]
    %v3198 = vld [vmem:[#allocation2 + $0x170] sm:$0xff]
    %v3199 = vld [vmem:[#allocation2 + $0x178] sm:$0xff]
    %v3200 = vld [vmem:[#allocation2 + $0x180] sm:$0xff]
    %v3201 = vld [vmem:[#allocation2 + $0x188] sm:$0xff]
    %v3202 = vld [vmem:[#allocation2 + $0x190] sm:$0xff]
    %v3203 = vld [vmem:[#allocation2 + $0x198] sm:$0xff]
    %v3204 = vld [vmem:[#allocation2 + $0x1a0] sm:$0xff]
    %v3205 = vld [vmem:[#allocation2 + $0x1a8] sm:$0xff]
    %v3206 = vld [vmem:[#allocation2 + $0x1b0] sm:$0xff]
    %v3207 = vld [vmem:[#allocation2 + $0x1b8] sm:$0xff]
    %v3208 = vld [vmem:[#allocation2 + $0x1c0] sm:$0xff]
    %v3209 = vld [vmem:[#allocation2 + $0x1c8] sm:$0xff]
    %v3210 = vld [vmem:[#allocation2 + $0x1d0] sm:$0xff]
    %v3211 = vld [vmem:[#allocation2 + $0x1d8] sm:$0xff]
    %v3212 = vld [vmem:[#allocation2 + $0x1e0] sm:$0xff]
    %v3213 = vld [vmem:[#allocation2 + $0x1e8] sm:$0xff]
    %v3214 = vld [vmem:[#allocation2 + $0x1f0] sm:$0xff]
    %v3215 = vld [vmem:[#allocation2 + $0x1f8] sm:$0xff]
    %v3216 = vld [vmem:[#allocation8] sm:$0xff]
    %v3217 = vld [vmem:[#allocation8 + $0x8] sm:$0xff]
    %v3218 = vld [vmem:[#allocation8 + $0x10] sm:$0xff]
    %v3219 = vld [vmem:[#allocation8 + $0x18] sm:$0xff]
    %v3220 = vld [vmem:[#allocation8 + $0x20] sm:$0xff]
    %v3221 = vld [vmem:[#allocation8 + $0x28] sm:$0xff]
    %v3222 = vld [vmem:[#allocation8 + $0x30] sm:$0xff]
    %v3223 = vld [vmem:[#allocation8 + $0x38] sm:$0xff]
    %v3224 = vld [vmem:[#allocation8 + $0x40] sm:$0xff]
    %v3225 = vld [vmem:[#allocation8 + $0x48] sm:$0xff]
    %v3226 = vld [vmem:[#allocation8 + $0x50] sm:$0xff]
    %v3227 = vld [vmem:[#allocation8 + $0x58] sm:$0xff]
    %v3228 = vld [vmem:[#allocation8 + $0x60] sm:$0xff]
    %v3229 = vld [vmem:[#allocation8 + $0x68] sm:$0xff]
    %v3230 = vld [vmem:[#allocation8 + $0x70] sm:$0xff]
    %v3231 = vld [vmem:[#allocation8 + $0x78] sm:$0xff]
    %v3232 = vld [vmem:[#allocation8 + $0x80] sm:$0xff]
    %v3233 = vld [vmem:[#allocation8 + $0x88] sm:$0xff]
    %v3234 = vld [vmem:[#allocation8 + $0x90] sm:$0xff]
    %v3235 = vld [vmem:[#allocation8 + $0x98] sm:$0xff]
    %v3236 = vld [vmem:[#allocation8 + $0xa0] sm:$0xff]
    %v3237 = vld [vmem:[#allocation8 + $0xa8] sm:$0xff]
    %v3238 = vld [vmem:[#allocation8 + $0xb0] sm:$0xff]
    %v3239 = vld [vmem:[#allocation8 + $0xb8] sm:$0xff]
    %v3240 = vld [vmem:[#allocation8 + $0xc0] sm:$0xff]
    %v3241 = vld [vmem:[#allocation8 + $0xc8] sm:$0xff]
    %v3242 = vld [vmem:[#allocation8 + $0xd0] sm:$0xff]
    %v3243 = vld [vmem:[#allocation8 + $0xd8] sm:$0xff]
    %v3244 = vld [vmem:[#allocation8 + $0xe0] sm:$0xff]
    %v3245 = vld [vmem:[#allocation8 + $0xe8] sm:$0xff]
    %v3246 = vld [vmem:[#allocation8 + $0xf0] sm:$0xff]
    %v3247 = vld [vmem:[#allocation8 + $0xf8] sm:$0xff]
    %v3248 = vld [vmem:[#allocation8 + $0x100] sm:$0xff]
    %v3249 = vld [vmem:[#allocation8 + $0x108] sm:$0xff]
    %v3250 = vld [vmem:[#allocation8 + $0x110] sm:$0xff]
    %v3251 = vld [vmem:[#allocation8 + $0x118] sm:$0xff]
    %v3252 = vld [vmem:[#allocation8 + $0x120] sm:$0xff]
    %v3253 = vld [vmem:[#allocation8 + $0x128] sm:$0xff]
    %v3254 = vld [vmem:[#allocation8 + $0x130] sm:$0xff]
    %v3255 = vld [vmem:[#allocation8 + $0x138] sm:$0xff]
    %v3256 = vld [vmem:[#allocation8 + $0x140] sm:$0xff]
    %v3257 = vld [vmem:[#allocation8 + $0x148] sm:$0xff]
    %v3258 = vld [vmem:[#allocation8 + $0x150] sm:$0xff]
    %v3259 = vld [vmem:[#allocation8 + $0x158] sm:$0xff]
    %v3260 = vld [vmem:[#allocation8 + $0x160] sm:$0xff]
    %v3261 = vld [vmem:[#allocation8 + $0x168] sm:$0xff]
    %v3262 = vld [vmem:[#allocation8 + $0x170] sm:$0xff]
    %v3263 = vld [vmem:[#allocation8 + $0x178] sm:$0xff]
    %v3264 = vld [vmem:[#allocation8 + $0x180] sm:$0xff]
    %v3265 = vld [vmem:[#allocation8 + $0x188] sm:$0xff]
    %v3266 = vld [vmem:[#allocation8 + $0x190] sm:$0xff]
    %v3267 = vld [vmem:[#allocation8 + $0x198] sm:$0xff]
    %v3268 = vld [vmem:[#allocation8 + $0x1a0] sm:$0xff]
    %v3269 = vld [vmem:[#allocation8 + $0x1a8] sm:$0xff]
    %v3270 = vld [vmem:[#allocation8 + $0x1b0] sm:$0xff]
    %v3271 = vld [vmem:[#allocation8 + $0x1b8] sm:$0xff]
    %v3272 = vld [vmem:[#allocation8 + $0x1c0] sm:$0xff]
    %v3273 = vld [vmem:[#allocation8 + $0x1c8] sm:$0xff]
    %v3274 = vld [vmem:[#allocation8 + $0x1d0] sm:$0xff]
    %v3275 = vld [vmem:[#allocation8 + $0x1d8] sm:$0xff]
    %v3276 = vld [vmem:[#allocation8 + $0x1e0] sm:$0xff]
    %v3277 = vld [vmem:[#allocation8 + $0x1e8] sm:$0xff]
    %v3278 = vld [vmem:[#allocation8 + $0x1f0] sm:$0xff]
    %v3279 = vld [vmem:[#allocation8 + $0x1f8] sm:$0xff]
    %v3280 = vld [vmem:[%s4] sm:$0xf]
    %v3282 = vlaneseq
    %v3283 = vshrl.u32 %v3282, 7
    %v3284 = vsub.s32 0, %v3283
    %v3285 = vrot.slane %v3280, %v3284
    %v3286 = vlaneseq
    %v3287 = vshrl.u32 %v3286, 7
    %v3288 = vsub.s32 1, %v3287
    %v3289 = vrot.slane %v3280, %v3288
    %v3290 = vlaneseq
    %v3291 = vshrl.u32 %v3290, 7
    %v3292 = vsub.s32 2, %v3291
    %v3293 = vrot.slane %v3280, %v3292
    %v3294 = vlaneseq
    %v3295 = vshrl.u32 %v3294, 7
    %v3296 = vsub.s32 3, %v3295
    %v3297 = vrot.slane %v3280, %v3296
    %v3366 = vunpack.c.l.b16 %v3152
    %v3367 = vunpack.c.h.b16 %v3152
    %v3368 = vunpack.c.l.b16 %v3153
    %v3369 = vunpack.c.h.b16 %v3153
    %v3370 = vunpack.c.l.b16 %v3154
    %v3371 = vunpack.c.h.b16 %v3154
    %v3372 = vunpack.c.l.b16 %v3155
    %v3373 = vunpack.c.h.b16 %v3155
    %v3374 = vunpack.c.l.b16 %v3156
    %v3375 = vunpack.c.h.b16 %v3156
    %v3376 = vunpack.c.l.b16 %v3157
    %v3377 = vunpack.c.h.b16 %v3157
    %v3378 = vunpack.c.l.b16 %v3158
    %v3379 = vunpack.c.h.b16 %v3158
    %v3380 = vunpack.c.l.b16 %v3159
    %v3381 = vunpack.c.h.b16 %v3159
    %v3382 = vunpack.c.l.b16 %v3160
    %v3383 = vunpack.c.h.b16 %v3160
    %v3384 = vunpack.c.l.b16 %v3161
    %v3385 = vunpack.c.h.b16 %v3161
    %v3386 = vunpack.c.l.b16 %v3162
    %v3387 = vunpack.c.h.b16 %v3162
    %v3388 = vunpack.c.l.b16 %v3163
    %v3389 = vunpack.c.h.b16 %v3163
    %v3390 = vunpack.c.l.b16 %v3164
    %v3391 = vunpack.c.h.b16 %v3164
    %v3392 = vunpack.c.l.b16 %v3165
    %v3393 = vunpack.c.h.b16 %v3165
    %v3394 = vunpack.c.l.b16 %v3166
    %v3395 = vunpack.c.h.b16 %v3166
    %v3396 = vunpack.c.l.b16 %v3167
    %v3397 = vunpack.c.h.b16 %v3167
    %v3398 = vunpack.c.l.b16 %v3168
    %v3399 = vunpack.c.h.b16 %v3168
    %v3400 = vunpack.c.l.b16 %v3169
    %v3401 = vunpack.c.h.b16 %v3169
    %v3402 = vunpack.c.l.b16 %v3170
    %v3403 = vunpack.c.h.b16 %v3170
    %v3404 = vunpack.c.l.b16 %v3171
    %v3405 = vunpack.c.h.b16 %v3171
    %v3406 = vunpack.c.l.b16 %v3172
    %v3407 = vunpack.c.h.b16 %v3172
    %v3408 = vunpack.c.l.b16 %v3173
    %v3409 = vunpack.c.h.b16 %v3173
    %v3410 = vunpack.c.l.b16 %v3174
    %v3411 = vunpack.c.h.b16 %v3174
    %v3412 = vunpack.c.l.b16 %v3175
    %v3413 = vunpack.c.h.b16 %v3175
    %v3414 = vunpack.c.l.b16 %v3176
    %v3415 = vunpack.c.h.b16 %v3176
    %v3416 = vunpack.c.l.b16 %v3177
    %v3417 = vunpack.c.h.b16 %v3177
    %v3418 = vunpack.c.l.b16 %v3178
    %v3419 = vunpack.c.h.b16 %v3178
    %v3420 = vunpack.c.l.b16 %v3179
    %v3421 = vunpack.c.h.b16 %v3179
    %v3422 = vunpack.c.l.b16 %v3180
    %v3423 = vunpack.c.h.b16 %v3180
    %v3424 = vunpack.c.l.b16 %v3181
    %v3425 = vunpack.c.h.b16 %v3181
    %v3426 = vunpack.c.l.b16 %v3182
    %v3427 = vunpack.c.h.b16 %v3182
    %v3428 = vunpack.c.l.b16 %v3183
    %v3429 = vunpack.c.h.b16 %v3183
    %v3430 = vunpack.c.l.b16 %v3184
    %v3431 = vunpack.c.h.b16 %v3184
    %v3432 = vunpack.c.l.b16 %v3185
    %v3433 = vunpack.c.h.b16 %v3185
    %v3434 = vunpack.c.l.b16 %v3186
    %v3435 = vunpack.c.h.b16 %v3186
    %v3436 = vunpack.c.l.b16 %v3187
    %v3437 = vunpack.c.h.b16 %v3187
    %v3438 = vunpack.c.l.b16 %v3188
    %v3439 = vunpack.c.h.b16 %v3188
    %v3440 = vunpack.c.l.b16 %v3189
    %v3441 = vunpack.c.h.b16 %v3189
    %v3442 = vunpack.c.l.b16 %v3190
    %v3443 = vunpack.c.h.b16 %v3190
    %v3444 = vunpack.c.l.b16 %v3191
    %v3445 = vunpack.c.h.b16 %v3191
    %v3446 = vunpack.c.l.b16 %v3192
    %v3447 = vunpack.c.h.b16 %v3192
    %v3448 = vunpack.c.l.b16 %v3193
    %v3449 = vunpack.c.h.b16 %v3193
    %v3450 = vunpack.c.l.b16 %v3194
    %v3451 = vunpack.c.h.b16 %v3194
    %v3452 = vunpack.c.l.b16 %v3195
    %v3453 = vunpack.c.h.b16 %v3195
    %v3454 = vunpack.c.l.b16 %v3196
    %v3455 = vunpack.c.h.b16 %v3196
    %v3456 = vunpack.c.l.b16 %v3197
    %v3457 = vunpack.c.h.b16 %v3197
    %v3458 = vunpack.c.l.b16 %v3198
    %v3459 = vunpack.c.h.b16 %v3198
    %v3460 = vunpack.c.l.b16 %v3199
    %v3461 = vunpack.c.h.b16 %v3199
    %v3462 = vunpack.c.l.b16 %v3200
    %v3463 = vunpack.c.h.b16 %v3200
    %v3464 = vunpack.c.l.b16 %v3201
    %v3465 = vunpack.c.h.b16 %v3201
    %v3466 = vunpack.c.l.b16 %v3202
    %v3467 = vunpack.c.h.b16 %v3202
    %v3468 = vunpack.c.l.b16 %v3203
    %v3469 = vunpack.c.h.b16 %v3203
    %v3470 = vunpack.c.l.b16 %v3204
    %v3471 = vunpack.c.h.b16 %v3204
    %v3472 = vunpack.c.l.b16 %v3205
    %v3473 = vunpack.c.h.b16 %v3205
    %v3474 = vunpack.c.l.b16 %v3206
    %v3475 = vunpack.c.h.b16 %v3206
    %v3476 = vunpack.c.l.b16 %v3207
    %v3477 = vunpack.c.h.b16 %v3207
    %v3478 = vunpack.c.l.b16 %v3208
    %v3479 = vunpack.c.h.b16 %v3208
    %v3480 = vunpack.c.l.b16 %v3209
    %v3481 = vunpack.c.h.b16 %v3209
    %v3482 = vunpack.c.l.b16 %v3210
    %v3483 = vunpack.c.h.b16 %v3210
    %v3484 = vunpack.c.l.b16 %v3211
    %v3485 = vunpack.c.h.b16 %v3211
    %v3486 = vunpack.c.l.b16 %v3212
    %v3487 = vunpack.c.h.b16 %v3212
    %v3488 = vunpack.c.l.b16 %v3213
    %v3489 = vunpack.c.h.b16 %v3213
    %v3490 = vunpack.c.l.b16 %v3214
    %v3491 = vunpack.c.h.b16 %v3214
    %v3492 = vunpack.c.l.b16 %v3215
    %v3493 = vunpack.c.h.b16 %v3215
    %v3494 = vpack.c.b16 %v3368, %v3366
    %v3495 = vpack.c.b16 %v3369, %v3367
    %v3496 = vpack.c.b16 %v3372, %v3370
    %v3497 = vpack.c.b16 %v3373, %v3371
    %v3498 = vpack.c.b16 %v3376, %v3374
    %v3499 = vpack.c.b16 %v3377, %v3375
    %v3500 = vpack.c.b16 %v3380, %v3378
    %v3501 = vpack.c.b16 %v3381, %v3379
    %v3502 = vpack.c.b16 %v3384, %v3382
    %v3503 = vpack.c.b16 %v3385, %v3383
    %v3504 = vpack.c.b16 %v3388, %v3386
    %v3505 = vpack.c.b16 %v3389, %v3387
    %v3506 = vpack.c.b16 %v3392, %v3390
    %v3507 = vpack.c.b16 %v3393, %v3391
    %v3508 = vpack.c.b16 %v3396, %v3394
    %v3509 = vpack.c.b16 %v3397, %v3395
    %v3510 = vpack.c.b16 %v3400, %v3398
    %v3511 = vpack.c.b16 %v3401, %v3399
    %v3512 = vpack.c.b16 %v3404, %v3402
    %v3513 = vpack.c.b16 %v3405, %v3403
    %v3514 = vpack.c.b16 %v3408, %v3406
    %v3515 = vpack.c.b16 %v3409, %v3407
    %v3516 = vpack.c.b16 %v3412, %v3410
    %v3517 = vpack.c.b16 %v3413, %v3411
    %v3518 = vpack.c.b16 %v3416, %v3414
    %v3519 = vpack.c.b16 %v3417, %v3415
    %v3520 = vpack.c.b16 %v3420, %v3418
    %v3521 = vpack.c.b16 %v3421, %v3419
    %v3522 = vpack.c.b16 %v3424, %v3422
    %v3523 = vpack.c.b16 %v3425, %v3423
    %v3524 = vpack.c.b16 %v3428, %v3426
    %v3525 = vpack.c.b16 %v3429, %v3427
    %v3526 = vpack.c.b16 %v3432, %v3430
    %v3527 = vpack.c.b16 %v3433, %v3431
    %v3528 = vpack.c.b16 %v3436, %v3434
    %v3529 = vpack.c.b16 %v3437, %v3435
    %v3530 = vpack.c.b16 %v3440, %v3438
    %v3531 = vpack.c.b16 %v3441, %v3439
    %v3532 = vpack.c.b16 %v3444, %v3442
    %v3533 = vpack.c.b16 %v3445, %v3443
    %v3534 = vpack.c.b16 %v3448, %v3446
    %v3535 = vpack.c.b16 %v3449, %v3447
    %v3536 = vpack.c.b16 %v3452, %v3450
    %v3537 = vpack.c.b16 %v3453, %v3451
    %v3538 = vpack.c.b16 %v3456, %v3454
    %v3539 = vpack.c.b16 %v3457, %v3455
    %v3540 = vpack.c.b16 %v3460, %v3458
    %v3541 = vpack.c.b16 %v3461, %v3459
    %v3542 = vpack.c.b16 %v3464, %v3462
    %v3543 = vpack.c.b16 %v3465, %v3463
    %v3544 = vpack.c.b16 %v3468, %v3466
    %v3545 = vpack.c.b16 %v3469, %v3467
    %v3546 = vpack.c.b16 %v3472, %v3470
    %v3547 = vpack.c.b16 %v3473, %v3471
    %v3548 = vpack.c.b16 %v3476, %v3474
    %v3549 = vpack.c.b16 %v3477, %v3475
    %v3550 = vpack.c.b16 %v3480, %v3478
    %v3551 = vpack.c.b16 %v3481, %v3479
    %v3552 = vpack.c.b16 %v3484, %v3482
    %v3553 = vpack.c.b16 %v3485, %v3483
    %v3554 = vpack.c.b16 %v3488, %v3486
    %v3555 = vpack.c.b16 %v3489, %v3487
    %v3556 = vpack.c.b16 %v3492, %v3490
    %v3557 = vpack.c.b16 %v3493, %v3491
    %v3686 = vunpack.c.l.b16 %v3216
    %v3687 = vunpack.c.h.b16 %v3216
    %v3688 = vunpack.c.l.b16 %v3217
    %v3689 = vunpack.c.h.b16 %v3217
    %v3690 = vunpack.c.l.b16 %v3218
    %v3691 = vunpack.c.h.b16 %v3218
    %v3692 = vunpack.c.l.b16 %v3219
    %v3693 = vunpack.c.h.b16 %v3219
    %v3694 = vunpack.c.l.b16 %v3220
    %v3695 = vunpack.c.h.b16 %v3220
    %v3696 = vunpack.c.l.b16 %v3221
    %v3697 = vunpack.c.h.b16 %v3221
    %v3698 = vunpack.c.l.b16 %v3222
    %v3699 = vunpack.c.h.b16 %v3222
    %v3700 = vunpack.c.l.b16 %v3223
    %v3701 = vunpack.c.h.b16 %v3223
    %v3702 = vunpack.c.l.b16 %v3224
    %v3703 = vunpack.c.h.b16 %v3224
    %v3704 = vunpack.c.l.b16 %v3225
    %v3705 = vunpack.c.h.b16 %v3225
    %v3706 = vunpack.c.l.b16 %v3226
    %v3707 = vunpack.c.h.b16 %v3226
    %v3708 = vunpack.c.l.b16 %v3227
    %v3709 = vunpack.c.h.b16 %v3227
    %v3710 = vunpack.c.l.b16 %v3228
    %v3711 = vunpack.c.h.b16 %v3228
    %v3712 = vunpack.c.l.b16 %v3229
    %v3713 = vunpack.c.h.b16 %v3229
    %v3714 = vunpack.c.l.b16 %v3230
    %v3715 = vunpack.c.h.b16 %v3230
    %v3716 = vunpack.c.l.b16 %v3231
    %v3717 = vunpack.c.h.b16 %v3231
    %v3718 = vunpack.c.l.b16 %v3232
    %v3719 = vunpack.c.h.b16 %v3232
    %v3720 = vunpack.c.l.b16 %v3233
    %v3721 = vunpack.c.h.b16 %v3233
    %v3722 = vunpack.c.l.b16 %v3234
    %v3723 = vunpack.c.h.b16 %v3234
    %v3724 = vunpack.c.l.b16 %v3235
    %v3725 = vunpack.c.h.b16 %v3235
    %v3726 = vunpack.c.l.b16 %v3236
    %v3727 = vunpack.c.h.b16 %v3236
    %v3728 = vunpack.c.l.b16 %v3237
    %v3729 = vunpack.c.h.b16 %v3237
    %v3730 = vunpack.c.l.b16 %v3238
    %v3731 = vunpack.c.h.b16 %v3238
    %v3732 = vunpack.c.l.b16 %v3239
    %v3733 = vunpack.c.h.b16 %v3239
    %v3734 = vunpack.c.l.b16 %v3240
    %v3735 = vunpack.c.h.b16 %v3240
    %v3736 = vunpack.c.l.b16 %v3241
    %v3737 = vunpack.c.h.b16 %v3241
    %v3738 = vunpack.c.l.b16 %v3242
    %v3739 = vunpack.c.h.b16 %v3242
    %v3740 = vunpack.c.l.b16 %v3243
    %v3741 = vunpack.c.h.b16 %v3243
    %v3742 = vunpack.c.l.b16 %v3244
    %v3743 = vunpack.c.h.b16 %v3244
    %v3744 = vunpack.c.l.b16 %v3245
    %v3745 = vunpack.c.h.b16 %v3245
    %v3746 = vunpack.c.l.b16 %v3246
    %v3747 = vunpack.c.h.b16 %v3246
    %v3748 = vunpack.c.l.b16 %v3247
    %v3749 = vunpack.c.h.b16 %v3247
    %v3750 = vunpack.c.l.b16 %v3248
    %v3751 = vunpack.c.h.b16 %v3248
    %v3752 = vunpack.c.l.b16 %v3249
    %v3753 = vunpack.c.h.b16 %v3249
    %v3754 = vunpack.c.l.b16 %v3250
    %v3755 = vunpack.c.h.b16 %v3250
    %v3756 = vunpack.c.l.b16 %v3251
    %v3757 = vunpack.c.h.b16 %v3251
    %v3758 = vunpack.c.l.b16 %v3252
    %v3759 = vunpack.c.h.b16 %v3252
    %v3760 = vunpack.c.l.b16 %v3253
    %v3761 = vunpack.c.h.b16 %v3253
    %v3762 = vunpack.c.l.b16 %v3254
    %v3763 = vunpack.c.h.b16 %v3254
    %v3764 = vunpack.c.l.b16 %v3255
    %v3765 = vunpack.c.h.b16 %v3255
    %v3766 = vunpack.c.l.b16 %v3256
    %v3767 = vunpack.c.h.b16 %v3256
    %v3768 = vunpack.c.l.b16 %v3257
    %v3769 = vunpack.c.h.b16 %v3257
    %v3770 = vunpack.c.l.b16 %v3258
    %v3771 = vunpack.c.h.b16 %v3258
    %v3772 = vunpack.c.l.b16 %v3259
    %v3773 = vunpack.c.h.b16 %v3259
    %v3774 = vunpack.c.l.b16 %v3260
    %v3775 = vunpack.c.h.b16 %v3260
    %v3776 = vunpack.c.l.b16 %v3261
    %v3777 = vunpack.c.h.b16 %v3261
    %v3778 = vunpack.c.l.b16 %v3262
    %v3779 = vunpack.c.h.b16 %v3262
    %v3780 = vunpack.c.l.b16 %v3263
    %v3781 = vunpack.c.h.b16 %v3263
    %v3782 = vunpack.c.l.b16 %v3264
    %v3783 = vunpack.c.h.b16 %v3264
    %v3784 = vunpack.c.l.b16 %v3265
    %v3785 = vunpack.c.h.b16 %v3265
    %v3786 = vunpack.c.l.b16 %v3266
    %v3787 = vunpack.c.h.b16 %v3266
    %v3788 = vunpack.c.l.b16 %v3267
    %v3789 = vunpack.c.h.b16 %v3267
    %v3790 = vunpack.c.l.b16 %v3268
    %v3791 = vunpack.c.h.b16 %v3268
    %v3792 = vunpack.c.l.b16 %v3269
    %v3793 = vunpack.c.h.b16 %v3269
    %v3794 = vunpack.c.l.b16 %v3270
    %v3795 = vunpack.c.h.b16 %v3270
    %v3796 = vunpack.c.l.b16 %v3271
    %v3797 = vunpack.c.h.b16 %v3271
    %v3798 = vunpack.c.l.b16 %v3272
    %v3799 = vunpack.c.h.b16 %v3272
    %v3800 = vunpack.c.l.b16 %v3273
    %v3801 = vunpack.c.h.b16 %v3273
    %v3802 = vunpack.c.l.b16 %v3274
    %v3803 = vunpack.c.h.b16 %v3274
    %v3804 = vunpack.c.l.b16 %v3275
    %v3805 = vunpack.c.h.b16 %v3275
    %v3806 = vunpack.c.l.b16 %v3276
    %v3807 = vunpack.c.h.b16 %v3276
    %v3808 = vunpack.c.l.b16 %v3277
    %v3809 = vunpack.c.h.b16 %v3277
    %v3810 = vunpack.c.l.b16 %v3278
    %v3811 = vunpack.c.h.b16 %v3278
    %v3812 = vunpack.c.l.b16 %v3279
    %v3813 = vunpack.c.h.b16 %v3279
    %v3814 = vpack.c.b16 %v3690, %v3686
    %v3815 = vpack.c.b16 %v3691, %v3687
    %v3816 = vpack.c.b16 %v3692, %v3688
    %v3817 = vpack.c.b16 %v3693, %v3689
    %v3818 = vpack.c.b16 %v3698, %v3694
    %v3819 = vpack.c.b16 %v3699, %v3695
    %v3820 = vpack.c.b16 %v3700, %v3696
    %v3821 = vpack.c.b16 %v3701, %v3697
    %v3822 = vpack.c.b16 %v3706, %v3702
    %v3823 = vpack.c.b16 %v3707, %v3703
    %v3824 = vpack.c.b16 %v3708, %v3704
    %v3825 = vpack.c.b16 %v3709, %v3705
    %v3826 = vpack.c.b16 %v3714, %v3710
    %v3827 = vpack.c.b16 %v3715, %v3711
    %v3828 = vpack.c.b16 %v3716, %v3712
    %v3829 = vpack.c.b16 %v3717, %v3713
    %v3830 = vpack.c.b16 %v3722, %v3718
    %v3831 = vpack.c.b16 %v3723, %v3719
    %v3832 = vpack.c.b16 %v3724, %v3720
    %v3833 = vpack.c.b16 %v3725, %v3721
    %v3834 = vpack.c.b16 %v3730, %v3726
    %v3835 = vpack.c.b16 %v3731, %v3727
    %v3836 = vpack.c.b16 %v3732, %v3728
    %v3837 = vpack.c.b16 %v3733, %v3729
    %v3838 = vpack.c.b16 %v3738, %v3734
    %v3839 = vpack.c.b16 %v3739, %v3735
    %v3840 = vpack.c.b16 %v3740, %v3736
    %v3841 = vpack.c.b16 %v3741, %v3737
    %v3842 = vpack.c.b16 %v3746, %v3742
    %v3843 = vpack.c.b16 %v3747, %v3743
    %v3844 = vpack.c.b16 %v3748, %v3744
    %v3845 = vpack.c.b16 %v3749, %v3745
    %v3846 = vpack.c.b16 %v3754, %v3750
    %v3847 = vpack.c.b16 %v3755, %v3751
    %v3848 = vpack.c.b16 %v3756, %v3752
    %v3849 = vpack.c.b16 %v3757, %v3753
    %v3850 = vpack.c.b16 %v3762, %v3758
    %v3851 = vpack.c.b16 %v3763, %v3759
    %v3852 = vpack.c.b16 %v3764, %v3760
    %v3853 = vpack.c.b16 %v3765, %v3761
    %v3854 = vpack.c.b16 %v3770, %v3766
    %v3855 = vpack.c.b16 %v3771, %v3767
    %v3856 = vpack.c.b16 %v3772, %v3768
    %v3857 = vpack.c.b16 %v3773, %v3769
    %v3858 = vpack.c.b16 %v3778, %v3774
    %v3859 = vpack.c.b16 %v3779, %v3775
    %v3860 = vpack.c.b16 %v3780, %v3776
    %v3861 = vpack.c.b16 %v3781, %v3777
    %v3862 = vpack.c.b16 %v3786, %v3782
    %v3863 = vpack.c.b16 %v3787, %v3783
    %v3864 = vpack.c.b16 %v3788, %v3784
    %v3865 = vpack.c.b16 %v3789, %v3785
    %v3866 = vpack.c.b16 %v3794, %v3790
    %v3867 = vpack.c.b16 %v3795, %v3791
    %v3868 = vpack.c.b16 %v3796, %v3792
    %v3869 = vpack.c.b16 %v3797, %v3793
    %v3870 = vpack.c.b16 %v3802, %v3798
    %v3871 = vpack.c.b16 %v3803, %v3799
    %v3872 = vpack.c.b16 %v3804, %v3800
    %v3873 = vpack.c.b16 %v3805, %v3801
    %v3874 = vpack.c.b16 %v3810, %v3806
    %v3875 = vpack.c.b16 %v3811, %v3807
    %v3876 = vpack.c.b16 %v3812, %v3808
    %v3877 = vpack.c.b16 %v3813, %v3809
    %3942 = vmatprep.subr.bf16.mxu0 %v3843
    %3943 = vmatpush1.bf16.msra.mxu0 %v3842
    %3944 = vmatprep.subr.bf16.mxu0 %v3839
    %3945 = vmatpush1.bf16.msra.mxu0 %v3838
    %3946 = vmatprep.subr.bf16.mxu0 %v3835
    %3947 = vmatpush1.bf16.msra.mxu0 %v3834
    %3948 = vmatprep.subr.bf16.mxu0 %v3831
    %3949 = vmatpush1.bf16.msra.mxu0 %v3830
    %3950 = vmatprep.subr.bf16.mxu0 %v3827
    %3951 = vmatpush1.bf16.msra.mxu0 %v3826
    %3952 = vmatprep.subr.bf16.mxu0 %v3823
    %3953 = vmatpush1.bf16.msra.mxu0 %v3822
    %3954 = vmatprep.subr.bf16.mxu0 %v3819
    %3955 = vmatpush1.bf16.msra.mxu0 %v3818
    %3956 = vmatprep.subr.bf16.mxu0 %v3815
    %3957 = vmatpush1.bf16.msra.mxu0 %v3814
    %3958 = vmatprep.subr.bf16.mxu0 %v3875
    %3959 = vmatpush2.bf16.msra.mxu0 %v3874
    %3960 = vmatprep.subr.bf16.mxu0 %v3871
    %3961 = vmatpush2.bf16.msra.mxu0 %v3870
    %3962 = vmatprep.subr.bf16.mxu0 %v3867
    %3963 = vmatpush2.bf16.msra.mxu0 %v3866
    %3964 = vmatprep.subr.bf16.mxu0 %v3863
    %3965 = vmatpush2.bf16.msra.mxu0 %v3862
    %3966 = vmatprep.subr.bf16.mxu0 %v3859
    %3967 = vmatpush2.bf16.msra.mxu0 %v3858
    %3968 = vmatprep.subr.bf16.mxu0 %v3855
    %3969 = vmatpush2.bf16.msra.mxu0 %v3854
    %3970 = vmatprep.subr.bf16.mxu0 %v3851
    %3971 = vmatpush2.bf16.msra.mxu0 %v3850
    %3972 = vmatprep.subr.bf16.mxu0 %v3847
    %3973 = vmatpush2.bf16.msra.mxu0 %v3846
    %3974 = vmatprep.mubr.bf16.mxu0 %v3495
    %3975 = vmatmul.mubr.bf16.gmra.mxu0 %v3494
    %v3976 = vpop.f32.mrf.mxu0
    %v3977 = vadd.f32 %v3285, %v3976
    %v3978 = vpop.f32.mrf.mxu0
    %v3979 = vadd.f32 %v3289, %v3978
    %v3980 = vpop.f32.mrf.mxu0
    %v3981 = vadd.f32 %v3285, %v3980
    %v3982 = vpop.f32.mrf.mxu0
    %v3983 = vadd.f32 %v3289, %v3982
    %3984 = vmatprep.mubr.bf16.mxu0 %v3497
    %3985 = vmatmul.mubr.bf16.gmra.mxu0 %v3496
    %v3986 = vpop.f32.mrf.mxu0
    %v3987 = vadd.f32 %v3285, %v3986
    %v3988 = vpop.f32.mrf.mxu0
    %v3989 = vadd.f32 %v3289, %v3988
    %v3990 = vpop.f32.mrf.mxu0
    %v3991 = vadd.f32 %v3285, %v3990
    %v3992 = vpop.f32.mrf.mxu0
    %v3993 = vadd.f32 %v3289, %v3992
    %3994 = vmatprep.mubr.bf16.mxu0 %v3499
    %3995 = vmatmul.mubr.bf16.gmra.mxu0 %v3498
    %v3996 = vpop.f32.mrf.mxu0
    %v3997 = vadd.f32 %v3285, %v3996
    %v3998 = vpop.f32.mrf.mxu0
    %v3999 = vadd.f32 %v3289, %v3998
    %v4000 = vpop.f32.mrf.mxu0
    %v4001 = vadd.f32 %v3285, %v4000
    %v4002 = vpop.f32.mrf.mxu0
    %v4003 = vadd.f32 %v3289, %v4002
    %4004 = vmatprep.mubr.bf16.mxu0 %v3501
    %4005 = vmatmul.mubr.bf16.gmra.mxu0 %v3500
    %v4006 = vpop.f32.mrf.mxu0
    %v4007 = vadd.f32 %v3285, %v4006
    %v4008 = vpop.f32.mrf.mxu0
    %v4009 = vadd.f32 %v3289, %v4008
    %v4010 = vpop.f32.mrf.mxu0
    %v4011 = vadd.f32 %v3285, %v4010
    %v4012 = vpop.f32.mrf.mxu0
    %v4013 = vadd.f32 %v3289, %v4012
    %4014 = vmatprep.mubr.bf16.mxu0 %v3503
    %4015 = vmatmul.mubr.bf16.gmra.mxu0 %v3502
    %v4016 = vpop.f32.mrf.mxu0
    %v4017 = vadd.f32 %v3285, %v4016
    %v4018 = vpop.f32.mrf.mxu0
    %v4019 = vadd.f32 %v3289, %v4018
    %v4020 = vpop.f32.mrf.mxu0
    %v4021 = vadd.f32 %v3285, %v4020
    %v4022 = vpop.f32.mrf.mxu0
    %v4023 = vadd.f32 %v3289, %v4022
    %4024 = vmatprep.mubr.bf16.mxu0 %v3505
    %4025 = vmatmul.mubr.bf16.gmra.mxu0 %v3504
    %v4026 = vpop.f32.mrf.mxu0
    %v4027 = vadd.f32 %v3285, %v4026
    %v4028 = vpop.f32.mrf.mxu0
    %v4029 = vadd.f32 %v3289, %v4028
    %v4030 = vpop.f32.mrf.mxu0
    %v4031 = vadd.f32 %v3285, %v4030
    %v4032 = vpop.f32.mrf.mxu0
    %v4033 = vadd.f32 %v3289, %v4032
    %4034 = vmatprep.mubr.bf16.mxu0 %v3507
    %4035 = vmatmul.mubr.bf16.gmra.mxu0 %v3506
    %v4036 = vpop.f32.mrf.mxu0
    %v4037 = vadd.f32 %v3285, %v4036
    %v4038 = vpop.f32.mrf.mxu0
    %v4039 = vadd.f32 %v3289, %v4038
    %v4040 = vpop.f32.mrf.mxu0
    %v4041 = vadd.f32 %v3285, %v4040
    %v4042 = vpop.f32.mrf.mxu0
    %v4043 = vadd.f32 %v3289, %v4042
    %4044 = vmatprep.mubr.bf16.mxu0 %v3509
    %4045 = vmatmul.mubr.bf16.gmra.mxu0 %v3508
    %v4046 = vpop.f32.mrf.mxu0
    %v4047 = vadd.f32 %v3285, %v4046
    %v4048 = vpop.f32.mrf.mxu0
    %v4049 = vadd.f32 %v3289, %v4048
    %v4050 = vpop.f32.mrf.mxu0
    %v4051 = vadd.f32 %v3285, %v4050
    %v4052 = vpop.f32.mrf.mxu0
    %v4053 = vadd.f32 %v3289, %v4052
    %4054 = vmatprep.mubr.bf16.mxu0 %v3511
    %4055 = vmatmul.mubr.bf16.gmra.mxu0 %v3510
    %v4056 = vpop.f32.mrf.mxu0
    %v4057 = vadd.f32 %v3285, %v4056
    %v4058 = vpop.f32.mrf.mxu0
    %v4059 = vadd.f32 %v3289, %v4058
    %v4060 = vpop.f32.mrf.mxu0
    %v4061 = vadd.f32 %v3285, %v4060
    %v4062 = vpop.f32.mrf.mxu0
    %v4063 = vadd.f32 %v3289, %v4062
    %4064 = vmatprep.mubr.bf16.mxu0 %v3513
    %4065 = vmatmul.mubr.bf16.gmra.mxu0 %v3512
    %v4066 = vpop.f32.mrf.mxu0
    %v4067 = vadd.f32 %v3285, %v4066
    %v4068 = vpop.f32.mrf.mxu0
    %v4069 = vadd.f32 %v3289, %v4068
    %v4070 = vpop.f32.mrf.mxu0
    %v4071 = vadd.f32 %v3285, %v4070
    %v4072 = vpop.f32.mrf.mxu0
    %v4073 = vadd.f32 %v3289, %v4072
    %4074 = vmatprep.mubr.bf16.mxu0 %v3515
    %4075 = vmatmul.mubr.bf16.gmra.mxu0 %v3514
    %v4076 = vpop.f32.mrf.mxu0
    %v4077 = vadd.f32 %v3285, %v4076
    %v4078 = vpop.f32.mrf.mxu0
    %v4079 = vadd.f32 %v3289, %v4078
    %v4080 = vpop.f32.mrf.mxu0
    %v4081 = vadd.f32 %v3285, %v4080
    %v4082 = vpop.f32.mrf.mxu0
    %v4083 = vadd.f32 %v3289, %v4082
    %4084 = vmatprep.mubr.bf16.mxu0 %v3517
    %4085 = vmatmul.mubr.bf16.gmra.mxu0 %v3516
    %v4086 = vpop.f32.mrf.mxu0
    %v4087 = vadd.f32 %v3285, %v4086
    %v4088 = vpop.f32.mrf.mxu0
    %v4089 = vadd.f32 %v3289, %v4088
    %v4090 = vpop.f32.mrf.mxu0
    %v4091 = vadd.f32 %v3285, %v4090
    %v4092 = vpop.f32.mrf.mxu0
    %v4093 = vadd.f32 %v3289, %v4092
    %4094 = vmatprep.mubr.bf16.mxu0 %v3519
    %4095 = vmatmul.mubr.bf16.gmra.mxu0 %v3518
    %v4096 = vpop.f32.mrf.mxu0
    %v4097 = vadd.f32 %v3285, %v4096
    %v4098 = vpop.f32.mrf.mxu0
    %v4099 = vadd.f32 %v3289, %v4098
    %v4100 = vpop.f32.mrf.mxu0
    %v4101 = vadd.f32 %v3285, %v4100
    %v4102 = vpop.f32.mrf.mxu0
    %v4103 = vadd.f32 %v3289, %v4102
    %4104 = vmatprep.mubr.bf16.mxu0 %v3521
    %4105 = vmatmul.mubr.bf16.gmra.mxu0 %v3520
    %v4106 = vpop.f32.mrf.mxu0
    %v4107 = vadd.f32 %v3285, %v4106
    %v4108 = vpop.f32.mrf.mxu0
    %v4109 = vadd.f32 %v3289, %v4108
    %v4110 = vpop.f32.mrf.mxu0
    %v4111 = vadd.f32 %v3285, %v4110
    %v4112 = vpop.f32.mrf.mxu0
    %v4113 = vadd.f32 %v3289, %v4112
    %4114 = vmatprep.mubr.bf16.mxu0 %v3523
    %4115 = vmatmul.mubr.bf16.gmra.mxu0 %v3522
    %v4116 = vpop.f32.mrf.mxu0
    %v4117 = vadd.f32 %v3285, %v4116
    %v4118 = vpop.f32.mrf.mxu0
    %v4119 = vadd.f32 %v3289, %v4118
    %v4120 = vpop.f32.mrf.mxu0
    %v4121 = vadd.f32 %v3285, %v4120
    %v4122 = vpop.f32.mrf.mxu0
    %v4123 = vadd.f32 %v3289, %v4122
    %4124 = vmatprep.mubr.bf16.mxu0 %v3525
    %4125 = vmatmul.mubr.bf16.gmra.mxu0 %v3524
    %v4126 = vpop.f32.mrf.mxu0
    %v4127 = vadd.f32 %v3285, %v4126
    %v4128 = vpop.f32.mrf.mxu0
    %v4129 = vadd.f32 %v3289, %v4128
    %v4130 = vpop.f32.mrf.mxu0
    %v4131 = vadd.f32 %v3285, %v4130
    %v4132 = vpop.f32.mrf.mxu0
    %v4133 = vadd.f32 %v3289, %v4132
    %4134 = vmatprep.mubr.bf16.mxu0 %v3527
    %4135 = vmatmul.mubr.bf16.gmra.mxu0 %v3526
    %v4136 = vpop.f32.mrf.mxu0
    %v4137 = vadd.f32 %v3285, %v4136
    %v4138 = vpop.f32.mrf.mxu0
    %v4139 = vadd.f32 %v3289, %v4138
    %v4140 = vpop.f32.mrf.mxu0
    %v4141 = vadd.f32 %v3285, %v4140
    %v4142 = vpop.f32.mrf.mxu0
    %v4143 = vadd.f32 %v3289, %v4142
    %4144 = vmatprep.mubr.bf16.mxu0 %v3529
    %4145 = vmatmul.mubr.bf16.gmra.mxu0 %v3528
    %v4146 = vpop.f32.mrf.mxu0
    %v4147 = vadd.f32 %v3285, %v4146
    %v4148 = vpop.f32.mrf.mxu0
    %v4149 = vadd.f32 %v3289, %v4148
    %v4150 = vpop.f32.mrf.mxu0
    %v4151 = vadd.f32 %v3285, %v4150
    %v4152 = vpop.f32.mrf.mxu0
    %v4153 = vadd.f32 %v3289, %v4152
    %4154 = vmatprep.mubr.bf16.mxu0 %v3531
    %4155 = vmatmul.mubr.bf16.gmra.mxu0 %v3530
    %v4156 = vpop.f32.mrf.mxu0
    %v4157 = vadd.f32 %v3285, %v4156
    %v4158 = vpop.f32.mrf.mxu0
    %v4159 = vadd.f32 %v3289, %v4158
    %v4160 = vpop.f32.mrf.mxu0
    %v4161 = vadd.f32 %v3285, %v4160
    %v4162 = vpop.f32.mrf.mxu0
    %v4163 = vadd.f32 %v3289, %v4162
    %4164 = vmatprep.mubr.bf16.mxu0 %v3533
    %4165 = vmatmul.mubr.bf16.gmra.mxu0 %v3532
    %v4166 = vpop.f32.mrf.mxu0
    %v4167 = vadd.f32 %v3285, %v4166
    %v4168 = vpop.f32.mrf.mxu0
    %v4169 = vadd.f32 %v3289, %v4168
    %v4170 = vpop.f32.mrf.mxu0
    %v4171 = vadd.f32 %v3285, %v4170
    %v4172 = vpop.f32.mrf.mxu0
    %v4173 = vadd.f32 %v3289, %v4172
    %4174 = vmatprep.mubr.bf16.mxu0 %v3535
    %4175 = vmatmul.mubr.bf16.gmra.mxu0 %v3534
    %v4176 = vpop.f32.mrf.mxu0
    %v4177 = vadd.f32 %v3285, %v4176
    %v4178 = vpop.f32.mrf.mxu0
    %v4179 = vadd.f32 %v3289, %v4178
    %v4180 = vpop.f32.mrf.mxu0
    %v4181 = vadd.f32 %v3285, %v4180
    %v4182 = vpop.f32.mrf.mxu0
    %v4183 = vadd.f32 %v3289, %v4182
    %4184 = vmatprep.mubr.bf16.mxu0 %v3537
    %4185 = vmatmul.mubr.bf16.gmra.mxu0 %v3536
    %v4186 = vpop.f32.mrf.mxu0
    %v4187 = vadd.f32 %v3285, %v4186
    %v4188 = vpop.f32.mrf.mxu0
    %v4189 = vadd.f32 %v3289, %v4188
    %v4190 = vpop.f32.mrf.mxu0
    %v4191 = vadd.f32 %v3285, %v4190
    %v4192 = vpop.f32.mrf.mxu0
    %v4193 = vadd.f32 %v3289, %v4192
    %4194 = vmatprep.mubr.bf16.mxu0 %v3539
    %4195 = vmatmul.mubr.bf16.gmra.mxu0 %v3538
    %v4196 = vpop.f32.mrf.mxu0
    %v4197 = vadd.f32 %v3285, %v4196
    %v4198 = vpop.f32.mrf.mxu0
    %v4199 = vadd.f32 %v3289, %v4198
    %v4200 = vpop.f32.mrf.mxu0
    %v4201 = vadd.f32 %v3285, %v4200
    %v4202 = vpop.f32.mrf.mxu0
    %v4203 = vadd.f32 %v3289, %v4202
    %4204 = vmatprep.mubr.bf16.mxu0 %v3541
    %4205 = vmatmul.mubr.bf16.gmra.mxu0 %v3540
    %v4206 = vpop.f32.mrf.mxu0
    %v4207 = vadd.f32 %v3285, %v4206
    %v4208 = vpop.f32.mrf.mxu0
    %v4209 = vadd.f32 %v3289, %v4208
    %v4210 = vpop.f32.mrf.mxu0
    %v4211 = vadd.f32 %v3285, %v4210
    %v4212 = vpop.f32.mrf.mxu0
    %v4213 = vadd.f32 %v3289, %v4212
    %4214 = vmatprep.mubr.bf16.mxu0 %v3543
    %4215 = vmatmul.mubr.bf16.gmra.mxu0 %v3542
    %v4216 = vpop.f32.mrf.mxu0
    %v4217 = vadd.f32 %v3285, %v4216
    %v4218 = vpop.f32.mrf.mxu0
    %v4219 = vadd.f32 %v3289, %v4218
    %v4220 = vpop.f32.mrf.mxu0
    %v4221 = vadd.f32 %v3285, %v4220
    %v4222 = vpop.f32.mrf.mxu0
    %v4223 = vadd.f32 %v3289, %v4222
    %4224 = vmatprep.mubr.bf16.mxu0 %v3545
    %4225 = vmatmul.mubr.bf16.gmra.mxu0 %v3544
    %v4226 = vpop.f32.mrf.mxu0
    %v4227 = vadd.f32 %v3285, %v4226
    %v4228 = vpop.f32.mrf.mxu0
    %v4229 = vadd.f32 %v3289, %v4228
    %v4230 = vpop.f32.mrf.mxu0
    %v4231 = vadd.f32 %v3285, %v4230
    %v4232 = vpop.f32.mrf.mxu0
    %v4233 = vadd.f32 %v3289, %v4232
    %4234 = vmatprep.mubr.bf16.mxu0 %v3547
    %4235 = vmatmul.mubr.bf16.gmra.mxu0 %v3546
    %v4236 = vpop.f32.mrf.mxu0
    %v4237 = vadd.f32 %v3285, %v4236
    %v4238 = vpop.f32.mrf.mxu0
    %v4239 = vadd.f32 %v3289, %v4238
    %v4240 = vpop.f32.mrf.mxu0
    %v4241 = vadd.f32 %v3285, %v4240
    %v4242 = vpop.f32.mrf.mxu0
    %v4243 = vadd.f32 %v3289, %v4242
    %4244 = vmatprep.mubr.bf16.mxu0 %v3549
    %4245 = vmatmul.mubr.bf16.gmra.mxu0 %v3548
    %v4246 = vpop.f32.mrf.mxu0
    %v4247 = vadd.f32 %v3285, %v4246
    %v4248 = vpop.f32.mrf.mxu0
    %v4249 = vadd.f32 %v3289, %v4248
    %v4250 = vpop.f32.mrf.mxu0
    %v4251 = vadd.f32 %v3285, %v4250
    %v4252 = vpop.f32.mrf.mxu0
    %v4253 = vadd.f32 %v3289, %v4252
    %4254 = vmatprep.mubr.bf16.mxu0 %v3551
    %4255 = vmatmul.mubr.bf16.gmra.mxu0 %v3550
    %v4256 = vpop.f32.mrf.mxu0
    %v4257 = vadd.f32 %v3285, %v4256
    %v4258 = vpop.f32.mrf.mxu0
    %v4259 = vadd.f32 %v3289, %v4258
    %v4260 = vpop.f32.mrf.mxu0
    %v4261 = vadd.f32 %v3285, %v4260
    %v4262 = vpop.f32.mrf.mxu0
    %v4263 = vadd.f32 %v3289, %v4262
    %4264 = vmatprep.mubr.bf16.mxu0 %v3553
    %4265 = vmatmul.mubr.bf16.gmra.mxu0 %v3552
    %v4266 = vpop.f32.mrf.mxu0
    %v4267 = vadd.f32 %v3285, %v4266
    %v4268 = vpop.f32.mrf.mxu0
    %v4269 = vadd.f32 %v3289, %v4268
    %v4270 = vpop.f32.mrf.mxu0
    %v4271 = vadd.f32 %v3285, %v4270
    %v4272 = vpop.f32.mrf.mxu0
    %v4273 = vadd.f32 %v3289, %v4272
    %4274 = vmatprep.mubr.bf16.mxu0 %v3555
    %4275 = vmatmul.mubr.bf16.gmra.mxu0 %v3554
    %v4276 = vpop.f32.mrf.mxu0
    %v4277 = vadd.f32 %v3285, %v4276
    %v4278 = vpop.f32.mrf.mxu0
    %v4279 = vadd.f32 %v3289, %v4278
    %v4280 = vpop.f32.mrf.mxu0
    %v4281 = vadd.f32 %v3285, %v4280
    %v4282 = vpop.f32.mrf.mxu0
    %v4283 = vadd.f32 %v3289, %v4282
    %4284 = vmatprep.mubr.bf16.mxu0 %v3557
    %4285 = vmatmul.mubr.bf16.gmra.mxu0 %v3556
    %v4286 = vpop.f32.mrf.mxu0
    %v4287 = vadd.f32 %v3285, %v4286
    %v4288 = vpop.f32.mrf.mxu0
    %v4289 = vadd.f32 %v3289, %v4288
    %v4290 = vpop.f32.mrf.mxu0
    %v4291 = vadd.f32 %v3285, %v4290
    %v4292 = vpop.f32.mrf.mxu0
    %v4293 = vadd.f32 %v3289, %v4292
    %4294 = vdwg.mxu0
    %4295 = vmatprep.subr.bf16.mxu0 %v3845
    %4296 = vmatpush1.bf16.msra.mxu0 %v3844
    %4297 = vmatprep.subr.bf16.mxu0 %v3841
    %4298 = vmatpush1.bf16.msra.mxu0 %v3840
    %4299 = vmatprep.subr.bf16.mxu0 %v3837
    %4300 = vmatpush1.bf16.msra.mxu0 %v3836
    %4301 = vmatprep.subr.bf16.mxu0 %v3833
    %4302 = vmatpush1.bf16.msra.mxu0 %v3832
    %4303 = vmatprep.subr.bf16.mxu0 %v3829
    %4304 = vmatpush1.bf16.msra.mxu0 %v3828
    %4305 = vmatprep.subr.bf16.mxu0 %v3825
    %4306 = vmatpush1.bf16.msra.mxu0 %v3824
    %4307 = vmatprep.subr.bf16.mxu0 %v3821
    %4308 = vmatpush1.bf16.msra.mxu0 %v3820
    %4309 = vmatprep.subr.bf16.mxu0 %v3817
    %4310 = vmatpush1.bf16.msra.mxu0 %v3816
    %4311 = vmatprep.subr.bf16.mxu0 %v3877
    %4312 = vmatpush2.bf16.msra.mxu0 %v3876
    %4313 = vmatprep.subr.bf16.mxu0 %v3873
    %4314 = vmatpush2.bf16.msra.mxu0 %v3872
    %4315 = vmatprep.subr.bf16.mxu0 %v3869
    %4316 = vmatpush2.bf16.msra.mxu0 %v3868
    %4317 = vmatprep.subr.bf16.mxu0 %v3865
    %4318 = vmatpush2.bf16.msra.mxu0 %v3864
    %4319 = vmatprep.subr.bf16.mxu0 %v3861
    %4320 = vmatpush2.bf16.msra.mxu0 %v3860
    %4321 = vmatprep.subr.bf16.mxu0 %v3857
    %4322 = vmatpush2.bf16.msra.mxu0 %v3856
    %4323 = vmatprep.subr.bf16.mxu0 %v3853
    %4324 = vmatpush2.bf16.msra.mxu0 %v3852
    %4325 = vmatprep.subr.bf16.mxu0 %v3849
    %4326 = vmatpush2.bf16.msra.mxu0 %v3848
    %4327 = vmatprep.mubr.bf16.mxu0 %v3495
    %4328 = vmatmul.mubr.bf16.gmra.mxu0 %v3494
    %v4329 = vpop.f32.mrf.mxu0
    %v4330 = vadd.f32 %v3293, %v4329
    %v4331 = vpop.f32.mrf.mxu0
    %v4332 = vadd.f32 %v3297, %v4331
    %v4333 = vpop.f32.mrf.mxu0
    %v4334 = vadd.f32 %v3293, %v4333
    %v4335 = vpop.f32.mrf.mxu0
    %v4336 = vadd.f32 %v3297, %v4335
    %4337 = vmatprep.mubr.bf16.mxu0 %v3497
    %4338 = vmatmul.mubr.bf16.gmra.mxu0 %v3496
    %v4339 = vpop.f32.mrf.mxu0
    %v4340 = vadd.f32 %v3293, %v4339
    %v4341 = vpop.f32.mrf.mxu0
    %v4342 = vadd.f32 %v3297, %v4341
    %v4343 = vpop.f32.mrf.mxu0
    %v4344 = vadd.f32 %v3293, %v4343
    %v4345 = vpop.f32.mrf.mxu0
    %v4346 = vadd.f32 %v3297, %v4345
    %4347 = vmatprep.mubr.bf16.mxu0 %v3499
    %4348 = vmatmul.mubr.bf16.gmra.mxu0 %v3498
    %v4349 = vpop.f32.mrf.mxu0
    %v4350 = vadd.f32 %v3293, %v4349
    %v4351 = vpop.f32.mrf.mxu0
    %v4352 = vadd.f32 %v3297, %v4351
    %v4353 = vpop.f32.mrf.mxu0
    %v4354 = vadd.f32 %v3293, %v4353
    %v4355 = vpop.f32.mrf.mxu0
    %v4356 = vadd.f32 %v3297, %v4355
    %4357 = vmatprep.mubr.bf16.mxu0 %v3501
    %4358 = vmatmul.mubr.bf16.gmra.mxu0 %v3500
    %v4359 = vpop.f32.mrf.mxu0
    %v4360 = vadd.f32 %v3293, %v4359
    %v4361 = vpop.f32.mrf.mxu0
    %v4362 = vadd.f32 %v3297, %v4361
    %v4363 = vpop.f32.mrf.mxu0
    %v4364 = vadd.f32 %v3293, %v4363
    %v4365 = vpop.f32.mrf.mxu0
    %v4366 = vadd.f32 %v3297, %v4365
    %4367 = vmatprep.mubr.bf16.mxu0 %v3503
    %4368 = vmatmul.mubr.bf16.gmra.mxu0 %v3502
    %v4369 = vpop.f32.mrf.mxu0
    %v4370 = vadd.f32 %v3293, %v4369
    %v4371 = vpop.f32.mrf.mxu0
    %v4372 = vadd.f32 %v3297, %v4371
    %v4373 = vpop.f32.mrf.mxu0
    %v4374 = vadd.f32 %v3293, %v4373
    %v4375 = vpop.f32.mrf.mxu0
    %v4376 = vadd.f32 %v3297, %v4375
    %4377 = vmatprep.mubr.bf16.mxu0 %v3505
    %4378 = vmatmul.mubr.bf16.gmra.mxu0 %v3504
    %v4379 = vpop.f32.mrf.mxu0
    %v4380 = vadd.f32 %v3293, %v4379
    %v4381 = vpop.f32.mrf.mxu0
    %v4382 = vadd.f32 %v3297, %v4381
    %v4383 = vpop.f32.mrf.mxu0
    %v4384 = vadd.f32 %v3293, %v4383
    %v4385 = vpop.f32.mrf.mxu0
    %v4386 = vadd.f32 %v3297, %v4385
    %4387 = vmatprep.mubr.bf16.mxu0 %v3507
    %4388 = vmatmul.mubr.bf16.gmra.mxu0 %v3506
    %v4389 = vpop.f32.mrf.mxu0
    %v4390 = vadd.f32 %v3293, %v4389
    %v4391 = vpop.f32.mrf.mxu0
    %v4392 = vadd.f32 %v3297, %v4391
    %v4393 = vpop.f32.mrf.mxu0
    %v4394 = vadd.f32 %v3293, %v4393
    %v4395 = vpop.f32.mrf.mxu0
    %v4396 = vadd.f32 %v3297, %v4395
    %4397 = vmatprep.mubr.bf16.mxu0 %v3509
    %4398 = vmatmul.mubr.bf16.gmra.mxu0 %v3508
    %v4399 = vpop.f32.mrf.mxu0
    %v4400 = vadd.f32 %v3293, %v4399
    %v4401 = vpop.f32.mrf.mxu0
    %v4402 = vadd.f32 %v3297, %v4401
    %v4403 = vpop.f32.mrf.mxu0
    %v4404 = vadd.f32 %v3293, %v4403
    %v4405 = vpop.f32.mrf.mxu0
    %v4406 = vadd.f32 %v3297, %v4405
    %4407 = vmatprep.mubr.bf16.mxu0 %v3511
    %4408 = vmatmul.mubr.bf16.gmra.mxu0 %v3510
    %v4409 = vpop.f32.mrf.mxu0
    %v4410 = vadd.f32 %v3293, %v4409
    %v4411 = vpop.f32.mrf.mxu0
    %v4412 = vadd.f32 %v3297, %v4411
    %v4413 = vpop.f32.mrf.mxu0
    %v4414 = vadd.f32 %v3293, %v4413
    %v4415 = vpop.f32.mrf.mxu0
    %v4416 = vadd.f32 %v3297, %v4415
    %4417 = vmatprep.mubr.bf16.mxu0 %v3513
    %4418 = vmatmul.mubr.bf16.gmra.mxu0 %v3512
    %v4419 = vpop.f32.mrf.mxu0
    %v4420 = vadd.f32 %v3293, %v4419
    %v4421 = vpop.f32.mrf.mxu0
    %v4422 = vadd.f32 %v3297, %v4421
    %v4423 = vpop.f32.mrf.mxu0
    %v4424 = vadd.f32 %v3293, %v4423
    %v4425 = vpop.f32.mrf.mxu0
    %v4426 = vadd.f32 %v3297, %v4425
    %4427 = vmatprep.mubr.bf16.mxu0 %v3515
    %4428 = vmatmul.mubr.bf16.gmra.mxu0 %v3514
    %v4429 = vpop.f32.mrf.mxu0
    %v4430 = vadd.f32 %v3293, %v4429
    %v4431 = vpop.f32.mrf.mxu0
    %v4432 = vadd.f32 %v3297, %v4431
    %v4433 = vpop.f32.mrf.mxu0
    %v4434 = vadd.f32 %v3293, %v4433
    %v4435 = vpop.f32.mrf.mxu0
    %v4436 = vadd.f32 %v3297, %v4435
    %4437 = vmatprep.mubr.bf16.mxu0 %v3517
    %4438 = vmatmul.mubr.bf16.gmra.mxu0 %v3516
    %v4439 = vpop.f32.mrf.mxu0
    %v4440 = vadd.f32 %v3293, %v4439
    %v4441 = vpop.f32.mrf.mxu0
    %v4442 = vadd.f32 %v3297, %v4441
    %v4443 = vpop.f32.mrf.mxu0
    %v4444 = vadd.f32 %v3293, %v4443
    %v4445 = vpop.f32.mrf.mxu0
    %v4446 = vadd.f32 %v3297, %v4445
    %4447 = vmatprep.mubr.bf16.mxu0 %v3519
    %4448 = vmatmul.mubr.bf16.gmra.mxu0 %v3518
    %v4449 = vpop.f32.mrf.mxu0
    %v4450 = vadd.f32 %v3293, %v4449
    %v4451 = vpop.f32.mrf.mxu0
    %v4452 = vadd.f32 %v3297, %v4451
    %v4453 = vpop.f32.mrf.mxu0
    %v4454 = vadd.f32 %v3293, %v4453
    %v4455 = vpop.f32.mrf.mxu0
    %v4456 = vadd.f32 %v3297, %v4455
    %4457 = vmatprep.mubr.bf16.mxu0 %v3521
    %4458 = vmatmul.mubr.bf16.gmra.mxu0 %v3520
    %v4459 = vpop.f32.mrf.mxu0
    %v4460 = vadd.f32 %v3293, %v4459
    %v4461 = vpop.f32.mrf.mxu0
    %v4462 = vadd.f32 %v3297, %v4461
    %v4463 = vpop.f32.mrf.mxu0
    %v4464 = vadd.f32 %v3293, %v4463
    %v4465 = vpop.f32.mrf.mxu0
    %v4466 = vadd.f32 %v3297, %v4465
    %4467 = vmatprep.mubr.bf16.mxu0 %v3523
    %4468 = vmatmul.mubr.bf16.gmra.mxu0 %v3522
    %v4469 = vpop.f32.mrf.mxu0
    %v4470 = vadd.f32 %v3293, %v4469
    %v4471 = vpop.f32.mrf.mxu0
    %v4472 = vadd.f32 %v3297, %v4471
    %v4473 = vpop.f32.mrf.mxu0
    %v4474 = vadd.f32 %v3293, %v4473
    %v4475 = vpop.f32.mrf.mxu0
    %v4476 = vadd.f32 %v3297, %v4475
    %4477 = vmatprep.mubr.bf16.mxu0 %v3525
    %4478 = vmatmul.mubr.bf16.gmra.mxu0 %v3524
    %v4479 = vpop.f32.mrf.mxu0
    %v4480 = vadd.f32 %v3293, %v4479
    %v4481 = vpop.f32.mrf.mxu0
    %v4482 = vadd.f32 %v3297, %v4481
    %v4483 = vpop.f32.mrf.mxu0
    %v4484 = vadd.f32 %v3293, %v4483
    %v4485 = vpop.f32.mrf.mxu0
    %v4486 = vadd.f32 %v3297, %v4485
    %4487 = vmatprep.mubr.bf16.mxu0 %v3527
    %4488 = vmatmul.mubr.bf16.gmra.mxu0 %v3526
    %v4489 = vpop.f32.mrf.mxu0
    %v4490 = vadd.f32 %v3293, %v4489
    %v4491 = vpop.f32.mrf.mxu0
    %v4492 = vadd.f32 %v3297, %v4491
    %v4493 = vpop.f32.mrf.mxu0
    %v4494 = vadd.f32 %v3293, %v4493
    %v4495 = vpop.f32.mrf.mxu0
    %v4496 = vadd.f32 %v3297, %v4495
    %4497 = vmatprep.mubr.bf16.mxu0 %v3529
    %4498 = vmatmul.mubr.bf16.gmra.mxu0 %v3528
    %v4499 = vpop.f32.mrf.mxu0
    %v4500 = vadd.f32 %v3293, %v4499
    %v4501 = vpop.f32.mrf.mxu0
    %v4502 = vadd.f32 %v3297, %v4501
    %v4503 = vpop.f32.mrf.mxu0
    %v4504 = vadd.f32 %v3293, %v4503
    %v4505 = vpop.f32.mrf.mxu0
    %v4506 = vadd.f32 %v3297, %v4505
    %4507 = vmatprep.mubr.bf16.mxu0 %v3531
    %4508 = vmatmul.mubr.bf16.gmra.mxu0 %v3530
    %v4509 = vpop.f32.mrf.mxu0
    %v4510 = vadd.f32 %v3293, %v4509
    %v4511 = vpop.f32.mrf.mxu0
    %v4512 = vadd.f32 %v3297, %v4511
    %v4513 = vpop.f32.mrf.mxu0
    %v4514 = vadd.f32 %v3293, %v4513
    %v4515 = vpop.f32.mrf.mxu0
    %v4516 = vadd.f32 %v3297, %v4515
    %4517 = vmatprep.mubr.bf16.mxu0 %v3533
    %4518 = vmatmul.mubr.bf16.gmra.mxu0 %v3532
    %v4519 = vpop.f32.mrf.mxu0
    %v4520 = vadd.f32 %v3293, %v4519
    %v4521 = vpop.f32.mrf.mxu0
    %v4522 = vadd.f32 %v3297, %v4521
    %v4523 = vpop.f32.mrf.mxu0
    %v4524 = vadd.f32 %v3293, %v4523
    %v4525 = vpop.f32.mrf.mxu0
    %v4526 = vadd.f32 %v3297, %v4525
    %4527 = vmatprep.mubr.bf16.mxu0 %v3535
    %4528 = vmatmul.mubr.bf16.gmra.mxu0 %v3534
    %v4529 = vpop.f32.mrf.mxu0
    %v4530 = vadd.f32 %v3293, %v4529
    %v4531 = vpop.f32.mrf.mxu0
    %v4532 = vadd.f32 %v3297, %v4531
    %v4533 = vpop.f32.mrf.mxu0
    %v4534 = vadd.f32 %v3293, %v4533
    %v4535 = vpop.f32.mrf.mxu0
    %v4536 = vadd.f32 %v3297, %v4535
    %4537 = vmatprep.mubr.bf16.mxu0 %v3537
    %4538 = vmatmul.mubr.bf16.gmra.mxu0 %v3536
    %v4539 = vpop.f32.mrf.mxu0
    %v4540 = vadd.f32 %v3293, %v4539
    %v4541 = vpop.f32.mrf.mxu0
    %v4542 = vadd.f32 %v3297, %v4541
    %v4543 = vpop.f32.mrf.mxu0
    %v4544 = vadd.f32 %v3293, %v4543
    %v4545 = vpop.f32.mrf.mxu0
    %v4546 = vadd.f32 %v3297, %v4545
    %4547 = vmatprep.mubr.bf16.mxu0 %v3539
    %4548 = vmatmul.mubr.bf16.gmra.mxu0 %v3538
    %v4549 = vpop.f32.mrf.mxu0
    %v4550 = vadd.f32 %v3293, %v4549
    %v4551 = vpop.f32.mrf.mxu0
    %v4552 = vadd.f32 %v3297, %v4551
    %v4553 = vpop.f32.mrf.mxu0
    %v4554 = vadd.f32 %v3293, %v4553
    %v4555 = vpop.f32.mrf.mxu0
    %v4556 = vadd.f32 %v3297, %v4555
    %4557 = vmatprep.mubr.bf16.mxu0 %v3541
    %4558 = vmatmul.mubr.bf16.gmra.mxu0 %v3540
    %v4559 = vpop.f32.mrf.mxu0
    %v4560 = vadd.f32 %v3293, %v4559
    %v4561 = vpop.f32.mrf.mxu0
    %v4562 = vadd.f32 %v3297, %v4561
    %v4563 = vpop.f32.mrf.mxu0
    %v4564 = vadd.f32 %v3293, %v4563
    %v4565 = vpop.f32.mrf.mxu0
    %v4566 = vadd.f32 %v3297, %v4565
    %4567 = vmatprep.mubr.bf16.mxu0 %v3543
    %4568 = vmatmul.mubr.bf16.gmra.mxu0 %v3542
    %v4569 = vpop.f32.mrf.mxu0
    %v4570 = vadd.f32 %v3293, %v4569
    %v4571 = vpop.f32.mrf.mxu0
    %v4572 = vadd.f32 %v3297, %v4571
    %v4573 = vpop.f32.mrf.mxu0
    %v4574 = vadd.f32 %v3293, %v4573
    %v4575 = vpop.f32.mrf.mxu0
    %v4576 = vadd.f32 %v3297, %v4575
    %4577 = vmatprep.mubr.bf16.mxu0 %v3545
    %4578 = vmatmul.mubr.bf16.gmra.mxu0 %v3544
    %v4579 = vpop.f32.mrf.mxu0
    %v4580 = vadd.f32 %v3293, %v4579
    %v4581 = vpop.f32.mrf.mxu0
    %v4582 = vadd.f32 %v3297, %v4581
    %v4583 = vpop.f32.mrf.mxu0
    %v4584 = vadd.f32 %v3293, %v4583
    %v4585 = vpop.f32.mrf.mxu0
    %v4586 = vadd.f32 %v3297, %v4585
    %4587 = vmatprep.mubr.bf16.mxu0 %v3547
    %4588 = vmatmul.mubr.bf16.gmra.mxu0 %v3546
    %v4589 = vpop.f32.mrf.mxu0
    %v4590 = vadd.f32 %v3293, %v4589
    %v4591 = vpop.f32.mrf.mxu0
    %v4592 = vadd.f32 %v3297, %v4591
    %v4593 = vpop.f32.mrf.mxu0
    %v4594 = vadd.f32 %v3293, %v4593
    %v4595 = vpop.f32.mrf.mxu0
    %v4596 = vadd.f32 %v3297, %v4595
    %4597 = vmatprep.mubr.bf16.mxu0 %v3549
    %4598 = vmatmul.mubr.bf16.gmra.mxu0 %v3548
    %v4599 = vpop.f32.mrf.mxu0
    %v4600 = vadd.f32 %v3293, %v4599
    %v4601 = vpop.f32.mrf.mxu0
    %v4602 = vadd.f32 %v3297, %v4601
    %v4603 = vpop.f32.mrf.mxu0
    %v4604 = vadd.f32 %v3293, %v4603
    %v4605 = vpop.f32.mrf.mxu0
    %v4606 = vadd.f32 %v3297, %v4605
    %4607 = vmatprep.mubr.bf16.mxu0 %v3551
    %4608 = vmatmul.mubr.bf16.gmra.mxu0 %v3550
    %v4609 = vpop.f32.mrf.mxu0
    %v4610 = vadd.f32 %v3293, %v4609
    %v4611 = vpop.f32.mrf.mxu0
    %v4612 = vadd.f32 %v3297, %v4611
    %v4613 = vpop.f32.mrf.mxu0
    %v4614 = vadd.f32 %v3293, %v4613
    %v4615 = vpop.f32.mrf.mxu0
    %v4616 = vadd.f32 %v3297, %v4615
    %4617 = vmatprep.mubr.bf16.mxu0 %v3553
    %4618 = vmatmul.mubr.bf16.gmra.mxu0 %v3552
    %v4619 = vpop.f32.mrf.mxu0
    %v4620 = vadd.f32 %v3293, %v4619
    %v4621 = vpop.f32.mrf.mxu0
    %v4622 = vadd.f32 %v3297, %v4621
    %v4623 = vpop.f32.mrf.mxu0
    %v4624 = vadd.f32 %v3293, %v4623
    %v4625 = vpop.f32.mrf.mxu0
    %v4626 = vadd.f32 %v3297, %v4625
    %4627 = vmatprep.mubr.bf16.mxu0 %v3555
    %4628 = vmatmul.mubr.bf16.gmra.mxu0 %v3554
    %v4629 = vpop.f32.mrf.mxu0
    %v4630 = vadd.f32 %v3293, %v4629
    %v4631 = vpop.f32.mrf.mxu0
    %v4632 = vadd.f32 %v3297, %v4631
    %v4633 = vpop.f32.mrf.mxu0
    %v4634 = vadd.f32 %v3293, %v4633
    %v4635 = vpop.f32.mrf.mxu0
    %v4636 = vadd.f32 %v3297, %v4635
    %4637 = vmatprep.mubr.bf16.mxu0 %v3557
    %4638 = vmatmul.mubr.bf16.gmra.mxu0 %v3556
    %v4639 = vpop.f32.mrf.mxu0
    %v4640 = vadd.f32 %v3293, %v4639
    %v4641 = vpop.f32.mrf.mxu0
    %v4642 = vadd.f32 %v3297, %v4641
    %v4643 = vpop.f32.mrf.mxu0
    %v4644 = vadd.f32 %v3293, %v4643
    %v4645 = vpop.f32.mrf.mxu0
    %v4646 = vadd.f32 %v3297, %v4645
    %4647 = vdwg.mxu0
    %4648 = vst [vmem:[#allocation9] sm:$0xff] %v3977
    %4649 = vst [vmem:[#allocation9 + $0x8] sm:$0xff] %v3979
    %4650 = vst [vmem:[#allocation9 + $0x10] sm:$0xff] %v4330
    %4651 = vst [vmem:[#allocation9 + $0x18] sm:$0xff] %v4332
    %4652 = vst [vmem:[#allocation9 + $0x20] sm:$0xff] %v3981
    %4653 = vst [vmem:[#allocation9 + $0x28] sm:$0xff] %v3983
    %4654 = vst [vmem:[#allocation9 + $0x30] sm:$0xff] %v4334
    %4655 = vst [vmem:[#allocation9 + $0x38] sm:$0xff] %v4336
    %4656 = vst [vmem:[#allocation9 + $0x40] sm:$0xff] %v3987
    %4657 = vst [vmem:[#allocation9 + $0x48] sm:$0xff] %v3989
    %4658 = vst [vmem:[#allocation9 + $0x50] sm:$0xff] %v4340
    %4659 = vst [vmem:[#allocation9 + $0x58] sm:$0xff] %v4342
    %4660 = vst [vmem:[#allocation9 + $0x60] sm:$0xff] %v3991
    %4661 = vst [vmem:[#allocation9 + $0x68] sm:$0xff] %v3993
    %4662 = vst [vmem:[#allocation9 + $0x70] sm:$0xff] %v4344
    %4663 = vst [vmem:[#allocation9 + $0x78] sm:$0xff] %v4346
    %4664 = vst [vmem:[#allocation9 + $0x80] sm:$0xff] %v3997
    %4665 = vst [vmem:[#allocation9 + $0x88] sm:$0xff] %v3999
    %4666 = vst [vmem:[#allocation9 + $0x90] sm:$0xff] %v4350
    %4667 = vst [vmem:[#allocation9 + $0x98] sm:$0xff] %v4352
    %4668 = vst [vmem:[#allocation9 + $0xa0] sm:$0xff] %v4001
    %4669 = vst [vmem:[#allocation9 + $0xa8] sm:$0xff] %v4003
    %4670 = vst [vmem:[#allocation9 + $0xb0] sm:$0xff] %v4354
    %4671 = vst [vmem:[#allocation9 + $0xb8] sm:$0xff] %v4356
    %4672 = vst [vmem:[#allocation9 + $0xc0] sm:$0xff] %v4007
    %4673 = vst [vmem:[#allocation9 + $0xc8] sm:$0xff] %v4009
    %4674 = vst [vmem:[#allocation9 + $0xd0] sm:$0xff] %v4360
    %4675 = vst [vmem:[#allocation9 + $0xd8] sm:$0xff] %v4362
    %4676 = vst [vmem:[#allocation9 + $0xe0] sm:$0xff] %v4011
    %4677 = vst [vmem:[#allocation9 + $0xe8] sm:$0xff] %v4013
    %4678 = vst [vmem:[#allocation9 + $0xf0] sm:$0xff] %v4364
    %4679 = vst [vmem:[#allocation9 + $0xf8] sm:$0xff] %v4366
    %4680 = vst [vmem:[#allocation9 + $0x100] sm:$0xff] %v4017
    %4681 = vst [vmem:[#allocation9 + $0x108] sm:$0xff] %v4019
    %4682 = vst [vmem:[#allocation9 + $0x110] sm:$0xff] %v4370
    %4683 = vst [vmem:[#allocation9 + $0x118] sm:$0xff] %v4372
    %4684 = vst [vmem:[#allocation9 + $0x120] sm:$0xff] %v4021
    %4685 = vst [vmem:[#allocation9 + $0x128] sm:$0xff] %v4023
    %4686 = vst [vmem:[#allocation9 + $0x130] sm:$0xff] %v4374
    %4687 = vst [vmem:[#allocation9 + $0x138] sm:$0xff] %v4376
    %4688 = vst [vmem:[#allocation9 + $0x140] sm:$0xff] %v4027
    %4689 = vst [vmem:[#allocation9 + $0x148] sm:$0xff] %v4029
    %4690 = vst [vmem:[#allocation9 + $0x150] sm:$0xff] %v4380
    %4691 = vst [vmem:[#allocation9 + $0x158] sm:$0xff] %v4382
    %4692 = vst [vmem:[#allocation9 + $0x160] sm:$0xff] %v4031
    %4693 = vst [vmem:[#allocation9 + $0x168] sm:$0xff] %v4033
    %4694 = vst [vmem:[#allocation9 + $0x170] sm:$0xff] %v4384
    %4695 = vst [vmem:[#allocation9 + $0x178] sm:$0xff] %v4386
    %4696 = vst [vmem:[#allocation9 + $0x180] sm:$0xff] %v4037
    %4697 = vst [vmem:[#allocation9 + $0x188] sm:$0xff] %v4039
    %4698 = vst [vmem:[#allocation9 + $0x190] sm:$0xff] %v4390
    %4699 = vst [vmem:[#allocation9 + $0x198] sm:$0xff] %v4392
    %4700 = vst [vmem:[#allocation9 + $0x1a0] sm:$0xff] %v4041
    %4701 = vst [vmem:[#allocation9 + $0x1a8] sm:$0xff] %v4043
    %4702 = vst [vmem:[#allocation9 + $0x1b0] sm:$0xff] %v4394
    %4703 = vst [vmem:[#allocation9 + $0x1b8] sm:$0xff] %v4396
    %4704 = vst [vmem:[#allocation9 + $0x1c0] sm:$0xff] %v4047
    %4705 = vst [vmem:[#allocation9 + $0x1c8] sm:$0xff] %v4049
    %4706 = vst [vmem:[#allocation9 + $0x1d0] sm:$0xff] %v4400
    %4707 = vst [vmem:[#allocation9 + $0x1d8] sm:$0xff] %v4402
    %4708 = vst [vmem:[#allocation9 + $0x1e0] sm:$0xff] %v4051
    %4709 = vst [vmem:[#allocation9 + $0x1e8] sm:$0xff] %v4053
    %4710 = vst [vmem:[#allocation9 + $0x1f0] sm:$0xff] %v4404
    %4711 = vst [vmem:[#allocation9 + $0x1f8] sm:$0xff] %v4406
    %4712 = vst [vmem:[#allocation9 + $0x200] sm:$0xff] %v4057
    %4713 = vst [vmem:[#allocation9 + $0x208] sm:$0xff] %v4059
    %4714 = vst [vmem:[#allocation9 + $0x210] sm:$0xff] %v4410
    %4715 = vst [vmem:[#allocation9 + $0x218] sm:$0xff] %v4412
    %4716 = vst [vmem:[#allocation9 + $0x220] sm:$0xff] %v4061
    %4717 = vst [vmem:[#allocation9 + $0x228] sm:$0xff] %v4063
    %4718 = vst [vmem:[#allocation9 + $0x230] sm:$0xff] %v4414
    %4719 = vst [vmem:[#allocation9 + $0x238] sm:$0xff] %v4416
    %4720 = vst [vmem:[#allocation9 + $0x240] sm:$0xff] %v4067
    %4721 = vst [vmem:[#allocation9 + $0x248] sm:$0xff] %v4069
    %4722 = vst [vmem:[#allocation9 + $0x250] sm:$0xff] %v4420
    %4723 = vst [vmem:[#allocation9 + $0x258] sm:$0xff] %v4422
    %4724 = vst [vmem:[#allocation9 + $0x260] sm:$0xff] %v4071
    %4725 = vst [vmem:[#allocation9 + $0x268] sm:$0xff] %v4073
    %4726 = vst [vmem:[#allocation9 + $0x270] sm:$0xff] %v4424
    %4727 = vst [vmem:[#allocation9 + $0x278] sm:$0xff] %v4426
    %4728 = vst [vmem:[#allocation9 + $0x280] sm:$0xff] %v4077
    %4729 = vst [vmem:[#allocation9 + $0x288] sm:$0xff] %v4079
    %4730 = vst [vmem:[#allocation9 + $0x290] sm:$0xff] %v4430
    %4731 = vst [vmem:[#allocation9 + $0x298] sm:$0xff] %v4432
    %4732 = vst [vmem:[#allocation9 + $0x2a0] sm:$0xff] %v4081
    %4733 = vst [vmem:[#allocation9 + $0x2a8] sm:$0xff] %v4083
    %4734 = vst [vmem:[#allocation9 + $0x2b0] sm:$0xff] %v4434
    %4735 = vst [vmem:[#allocation9 + $0x2b8] sm:$0xff] %v4436
    %4736 = vst [vmem:[#allocation9 + $0x2c0] sm:$0xff] %v4087
    %4737 = vst [vmem:[#allocation9 + $0x2c8] sm:$0xff] %v4089
    %4738 = vst [vmem:[#allocation9 + $0x2d0] sm:$0xff] %v4440
    %4739 = vst [vmem:[#allocation9 + $0x2d8] sm:$0xff] %v4442
    %4740 = vst [vmem:[#allocation9 + $0x2e0] sm:$0xff] %v4091
    %4741 = vst [vmem:[#allocation9 + $0x2e8] sm:$0xff] %v4093
    %4742 = vst [vmem:[#allocation9 + $0x2f0] sm:$0xff] %v4444
    %4743 = vst [vmem:[#allocation9 + $0x2f8] sm:$0xff] %v4446
    %4744 = vst [vmem:[#allocation9 + $0x300] sm:$0xff] %v4097
    %4745 = vst [vmem:[#allocation9 + $0x308] sm:$0xff] %v4099
    %4746 = vst [vmem:[#allocation9 + $0x310] sm:$0xff] %v4450
    %4747 = vst [vmem:[#allocation9 + $0x318] sm:$0xff] %v4452
    %4748 = vst [vmem:[#allocation9 + $0x320] sm:$0xff] %v4101
    %4749 = vst [vmem:[#allocation9 + $0x328] sm:$0xff] %v4103
    %4750 = vst [vmem:[#allocation9 + $0x330] sm:$0xff] %v4454
    %4751 = vst [vmem:[#allocation9 + $0x338] sm:$0xff] %v4456
    %4752 = vst [vmem:[#allocation9 + $0x340] sm:$0xff] %v4107
    %4753 = vst [vmem:[#allocation9 + $0x348] sm:$0xff] %v4109
    %4754 = vst [vmem:[#allocation9 + $0x350] sm:$0xff] %v4460
    %4755 = vst [vmem:[#allocation9 + $0x358] sm:$0xff] %v4462
    %4756 = vst [vmem:[#allocation9 + $0x360] sm:$0xff] %v4111
    %4757 = vst [vmem:[#allocation9 + $0x368] sm:$0xff] %v4113
    %4758 = vst [vmem:[#allocation9 + $0x370] sm:$0xff] %v4464
    %4759 = vst [vmem:[#allocation9 + $0x378] sm:$0xff] %v4466
    %4760 = vst [vmem:[#allocation9 + $0x380] sm:$0xff] %v4117
    %4761 = vst [vmem:[#allocation9 + $0x388] sm:$0xff] %v4119
    %4762 = vst [vmem:[#allocation9 + $0x390] sm:$0xff] %v4470
    %4763 = vst [vmem:[#allocation9 + $0x398] sm:$0xff] %v4472
    %4764 = vst [vmem:[#allocation9 + $0x3a0] sm:$0xff] %v4121
    %4765 = vst [vmem:[#allocation9 + $0x3a8] sm:$0xff] %v4123
    %4766 = vst [vmem:[#allocation9 + $0x3b0] sm:$0xff] %v4474
    %4767 = vst [vmem:[#allocation9 + $0x3b8] sm:$0xff] %v4476
    %4768 = vst [vmem:[#allocation9 + $0x3c0] sm:$0xff] %v4127
    %4769 = vst [vmem:[#allocation9 + $0x3c8] sm:$0xff] %v4129
    %4770 = vst [vmem:[#allocation9 + $0x3d0] sm:$0xff] %v4480
    %4771 = vst [vmem:[#allocation9 + $0x3d8] sm:$0xff] %v4482
    %4772 = vst [vmem:[#allocation9 + $0x3e0] sm:$0xff] %v4131
    %4773 = vst [vmem:[#allocation9 + $0x3e8] sm:$0xff] %v4133
    %4774 = vst [vmem:[#allocation9 + $0x3f0] sm:$0xff] %v4484
    %4775 = vst [vmem:[#allocation9 + $0x3f8] sm:$0xff] %v4486
    %4776 = vst [vmem:[#allocation9 + $0x400] sm:$0xff] %v4137
    %4777 = vst [vmem:[#allocation9 + $0x408] sm:$0xff] %v4139
    %4778 = vst [vmem:[#allocation9 + $0x410] sm:$0xff] %v4490
    %4779 = vst [vmem:[#allocation9 + $0x418] sm:$0xff] %v4492
    %4780 = vst [vmem:[#allocation9 + $0x420] sm:$0xff] %v4141
    %4781 = vst [vmem:[#allocation9 + $0x428] sm:$0xff] %v4143
    %4782 = vst [vmem:[#allocation9 + $0x430] sm:$0xff] %v4494
    %4783 = vst [vmem:[#allocation9 + $0x438] sm:$0xff] %v4496
    %4784 = vst [vmem:[#allocation9 + $0x440] sm:$0xff] %v4147
    %4785 = vst [vmem:[#allocation9 + $0x448] sm:$0xff] %v4149
    %4786 = vst [vmem:[#allocation9 + $0x450] sm:$0xff] %v4500
    %4787 = vst [vmem:[#allocation9 + $0x458] sm:$0xff] %v4502
    %4788 = vst [vmem:[#allocation9 + $0x460] sm:$0xff] %v4151
    %4789 = vst [vmem:[#allocation9 + $0x468] sm:$0xff] %v4153
    %4790 = vst [vmem:[#allocation9 + $0x470] sm:$0xff] %v4504
    %4791 = vst [vmem:[#allocation9 + $0x478] sm:$0xff] %v4506
    %4792 = vst [vmem:[#allocation9 + $0x480] sm:$0xff] %v4157
    %4793 = vst [vmem:[#allocation9 + $0x488] sm:$0xff] %v4159
    %4794 = vst [vmem:[#allocation9 + $0x490] sm:$0xff] %v4510
    %4795 = vst [vmem:[#allocation9 + $0x498] sm:$0xff] %v4512
    %4796 = vst [vmem:[#allocation9 + $0x4a0] sm:$0xff] %v4161
    %4797 = vst [vmem:[#allocation9 + $0x4a8] sm:$0xff] %v4163
    %4798 = vst [vmem:[#allocation9 + $0x4b0] sm:$0xff] %v4514
    %4799 = vst [vmem:[#allocation9 + $0x4b8] sm:$0xff] %v4516
    %4800 = vst [vmem:[#allocation9 + $0x4c0] sm:$0xff] %v4167
    %4801 = vst [vmem:[#allocation9 + $0x4c8] sm:$0xff] %v4169
    %4802 = vst [vmem:[#allocation9 + $0x4d0] sm:$0xff] %v4520
    %4803 = vst [vmem:[#allocation9 + $0x4d8] sm:$0xff] %v4522
    %4804 = vst [vmem:[#allocation9 + $0x4e0] sm:$0xff] %v4171
    %4805 = vst [vmem:[#allocation9 + $0x4e8] sm:$0xff] %v4173
    %4806 = vst [vmem:[#allocation9 + $0x4f0] sm:$0xff] %v4524
    %4807 = vst [vmem:[#allocation9 + $0x4f8] sm:$0xff] %v4526
    %4808 = vst [vmem:[#allocation9 + $0x500] sm:$0xff] %v4177
    %4809 = vst [vmem:[#allocation9 + $0x508] sm:$0xff] %v4179
    %4810 = vst [vmem:[#allocation9 + $0x510] sm:$0xff] %v4530
    %4811 = vst [vmem:[#allocation9 + $0x518] sm:$0xff] %v4532
    %4812 = vst [vmem:[#allocation9 + $0x520] sm:$0xff] %v4181
    %4813 = vst [vmem:[#allocation9 + $0x528] sm:$0xff] %v4183
    %4814 = vst [vmem:[#allocation9 + $0x530] sm:$0xff] %v4534
    %4815 = vst [vmem:[#allocation9 + $0x538] sm:$0xff] %v4536
    %4816 = vst [vmem:[#allocation9 + $0x540] sm:$0xff] %v4187
    %4817 = vst [vmem:[#allocation9 + $0x548] sm:$0xff] %v4189
    %4818 = vst [vmem:[#allocation9 + $0x550] sm:$0xff] %v4540
    %4819 = vst [vmem:[#allocation9 + $0x558] sm:$0xff] %v4542
    %4820 = vst [vmem:[#allocation9 + $0x560] sm:$0xff] %v4191
    %4821 = vst [vmem:[#allocation9 + $0x568] sm:$0xff] %v4193
    %4822 = vst [vmem:[#allocation9 + $0x570] sm:$0xff] %v4544
    %4823 = vst [vmem:[#allocation9 + $0x578] sm:$0xff] %v4546
    %4824 = vst [vmem:[#allocation9 + $0x580] sm:$0xff] %v4197
    %4825 = vst [vmem:[#allocation9 + $0x588] sm:$0xff] %v4199
    %4826 = vst [vmem:[#allocation9 + $0x590] sm:$0xff] %v4550
    %4827 = vst [vmem:[#allocation9 + $0x598] sm:$0xff] %v4552
    %4828 = vst [vmem:[#allocation9 + $0x5a0] sm:$0xff] %v4201
    %4829 = vst [vmem:[#allocation9 + $0x5a8] sm:$0xff] %v4203
    %4830 = vst [vmem:[#allocation9 + $0x5b0] sm:$0xff] %v4554
    %4831 = vst [vmem:[#allocation9 + $0x5b8] sm:$0xff] %v4556
    %4832 = vst [vmem:[#allocation9 + $0x5c0] sm:$0xff] %v4207
    %4833 = vst [vmem:[#allocation9 + $0x5c8] sm:$0xff] %v4209
    %4834 = vst [vmem:[#allocation9 + $0x5d0] sm:$0xff] %v4560
    %4835 = vst [vmem:[#allocation9 + $0x5d8] sm:$0xff] %v4562
    %4836 = vst [vmem:[#allocation9 + $0x5e0] sm:$0xff] %v4211
    %4837 = vst [vmem:[#allocation9 + $0x5e8] sm:$0xff] %v4213
    %4838 = vst [vmem:[#allocation9 + $0x5f0] sm:$0xff] %v4564
    %4839 = vst [vmem:[#allocation9 + $0x5f8] sm:$0xff] %v4566
    %4840 = vst [vmem:[#allocation9 + $0x600] sm:$0xff] %v4217
    %4841 = vst [vmem:[#allocation9 + $0x608] sm:$0xff] %v4219
    %4842 = vst [vmem:[#allocation9 + $0x610] sm:$0xff] %v4570
    %4843 = vst [vmem:[#allocation9 + $0x618] sm:$0xff] %v4572
    %4844 = vst [vmem:[#allocation9 + $0x620] sm:$0xff] %v4221
    %4845 = vst [vmem:[#allocation9 + $0x628] sm:$0xff] %v4223
    %4846 = vst [vmem:[#allocation9 + $0x630] sm:$0xff] %v4574
    %4847 = vst [vmem:[#allocation9 + $0x638] sm:$0xff] %v4576
    %4848 = vst [vmem:[#allocation9 + $0x640] sm:$0xff] %v4227
    %4849 = vst [vmem:[#allocation9 + $0x648] sm:$0xff] %v4229
    %4850 = vst [vmem:[#allocation9 + $0x650] sm:$0xff] %v4580
    %4851 = vst [vmem:[#allocation9 + $0x658] sm:$0xff] %v4582
    %4852 = vst [vmem:[#allocation9 + $0x660] sm:$0xff] %v4231
    %4853 = vst [vmem:[#allocation9 + $0x668] sm:$0xff] %v4233
    %4854 = vst [vmem:[#allocation9 + $0x670] sm:$0xff] %v4584
    %4855 = vst [vmem:[#allocation9 + $0x678] sm:$0xff] %v4586
    %4856 = vst [vmem:[#allocation9 + $0x680] sm:$0xff] %v4237
    %4857 = vst [vmem:[#allocation9 + $0x688] sm:$0xff] %v4239
    %4858 = vst [vmem:[#allocation9 + $0x690] sm:$0xff] %v4590
    %4859 = vst [vmem:[#allocation9 + $0x698] sm:$0xff] %v4592
    %4860 = vst [vmem:[#allocation9 + $0x6a0] sm:$0xff] %v4241
    %4861 = vst [vmem:[#allocation9 + $0x6a8] sm:$0xff] %v4243
    %4862 = vst [vmem:[#allocation9 + $0x6b0] sm:$0xff] %v4594
    %4863 = vst [vmem:[#allocation9 + $0x6b8] sm:$0xff] %v4596
    %4864 = vst [vmem:[#allocation9 + $0x6c0] sm:$0xff] %v4247
    %4865 = vst [vmem:[#allocation9 + $0x6c8] sm:$0xff] %v4249
    %4866 = vst [vmem:[#allocation9 + $0x6d0] sm:$0xff] %v4600
    %4867 = vst [vmem:[#allocation9 + $0x6d8] sm:$0xff] %v4602
    %4868 = vst [vmem:[#allocation9 + $0x6e0] sm:$0xff] %v4251
    %4869 = vst [vmem:[#allocation9 + $0x6e8] sm:$0xff] %v4253
    %4870 = vst [vmem:[#allocation9 + $0x6f0] sm:$0xff] %v4604
    %4871 = vst [vmem:[#allocation9 + $0x6f8] sm:$0xff] %v4606
    %4872 = vst [vmem:[#allocation9 + $0x700] sm:$0xff] %v4257
    %4873 = vst [vmem:[#allocation9 + $0x708] sm:$0xff] %v4259
    %4874 = vst [vmem:[#allocation9 + $0x710] sm:$0xff] %v4610
    %4875 = vst [vmem:[#allocation9 + $0x718] sm:$0xff] %v4612
    %4876 = vst [vmem:[#allocation9 + $0x720] sm:$0xff] %v4261
    %4877 = vst [vmem:[#allocation9 + $0x728] sm:$0xff] %v4263
    %4878 = vst [vmem:[#allocation9 + $0x730] sm:$0xff] %v4614
    %4879 = vst [vmem:[#allocation9 + $0x738] sm:$0xff] %v4616
    %4880 = vst [vmem:[#allocation9 + $0x740] sm:$0xff] %v4267
    %4881 = vst [vmem:[#allocation9 + $0x748] sm:$0xff] %v4269
    %4882 = vst [vmem:[#allocation9 + $0x750] sm:$0xff] %v4620
    %4883 = vst [vmem:[#allocation9 + $0x758] sm:$0xff] %v4622
    %4884 = vst [vmem:[#allocation9 + $0x760] sm:$0xff] %v4271
    %4885 = vst [vmem:[#allocation9 + $0x768] sm:$0xff] %v4273
    %4886 = vst [vmem:[#allocation9 + $0x770] sm:$0xff] %v4624
    %4887 = vst [vmem:[#allocation9 + $0x778] sm:$0xff] %v4626
    %4888 = vst [vmem:[#allocation9 + $0x780] sm:$0xff] %v4277
    %4889 = vst [vmem:[#allocation9 + $0x788] sm:$0xff] %v4279
    %4890 = vst [vmem:[#allocation9 + $0x790] sm:$0xff] %v4630
    %4891 = vst [vmem:[#allocation9 + $0x798] sm:$0xff] %v4632
    %4892 = vst [vmem:[#allocation9 + $0x7a0] sm:$0xff] %v4281
    %4893 = vst [vmem:[#allocation9 + $0x7a8] sm:$0xff] %v4283
    %4894 = vst [vmem:[#allocation9 + $0x7b0] sm:$0xff] %v4634
    %4895 = vst [vmem:[#allocation9 + $0x7b8] sm:$0xff] %v4636
    %4896 = vst [vmem:[#allocation9 + $0x7c0] sm:$0xff] %v4287
    %4897 = vst [vmem:[#allocation9 + $0x7c8] sm:$0xff] %v4289
    %4898 = vst [vmem:[#allocation9 + $0x7d0] sm:$0xff] %v4640
    %4899 = vst [vmem:[#allocation9 + $0x7d8] sm:$0xff] %v4642
    %4900 = vst [vmem:[#allocation9 + $0x7e0] sm:$0xff] %v4291
    %4901 = vst [vmem:[#allocation9 + $0x7e8] sm:$0xff] %v4293
    %4902 = vst [vmem:[#allocation9 + $0x7f0] sm:$0xff] %v4644
    %4903 = vst [vmem:[#allocation9 + $0x7f8] sm:$0xff] %v4646
    // Predicated region
    $region38: #{tpu_custom_call.1} parent=1 // pred_check
      _
    $region39: #{tpu_custom_call.1} parent=1 // pred_check_branch
      %4905 = sbr.rel (0) target = $region41
    $region40: #{tpu_custom_call.1} parent=1 // pred_region
      %s4907 = ssub.s32 32768, 32768
      %4908 = vsyncadd [#allocation5], %s4907
      %s4909 = sshll.u32 [#allocation9], 4
      %s4910 = int_to_ptr.vmem [resolvable:$true] %s4909
      %4915 = dma.vmem_to_hbm [thread:$0]  %s4910, 32768, %s5, [#allocation5], 512, 512, 32
    $region41: #{tpu_custom_call.1} parent=1 // pred_fallthru
      _
    // Predicated region
    $region42: #{tpu_custom_call.1} parent=1 // pred_check
      _
    $region43: #{tpu_custom_call.1} parent=1 // pred_check_branch
      %4917 = sbr.rel (0) target = $region45
    $region44: #{tpu_custom_call.1} parent=1 // pred_region
      %4918 = dma.done [#allocation5], 32768
    $region45: #{tpu_custom_call.1} parent=1 // pred_fallthru
      _
    %4919 = vsyncpa [#allocation4], 1
    %4920 = vsyncpa [#allocation7], 1
    %4921 = vsyncpa [#allocation5], 1

</llo_original>
